<compile_context>
chip_gen: v7x
topology: tpu7x:2x2x1
jax: 0.10.0
libtpu: 0.0.40
codegen_flags: <defaults>
</compile_context>

<pallas_src>
import math
import functools

import jax
import jax.numpy as jnp
from jax.experimental import pallas as pl
from jax.experimental.pallas import tpu as pltpu


_ACT_DTYPE = jnp.bfloat16   # MXU-friendly dtype for weights / activations
_LN_EPS = 1e-5
_MIB = 1 << 20


# ---------------------------------------------------------------------------
# Helpers: tile selection + per-call VMEM limit
# ---------------------------------------------------------------------------

def _tile(dim, target, multiple=128):
    """Largest block <= target that divides dim and is a multiple of `multiple`,
    or the full dim when it already fits under the target."""
    if dim <= target:
        return dim
    cand = (target // multiple) * multiple
    while cand >= multiple:
        if dim % cand == 0:
            return cand
        cand -= multiple
    return dim


def _nbytes(shape, dtype):
    n = 1
    for d in shape:
        n *= int(d)
    return n * jnp.dtype(dtype).itemsize


def _cparams(semantics, *block_byte_counts):
    # Explicit scoped-VMEM limit sized from the block footprint (double-buffered),
    # floored at 32 MiB and capped at 64 MiB (v7x physical VMEM per TensorCore).
    est = sum(block_byte_counts)
    limit = int(min(max(2 * est + 8 * _MIB, 32 * _MIB), 64 * _MIB))
    return pltpu.CompilerParams(dimension_semantics=semantics,
                                vmem_limit_bytes=limit)


# ---------------------------------------------------------------------------
# Fused attention block (QKV proj + MHA + out-proj + residual + LayerNorm)
# ---------------------------------------------------------------------------

def _mha_block_body(x, kv_src, wq_ref, wk_ref, wv_ref, bq_ref, bk_ref, bv_ref,
                    wo_ref, bo_ref, g_ref, bb_ref, o_ref, *, nhead, scale, eps):
    # x: (Sq, H) queries, kv_src: (Sk, H) keys/values source (== x for self-attn).
    # Heads live on the LEADING dim of the weight refs -> no lane slicing, no concat.
    # TODO(synk): for long sequences, add flash-style tiling over q/kv blocks with an
    #             online softmax instead of full (Sq, Sk) scores per head.
    acc = bo_ref[...] + x.astype(jnp.float32)          # out-proj bias + residual pre-added
    for h in range(nhead):                             # static unroll over heads
        q = jnp.dot(x, wq_ref[h], preferred_element_type=jnp.float32) + bq_ref[h]
        k = jnp.dot(kv_src, wk_ref[h], preferred_element_type=jnp.float32) + bk_ref[h]
        v = jnp.dot(kv_src, wv_ref[h], preferred_element_type=jnp.float32) + bv_ref[h]
        # contract on the last axis of both operands -> no materialized k.T
        s = jax.lax.dot_general(q.astype(x.dtype), k.astype(x.dtype),
                                (((1,), (1,)), ((), ())),
                                preferred_element_type=jnp.float32) * scale
        m = jnp.max(s, axis=-1, keepdims=True)
        p = jnp.exp(s - m)
        p = p * pl.reciprocal(jnp.sum(p, axis=-1, keepdims=True), approx=True)  # EUP
        oh = jnp.dot(p.astype(x.dtype), v.astype(x.dtype),
                     preferred_element_type=jnp.float32)                         # (Sq, Dh)
        # per-head slice of the out-projection: concat(heads) @ Wo == sum_h oh @ Wo_h
        acc = acc + jnp.dot(oh.astype(x.dtype), wo_ref[h],
                            preferred_element_type=jnp.float32)                  # (Sq, H)
    mean = jnp.mean(acc, axis=-1, keepdims=True)
    c = acc - mean
    var = jnp.mean(c * c, axis=-1, keepdims=True)
    inv = jax.lax.rsqrt(var + eps)
    o_ref[...] = (c * inv * g_ref[...] + bb_ref[...]).astype(o_ref.dtype)


def _self_attn_block_kernel(x_ref, wq_ref, wk_ref, wv_ref, bq_ref, bk_ref, bv_ref,
                            wo_ref, bo_ref, g_ref, bb_ref, o_ref,
                            *, nhead, scale, eps):
    x = x_ref[...]
    _mha_block_body(x, x, wq_ref, wk_ref, wv_ref, bq_ref, bk_ref, bv_ref,
                    wo_ref, bo_ref, g_ref, bb_ref, o_ref,
                    nhead=nhead, scale=scale, eps=eps)


def _cross_attn_block_kernel(x_ref, mem_ref, wq_ref, wk_ref, wv_ref, bq_ref, bk_ref,
                             bv_ref, wo_ref, bo_ref, g_ref, bb_ref, o_ref,
                             *, nhead, scale, eps):
    _mha_block_body(x_ref[...], mem_ref[...], wq_ref, wk_ref, wv_ref, bq_ref, bk_ref,
                    bv_ref, wo_ref, bo_ref, g_ref, bb_ref, o_ref,
                    nhead=nhead, scale=scale, eps=eps)


def _mha_specs(nhead, H, Dh):
    wspec = pl.BlockSpec((nhead, H, Dh), lambda b: (0, 0, 0))
    bspec = pl.BlockSpec((nhead, 1, Dh), lambda b: (0, 0, 0))
    vspec = pl.BlockSpec((1, H), lambda b: (0, 0))
    return [wspec, wspec, wspec, bspec, bspec, bspec,
            pl.BlockSpec((nhead, Dh, H), lambda b: (0, 0, 0)),
            vspec, vspec, vspec]


def self_attn_block(x, mha, gamma, beta, nhead):
    # x: (N, S, H) batch-first; one grid cell per batch element (>=2 parallel cells).
    N, S, H = x.shape
    Dh = H // nhead
    scale = 1.0 / math.sqrt(Dh)
    est = (2 * _nbytes((S, H), x.dtype) + 4 * _nbytes((H, H), _ACT_DTYPE)
           + 3 * _nbytes((S, S), jnp.float32))
    return pl.pallas_call(
        functools.partial(_self_attn_block_kernel, nhead=nhead, scale=scale, eps=_LN_EPS),
        out_shape=jax.ShapeDtypeStruct((N, S, H), x.dtype),
        grid=(N,),
        in_specs=[pl.BlockSpec((None, S, H), lambda b: (b, 0, 0))] + _mha_specs(nhead, H, Dh),
        out_specs=pl.BlockSpec((None, S, H), lambda b: (b, 0, 0)),
        compiler_params=_cparams(("parallel",), est),
    )(x, mha["wq"], mha["wk"], mha["wv"], mha["bq"], mha["bk"], mha["bv"],
      mha["wo"], mha["bo"], gamma.reshape(1, H), beta.reshape(1, H))


def cross_attn_block(x, memory, mha, gamma, beta, nhead):
    # x: (N, Sq, H) target; memory: (N, Sk, H) encoder output.
    N, S, H = x.shape
    Sk = memory.shape[1]
    Dh = H // nhead
    scale = 1.0 / math.sqrt(Dh)
    est = (2 * _nbytes((S, H), x.dtype) + _nbytes((Sk, H), memory.dtype)
           + 4 * _nbytes((H, H), _ACT_DTYPE) + 3 * _nbytes((S, Sk), jnp.float32))
    return pl.pallas_call(
        functools.partial(_cross_attn_block_kernel, nhead=nhead, scale=scale, eps=_LN_EPS),
        out_shape=jax.ShapeDtypeStruct((N, S, H), x.dtype),
        grid=(N,),
        in_specs=[pl.BlockSpec((None, S, H), lambda b: (b, 0, 0)),
                  pl.BlockSpec((None, Sk, H), lambda b: (b, 0, 0))] + _mha_specs(nhead, H, Dh),
        out_specs=pl.BlockSpec((None, S, H), lambda b: (b, 0, 0)),
        compiler_params=_cparams(("parallel",), est),
    )(x, memory, mha["wq"], mha["wk"], mha["wv"], mha["bq"], mha["bk"], mha["bv"],
      mha["wo"], mha["bo"], gamma.reshape(1, H), beta.reshape(1, H))


# ---------------------------------------------------------------------------
# Fused feed-forward (linear1 + ReLU + linear2 + residual + LN), Dff-tiled
# ---------------------------------------------------------------------------

def _ffn_kernel(x_ref, w1_ref, b1_ref, w2_ref, b2_ref, g_ref, bb_ref,
                o_ref, acc_ref, *, eps):
    j = pl.program_id(1)          # Dff block (reduction axis for the 2nd matmul)
    x = x_ref[...]                # (tm, H)

    @pl.when(j == 0)
    def _():
        # accumulator starts as bias2 + residual (saves an epilogue VALU add)
        acc_ref[...] = b2_ref[...] + x.astype(jnp.float32)

    h = jnp.dot(x, w1_ref[...], preferred_element_type=jnp.float32) + b1_ref[...]
    h = jnp.maximum(h, 0.0)
    acc_ref[...] += jnp.dot(h.astype(w2_ref.dtype), w2_ref[...],
                            preferred_element_type=jnp.float32)

    @pl.when(j == pl.num_programs(1) - 1)
    def _():
        y = acc_ref[...]
        mean = jnp.mean(y, axis=-1, keepdims=True)
        c = y - mean
        var = jnp.mean(c * c, axis=-1, keepdims=True)
        inv = jax.lax.rsqrt(var + eps)
        o_ref[...] = (c * inv * g_ref[...] + bb_ref[...]).astype(o_ref.dtype)


def ffn(x, w1, b1, w2, b2, gamma, beta):
    M, H = x.shape
    Dff = w1.shape[1]
    tm = _tile(M, 512, 8)
    tdff = _tile(Dff, 1024, 128)
    est = (_nbytes((tm, H), x.dtype) + _nbytes((H, tdff), w1.dtype)
           + _nbytes((tdff, H), w2.dtype) + _nbytes((tm, tdff), jnp.float32)
           + _nbytes((tm, H), jnp.float32))
    return pl.pallas_call(
        functools.partial(_ffn_kernel, eps=_LN_EPS),
        out_shape=jax.ShapeDtypeStruct((M, H), x.dtype),
        grid=(M // tm, Dff // tdff),
        in_specs=[pl.BlockSpec((tm, H), lambda i, j: (i, 0)),
                  pl.BlockSpec((H, tdff), lambda i, j: (0, j)),
                  pl.BlockSpec((1, tdff), lambda i, j: (0, j)),
                  pl.BlockSpec((tdff, H), lambda i, j: (j, 0)),
                  pl.BlockSpec((1, H), lambda i, j: (0, 0)),
                  pl.BlockSpec((1, H), lambda i, j: (0, 0)),
                  pl.BlockSpec((1, H), lambda i, j: (0, 0))],
        out_specs=pl.BlockSpec((tm, H), lambda i, j: (i, 0)),
        scratch_shapes=[pltpu.VMEM((tm, H), jnp.float32)],
        compiler_params=_cparams(("parallel", "arbitrary"), est),
    )(x, w1, b1.reshape(1, Dff), w2, b2.reshape(1, H),
      gamma.reshape(1, H), beta.reshape(1, H))


# ---------------------------------------------------------------------------
# Final projection fused with log_softmax (K-reduction, bias-initialized acc)
# ---------------------------------------------------------------------------

def _linear_logsoftmax_kernel(x_ref, w_ref, b_ref, o_ref, acc_ref):
    k = pl.program_id(1)

    @pl.when(k == 0)
    def _():
        acc_ref[...] = jnp.broadcast_to(b_ref[...], acc_ref.shape)

    acc_ref[...] += jnp.dot(x_ref[...], w_ref[...],
                            preferred_element_type=jnp.float32)

    @pl.when(k == pl.num_programs(1) - 1)
    def _():
        y = acc_ref[...]
        m = jnp.max(y, axis=-1, keepdims=True)
        lse = jnp.log(jnp.sum(jnp.exp(y - m), axis=-1, keepdims=True)) + m
        o_ref[...] = (y - lse).astype(o_ref.dtype)


def linear_log_softmax(x, w, b):
    # TODO(synk): for large vocab (>=16k) tile the vocab axis with an online
    #             running-max/logsumexp; the whole-vocab accumulator used here is
    #             only VMEM-safe for small output sizes.
    # TODO(synk): on v5e, pipeline_mode=pl.Buffered(3) on the weight stream would
    #             hide the exposed weight DMA between K steps.
    M, K = x.shape
    Out = w.shape[1]
    tm, tk = _tile(M, 512, 8), _tile(K, 1024, 128)
    est = (_nbytes((tm, tk), x.dtype) + _nbytes((tk, Out), w.dtype)
           + 2 * _nbytes((tm, Out), jnp.float32))
    return pl.pallas_call(
        _linear_logsoftmax_kernel,
        out_shape=jax.ShapeDtypeStruct((M, Out), jnp.float32),
        grid=(M // tm, K // tk),
        in_specs=[pl.BlockSpec((tm, tk), lambda i, k: (i, k)),
                  pl.BlockSpec((tk, Out), lambda i, k: (k, 0)),
                  pl.BlockSpec((1, Out), lambda i, k: (0, 0))],
        out_specs=pl.BlockSpec((tm, Out), lambda i, k: (i, 0)),
        scratch_shapes=[pltpu.VMEM((tm, Out), jnp.float32)],
        compiler_params=_cparams(("parallel", "arbitrary"), est),
    )(x, w, b.reshape(1, Out))


# ---------------------------------------------------------------------------
# Stand-alone LayerNorm (encoder / decoder final norms)
# ---------------------------------------------------------------------------

def _ln_kernel(x_ref, g_ref, b_ref, o_ref, *, eps):
    x = x_ref[...].astype(jnp.float32)
    mean = jnp.mean(x, axis=-1, keepdims=True)
    c = x - mean
    var = jnp.mean(c * c, axis=-1, keepdims=True)
    inv = jax.lax.rsqrt(var + eps)
    o_ref[...] = (c * inv * g_ref[...] + b_ref[...]).astype(o_ref.dtype)


def layer_norm(x, gamma, beta):
    shp = x.shape
    H = shp[-1]
    x2 = x.reshape(-1, H)
    M = x2.shape[0]
    tm = _tile(M, 512, 8)
    est = 2 * _nbytes((tm, H), x.dtype) + _nbytes((tm, H), jnp.float32)
    out = pl.pallas_call(
        functools.partial(_ln_kernel, eps=_LN_EPS),
        out_shape=jax.ShapeDtypeStruct((M, H), x.dtype),
        grid=(M // tm,),
        in_specs=[pl.BlockSpec((tm, H), lambda i: (i, 0)),
                  pl.BlockSpec((1, H), lambda i: (0, 0)),
                  pl.BlockSpec((1, H), lambda i: (0, 0))],
        out_specs=pl.BlockSpec((tm, H), lambda i: (i, 0)),
        compiler_params=_cparams(("parallel",), est),
    )(x2, gamma.reshape(1, H), beta.reshape(1, H))
    return out.reshape(shp)


# ---------------------------------------------------------------------------
# Transformer building blocks (post-LN, relu — torch.nn.Transformer defaults)
# Activations stay batch-first (N, S, H); math identical to seq-first.
# ---------------------------------------------------------------------------

def encoder_layer(x, p, nhead):
    N, S, H = x.shape
    x = self_attn_block(x, p["self_mha"], p["norm1_weight"], p["norm1_bias"], nhead)
    x2 = ffn(x.reshape(N * S, H), p["linear1_w"], p["linear1_b"],
             p["linear2_w"], p["linear2_b"], p["norm2_weight"], p["norm2_bias"])
    return x2.reshape(N, S, H)


def decoder_layer(x, memory, p, nhead):
    # TODO(synk): no causal tgt mask — the reference calls nn.Transformer without masks.
    N, S, H = x.shape
    x = self_attn_block(x, p["self_mha"], p["norm1_weight"], p["norm1_bias"], nhead)
    x = cross_attn_block(x, memory, p["cross_mha"], p["norm2_weight"],
                         p["norm2_bias"], nhead)
    x2 = ffn(x.reshape(N * S, H), p["linear1_w"], p["linear1_b"],
             p["linear2_w"], p["linear2_b"], p["norm3_weight"], p["norm3_bias"])
    return x2.reshape(N, S, H)


def trfm_seq2seq_forward(src, params, nhead=4):
    # src: (S, N) int32 token ids (seq-first, like nn.Transformer)
    S, N = src.shape
    H = params["embed"].shape[1]

    # Embedding gather straight into batch-first layout (no later transposes).
    x = params["embed"][src.T]                                 # (N, S, H)

    # PositionalEncoding in the reference adds pe[:, :x.size(1)], i.e. indexed by
    # the *batch* dimension of the seq-first tensor and broadcast over seq.
    # Reproduced faithfully: token (s, n) gets pe[n].
    # TODO(synk): this mirrors what is almost certainly a bug in the reference module.
    x = (x.astype(jnp.float32) + params["pe"][:N][:, None, :]).astype(_ACT_DTYPE)

    memory = x
    for lp in params["encoder_layers"]:
        memory = encoder_layer(memory, lp, nhead)
    memory = layer_norm(memory, params["encoder_norm_weight"],
                        params["encoder_norm_bias"])

    out = x
    for lp in params["decoder_layers"]:
        out = decoder_layer(out, memory, lp, nhead)
    out = layer_norm(out, params["decoder_norm_weight"],
                     params["decoder_norm_bias"])

    logp = linear_log_softmax(out.reshape(N * S, H),
                              params["out_w"], params["out_b"])
    # TODO(synk): the kernel could write (S, N, V) directly via the out index_map
    #             to skip this XLA transpose of the largest f32 activation.
    logp = logp.reshape(N, S, -1)
    return jnp.transpose(logp, (1, 0, 2))                      # (S, N, out_size)


# ---------------------------------------------------------------------------
# Deterministic parameter initialization (shapes from the module __init__);
# attention weights stored head-major, everything pre-transposed (in, out), bf16;
# biases / LN parameters in f32.
# ---------------------------------------------------------------------------

class _KeyIter:
    def __init__(self, key):
        self.key = key

    def __call__(self):
        self.key, sub = jax.random.split(self.key)
        return sub


def _init_w(kit, in_dim, out_dim):
    w = jax.random.normal(kit(), (in_dim, out_dim), jnp.float32) / math.sqrt(in_dim)
    return w.astype(_ACT_DTYPE)


def _init_mha(kit, H, nhead):
    Dh = H // nhead

    def head_major(w):              # (H, H) -> (nhead, H, Dh)
        return jnp.transpose(w.reshape(H, nhead, Dh), (1, 0, 2))

    return {
        "wq": head_major(_init_w(kit, H, H)),
        "wk": head_major(_init_w(kit, H, H)),
        "wv": head_major(_init_w(kit, H, H)),
        "bq": jnp.zeros((nhead, 1, Dh), jnp.float32),
        "bk": jnp.zeros((nhead, 1, Dh), jnp.float32),
        "bv": jnp.zeros((nhead, 1, Dh), jnp.float32),
        "wo": _init_w(kit, H, H).reshape(nhead, Dh, H),   # rows h*Dh:(h+1)*Dh = head h
        "bo": jnp.zeros((1, H), jnp.float32),
    }


def _ln_params(H):
    return jnp.ones((H,), jnp.float32), jnp.zeros((H,), jnp.float32)


def _init_enc_layer(kit, H, Dff, nhead):
    n1w, n1b = _ln_params(H)
    n2w, n2b = _ln_params(H)
    return {
        "self_mha": _init_mha(kit, H, nhead),
        "linear1_w": _init_w(kit, H, Dff), "linear1_b": jnp.zeros((Dff,), jnp.float32),
        "linear2_w": _init_w(kit, Dff, H), "linear2_b": jnp.zeros((H,), jnp.float32),
        "norm1_weight": n1w, "norm1_bias": n1b,
        "norm2_weight": n2w, "norm2_bias": n2b,
    }


def _init_dec_layer(kit, H, Dff, nhead):
    n1w, n1b = _ln_params(H)
    n2w, n2b = _ln_params(H)
    n3w, n3b = _ln_params(H)
    return {
        "self_mha": _init_mha(kit, H, nhead),
        "cross_mha": _init_mha(kit, H, nhead),
        "linear1_w": _init_w(kit, H, Dff), "linear1_b": jnp.zeros((Dff,), jnp.float32),
        "linear2_w": _init_w(kit, Dff, H), "linear2_b": jnp.zeros((H,), jnp.float32),
        "norm1_weight": n1w, "norm1_bias": n1b,
        "norm2_weight": n2w, "norm2_bias": n2b,
        "norm3_weight": n3w, "norm3_bias": n3b,
    }


def make_positional_encoding(d_model, max_len=5000):
    position = jnp.arange(max_len, dtype=jnp.float32)[:, None]
    div_term = jnp.exp(jnp.arange(0, d_model, 2, dtype=jnp.float32)
                       * (-math.log(10000.0) / d_model))
    ang = position * div_term
    pe = jnp.zeros((max_len, d_model), jnp.float32)
    pe = pe.at[:, 0::2].set(jnp.sin(ang))
    pe = pe.at[:, 1::2].set(jnp.cos(ang))
    return pe


def init_params(key, in_size, hidden_size, out_size, n_layers, nhead=4, max_len=5000):
    kit = _KeyIter(key)
    H = hidden_size
    Dff = hidden_size   # dim_feedforward = hidden_size in the module
    enc_nw, enc_nb = _ln_params(H)
    dec_nw, dec_nb = _ln_params(H)
    return {
        "embed": jax.random.normal(kit(), (in_size, H), jnp.float32).astype(_ACT_DTYPE),
        "pe": make_positional_encoding(H, max_len),
        "encoder_layers": [_init_enc_layer(kit, H, Dff, nhead) for _ in range(n_layers)],
        "decoder_layers": [_init_dec_layer(kit, H, Dff, nhead) for _ in range(n_layers)],
        "encoder_norm_weight": enc_nw, "encoder_norm_bias": enc_nb,
        "decoder_norm_weight": dec_nw, "decoder_norm_bias": dec_nb,
        "out_w": _init_w(kit, H, out_size), "out_b": jnp.zeros((out_size,), jnp.float32),
    }


# ---------------------------------------------------------------------------

if __name__ == "__main__":
    S, N = 8, 2                        # (seq_len, batch) — seq-first like nn.Transformer
    in_size, hidden, out_size, n_layers, nhead = 20, 32, 20, 2, 4

    key = jax.random.PRNGKey(0)
    k_params, k_data = jax.random.split(key)
    params = init_params(k_params, in_size, hidden, out_size, n_layers, nhead=nhead)
    src = jax.random.randint(k_data, (S, N), 0, in_size, dtype=jnp.int32)

    fwd = jax.jit(functools.partial(trfm_seq2seq_forward, nhead=nhead))
    out = fwd(src, params)
    out = jax.block_until_ready(out)

    assert out.shape == (S, N, out_size), out.shape
    # log_softmax rows must exponentiate-sum to 1 (computed in f32 in-kernel)
    assert jnp.allclose(jnp.exp(out).sum(-1), 1.0, atol=1e-4)
    print("KERNEL_OK")
</pallas_src>

<mosaic_0001>
module attributes {stable_mosaic.version = 11 : i64} {
  func.func @_ln_kernel(%arg0: i32, %arg1: memref<16x32xbf16, #tpu.memory_space<vmem>>, %arg2: memref<1x32xf32, #tpu.memory_space<vmem>>, %arg3: memref<1x32xf32, #tpu.memory_space<vmem>>, %arg4: memref<16x32xbf16, #tpu.memory_space<vmem>>) attributes {dimension_semantics = [#tpu.dimension_semantics<parallel>], iteration_bounds = array<i64: 1>, scalar_prefetch = 0 : i64, scratch_operands = 0 : i64, tpu.core_type = #tpu.core_type<tc>, window_params = [{transform_indices = @transform_0, window_bounds = array<i64: 16, 32>}, {pipeline_mode = #tpu.pipeline_mode<synchronous>, transform_indices = @transform_1, window_bounds = array<i64: 1, 32>}, {pipeline_mode = #tpu.pipeline_mode<synchronous>, transform_indices = @transform_2, window_bounds = array<i64: 1, 32>}, {transform_indices = @transform_3, window_bounds = array<i64: 16, 32>}]} {
    %c0 = arith.constant 0 : index
    %c0_0 = arith.constant 0 : index
    %0 = vector.load %arg1[%c0, %c0_0] : memref<16x32xbf16, #tpu.memory_space<vmem>>, vector<16x32xbf16>
    %1 = arith.extf %0 : vector<16x32xbf16> to vector<16x32xf32>
    %cst = arith.constant dense<0.000000e+00> : vector<16xf32>
    %2 = vector.multi_reduction <add>, %1, %cst [1] : vector<16x32xf32> to vector<16xf32>
    %3 = vector.shape_cast %2 : vector<16xf32> to vector<16x1xf32>
    %cst_1 = arith.constant 3.200000e+01 : f32
    %4 = vector.broadcast %cst_1 : f32 to vector<16x1xf32>
    %5 = arith.divf %3, %4 : vector<16x1xf32>
    %6 = vector.broadcast %5 : vector<16x1xf32> to vector<16x32xf32>
    %7 = arith.subf %1, %6 : vector<16x32xf32>
    %8 = arith.mulf %7, %7 : vector<16x32xf32>
    %cst_2 = arith.constant dense<0.000000e+00> : vector<16xf32>
    %9 = vector.multi_reduction <add>, %8, %cst_2 [1] : vector<16x32xf32> to vector<16xf32>
    %10 = vector.shape_cast %9 : vector<16xf32> to vector<16x1xf32>
    %cst_3 = arith.constant 3.200000e+01 : f32
    %11 = vector.broadcast %cst_3 : f32 to vector<16x1xf32>
    %12 = arith.divf %10, %11 : vector<16x1xf32>
    %cst_4 = arith.constant 9.99999974E-6 : f32
    %13 = vector.broadcast %cst_4 : f32 to vector<16x1xf32>
    %14 = arith.addf %12, %13 : vector<16x1xf32>
    %15 = math.rsqrt %14 : vector<16x1xf32>
    %16 = vector.broadcast %15 : vector<16x1xf32> to vector<16x32xf32>
    %17 = arith.mulf %7, %16 : vector<16x32xf32>
    %c0_5 = arith.constant 0 : index
    %c0_6 = arith.constant 0 : index
    %18 = vector.load %arg2[%c0_5, %c0_6] : memref<1x32xf32, #tpu.memory_space<vmem>>, vector<1x32xf32>
    %19 = vector.broadcast %18 : vector<1x32xf32> to vector<16x32xf32>
    %20 = arith.mulf %17, %19 : vector<16x32xf32>
    %c0_7 = arith.constant 0 : index
    %c0_8 = arith.constant 0 : index
    %21 = vector.load %arg3[%c0_7, %c0_8] : memref<1x32xf32, #tpu.memory_space<vmem>>, vector<1x32xf32>
    %22 = vector.broadcast %21 : vector<1x32xf32> to vector<16x32xf32>
    %23 = arith.addf %20, %22 : vector<16x32xf32>
    %24 = arith.truncf %23 : vector<16x32xf32> to vector<16x32xbf16>
    %c0_9 = arith.constant 0 : index
    %c0_10 = arith.constant 0 : index
    %25 = vector.load %arg4[%c0_9, %c0_10] : memref<16x32xbf16, #tpu.memory_space<vmem>>, vector<16x32xbf16>
    tpu.vector_store %arg4[%c0_9, %c0_10], %24 {strides = array<i32>} : memref<16x32xbf16, #tpu.memory_space<vmem>>, vector<16x32xbf16>,
    return
  }
  func.func @transform_0(%arg0: i32) -> (i32, i32) {
    %c0_i32 = arith.constant 0 : i32
    %c0_i32_0 = arith.constant 0 : i32
    return %arg0, %c0_i32 : i32, i32
  }
  func.func @transform_1(%arg0: i32) -> (i32, i32) {
    %c0_i32 = arith.constant 0 : i32
    %c0_i32_0 = arith.constant 0 : i32
    %c0_i32_1 = arith.constant 0 : i32
    return %c0_i32, %c0_i32_0 : i32, i32
  }
  func.func @transform_2(%arg0: i32) -> (i32, i32) {
    %c0_i32 = arith.constant 0 : i32
    %c0_i32_0 = arith.constant 0 : i32
    %c0_i32_1 = arith.constant 0 : i32
    return %c0_i32, %c0_i32_0 : i32, i32
  }
  func.func @transform_3(%arg0: i32) -> (i32, i32) {
    %c0_i32 = arith.constant 0 : i32
    %c0_i32_0 = arith.constant 0 : i32
    return %arg0, %c0_i32 : i32, i32
  }
}

module attributes {stable_mosaic.version = 11 : i64} {
  func.func @_ffn_kernel(%arg0: i32, %arg1: i32, %arg2: memref<16x32xbf16, #tpu.memory_space<vmem>>, %arg3: memref<32x32xbf16, #tpu.memory_space<vmem>>, %arg4: memref<1x32xf32, #tpu.memory_space<vmem>>, %arg5: memref<32x32xbf16, #tpu.memory_space<vmem>>, %arg6: memref<1x32xf32, #tpu.memory_space<vmem>>, %arg7: memref<1x32xf32, #tpu.memory_space<vmem>>, %arg8: memref<1x32xf32, #tpu.memory_space<vmem>>, %arg9: memref<16x32xbf16, #tpu.memory_space<vmem>>, %arg10: memref<16x32xf32, #tpu.memory_space<vmem>>) attributes {dimension_semantics = [#tpu.dimension_semantics<parallel>, #tpu.dimension_semantics<arbitrary>], iteration_bounds = array<i64: 1, 1>, scalar_prefetch = 0 : i64, scratch_operands = 1 : i64, tpu.core_type = #tpu.core_type<tc>, window_params = [{transform_indices = @transform_0, window_bounds = array<i64: 16, 32>}, {transform_indices = @transform_1, window_bounds = array<i64: 32, 32>}, {transform_indices = @transform_2, window_bounds = array<i64: 1, 32>}, {transform_indices = @transform_3, window_bounds = array<i64: 32, 32>}, {pipeline_mode = #tpu.pipeline_mode<synchronous>, transform_indices = @transform_4, window_bounds = array<i64: 1, 32>}, {pipeline_mode = #tpu.pipeline_mode<synchronous>, transform_indices = @transform_5, window_bounds = array<i64: 1, 32>}, {pipeline_mode = #tpu.pipeline_mode<synchronous>, transform_indices = @transform_6, window_bounds = array<i64: 1, 32>}, {transform_indices = @transform_7, window_bounds = array<i64: 16, 32>}]} {
    %c0 = arith.constant 0 : index
    %c0_0 = arith.constant 0 : index
    %0 = vector.load %arg2[%c0, %c0_0] : memref<16x32xbf16, #tpu.memory_space<vmem>>, vector<16x32xbf16>
    %c0_i32 = arith.constant 0 : i32
    %1 = arith.cmpi eq, %arg1, %c0_i32 : i32
    %2 = arith.extui %1 : i1 to i32
    %c0_i32_1 = arith.constant 0 : i32
    %3 = arith.cmpi ne, %2, %c0_i32_1 : i32
    scf.if %3 {
      %c0_16 = arith.constant 0 : index
      %c0_17 = arith.constant 0 : index
      %20 = vector.load %arg6[%c0_16, %c0_17] : memref<1x32xf32, #tpu.memory_space<vmem>>, vector<1x32xf32>
      %21 = arith.extf %0 : vector<16x32xbf16> to vector<16x32xf32>
      %22 = vector.broadcast %20 : vector<1x32xf32> to vector<16x32xf32>
      %23 = arith.addf %22, %21 : vector<16x32xf32>
      %c0_18 = arith.constant 0 : index
      %c0_19 = arith.constant 0 : index
      %24 = vector.load %arg10[%c0_18, %c0_19] : memref<16x32xf32, #tpu.memory_space<vmem>>, vector<16x32xf32>
      tpu.vector_store %arg10[%c0_18, %c0_19], %23 {strides = array<i32>} : memref<16x32xf32, #tpu.memory_space<vmem>>, vector<16x32xf32>,
    } else {
    }
    %c0_2 = arith.constant 0 : index
    %c0_3 = arith.constant 0 : index
    %4 = vector.load %arg3[%c0_2, %c0_3] : memref<32x32xbf16, #tpu.memory_space<vmem>>, vector<32x32xbf16>
    %cst = arith.constant dense<0.000000e+00> : vector<16x32xf32>
    %5 = tpu.matmul %0, %4, %cst {dimension_numbers = #tpu.dot_dimension_numbers<[1], [0], [0], [1], [0, 0, 1, 1], [], []>} : vector<16x32xbf16>, vector<32x32xbf16>, vector<16x32xf32> -> vector<16x32xf32>
    %c0_4 = arith.constant 0 : index
    %c0_5 = arith.constant 0 : index
    %6 = vector.load %arg4[%c0_4, %c0_5] : memref<1x32xf32, #tpu.memory_space<vmem>>, vector<1x32xf32>
    %7 = vector.broadcast %6 : vector<1x32xf32> to vector<16x32xf32>
    %8 = arith.addf %5, %7 : vector<16x32xf32>
    %cst_6 = arith.constant 0.000000e+00 : f32
    %9 = vector.broadcast %cst_6 : f32 to vector<16x32xf32>
    %10 = arith.maximumf %8, %9 : vector<16x32xf32>
    %c0_7 = arith.constant 0 : index
    %c0_8 = arith.constant 0 : index
    %11 = vector.load %arg10[%c0_7, %c0_8] : memref<16x32xf32, #tpu.memory_space<vmem>>, vector<16x32xf32>
    %12 = arith.truncf %10 : vector<16x32xf32> to vector<16x32xbf16>
    %c0_9 = arith.constant 0 : index
    %c0_10 = arith.constant 0 : index
    %13 = vector.load %arg5[%c0_9, %c0_10] : memref<32x32xbf16, #tpu.memory_space<vmem>>, vector<32x32xbf16>
    %cst_11 = arith.constant dense<0.000000e+00> : vector<16x32xf32>
    %14 = tpu.matmul %12, %13, %cst_11 {dimension_numbers = #tpu.dot_dimension_numbers<[1], [0], [0], [1], [0, 0, 1, 1], [], []>} : vector<16x32xbf16>, vector<32x32xbf16>, vector<16x32xf32> -> vector<16x32xf32>
    %15 = arith.addf %11, %14 : vector<16x32xf32>
    %c0_12 = arith.constant 0 : index
    %c0_13 = arith.constant 0 : index
    %16 = vector.load %arg10[%c0_12, %c0_13] : memref<16x32xf32, #tpu.memory_space<vmem>>, vector<16x32xf32>
    tpu.vector_store %arg10[%c0_12, %c0_13], %15 {strides = array<i32>} : memref<16x32xf32, #tpu.memory_space<vmem>>, vector<16x32xf32>,
    %c0_i32_14 = arith.constant 0 : i32
    %17 = arith.cmpi eq, %arg1, %c0_i32_14 : i32
    %18 = arith.extui %17 : i1 to i32
    %c0_i32_15 = arith.constant 0 : i32
    %19 = arith.cmpi ne, %18, %c0_i32_15 : i32
    scf.if %19 {
      %c0_16 = arith.constant 0 : index
      %c0_17 = arith.constant 0 : index
      %20 = vector.load %arg10[%c0_16, %c0_17] : memref<16x32xf32, #tpu.memory_space<vmem>>, vector<16x32xf32>
      %cst_18 = arith.constant dense<0.000000e+00> : vector<16xf32>
      %21 = vector.multi_reduction <add>, %20, %cst_18 [1] : vector<16x32xf32> to vector<16xf32>
      %22 = vector.shape_cast %21 : vector<16xf32> to vector<16x1xf32>
      %cst_19 = arith.constant 3.200000e+01 : f32
      %23 = vector.broadcast %cst_19 : f32 to vector<16x1xf32>
      %24 = arith.divf %22, %23 : vector<16x1xf32>
      %25 = vector.broadcast %24 : vector<16x1xf32> to vector<16x32xf32>
      %26 = arith.subf %20, %25 : vector<16x32xf32>
      %27 = arith.mulf %26, %26 : vector<16x32xf32>
      %cst_20 = arith.constant dense<0.000000e+00> : vector<16xf32>
      %28 = vector.multi_reduction <add>, %27, %cst_20 [1] : vector<16x32xf32> to vector<16xf32>
      %29 = vector.shape_cast %28 : vector<16xf32> to vector<16x1xf32>
      %cst_21 = arith.constant 3.200000e+01 : f32
      %30 = vector.broadcast %cst_21 : f32 to vector<16x1xf32>
      %31 = arith.divf %29, %30 : vector<16x1xf32>
      %cst_22 = arith.constant 9.99999974E-6 : f32
      %32 = vector.broadcast %cst_22 : f32 to vector<16x1xf32>
      %33 = arith.addf %31, %32 : vector<16x1xf32>
      %34 = math.rsqrt %33 : vector<16x1xf32>
      %35 = vector.broadcast %34 : vector<16x1xf32> to vector<16x32xf32>
      %36 = arith.mulf %26, %35 : vector<16x32xf32>
      %c0_23 = arith.constant 0 : index
      %c0_24 = arith.constant 0 : index
      %37 = vector.load %arg7[%c0_23, %c0_24] : memref<1x32xf32, #tpu.memory_space<vmem>>, vector<1x32xf32>
      %38 = vector.broadcast %37 : vector<1x32xf32> to vector<16x32xf32>
      %39 = arith.mulf %36, %38 : vector<16x32xf32>
      %c0_25 = arith.constant 0 : index
      %c0_26 = arith.constant 0 : index
      %40 = vector.load %arg8[%c0_25, %c0_26] : memref<1x32xf32, #tpu.memory_space<vmem>>, vector<1x32xf32>
      %41 = vector.broadcast %40 : vector<1x32xf32> to vector<16x32xf32>
      %42 = arith.addf %39, %41 : vector<16x32xf32>
      %43 = arith.truncf %42 : vector<16x32xf32> to vector<16x32xbf16>
      %c0_27 = arith.constant 0 : index
      %c0_28 = arith.constant 0 : index
      %44 = vector.load %arg9[%c0_27, %c0_28] : memref<16x32xbf16, #tpu.memory_space<vmem>>, vector<16x32xbf16>
      tpu.vector_store %arg9[%c0_27, %c0_28], %43 {strides = array<i32>} : memref<16x32xbf16, #tpu.memory_space<vmem>>, vector<16x32xbf16>,
    } else {
    }
    return
  }
  func.func @transform_0(%arg0: i32, %arg1: i32) -> (i32, i32) {
    %c0_i32 = arith.constant 0 : i32
    %c0_i32_0 = arith.constant 0 : i32
    return %arg0, %c0_i32 : i32, i32
  }
  func.func @transform_1(%arg0: i32, %arg1: i32) -> (i32, i32) {
    %c0_i32 = arith.constant 0 : i32
    %c0_i32_0 = arith.constant 0 : i32
    return %c0_i32, %arg1 : i32, i32
  }
  func.func @transform_2(%arg0: i32, %arg1: i32) -> (i32, i32) {
    %c0_i32 = arith.constant 0 : i32
    %c0_i32_0 = arith.constant 0 : i32
    return %c0_i32, %arg1 : i32, i32
  }
  func.func @transform_3(%arg0: i32, %arg1: i32) -> (i32, i32) {
    %c0_i32 = arith.constant 0 : i32
    %c0_i32_0 = arith.constant 0 : i32
    return %arg1, %c0_i32 : i32, i32
  }
  func.func @transform_4(%arg0: i32, %arg1: i32) -> (i32, i32) {
    %c0_i32 = arith.constant 0 : i32
    %c0_i32_0 = arith.constant 0 : i32
    %c0_i32_1 = arith.constant 0 : i32
    return %c0_i32, %c0_i32_0 : i32, i32
  }
  func.func @transform_5(%arg0: i32, %arg1: i32) -> (i32, i32) {
    %c0_i32 = arith.constant 0 : i32
    %c0_i32_0 = arith.constant 0 : i32
    %c0_i32_1 = arith.constant 0 : i32
    return %c0_i32, %c0_i32_0 : i32, i32
  }
  func.func @transform_6(%arg0: i32, %arg1: i32) -> (i32, i32) {
    %c0_i32 = arith.constant 0 : i32
    %c0_i32_0 = arith.constant 0 : i32
    %c0_i32_1 = arith.constant 0 : i32
    return %c0_i32, %c0_i32_0 : i32, i32
  }
  func.func @transform_7(%arg0: i32, %arg1: i32) -> (i32, i32) {
    %c0_i32 = arith.constant 0 : i32
    %c0_i32_0 = arith.constant 0 : i32
    return %arg0, %c0_i32 : i32, i32
  }
}

module attributes {stable_mosaic.version = 11 : i64} {
  func.func @_self_attn_block_kernel(%arg0: i32, %arg1: memref<1x8x32xbf16, #tpu.memory_space<vmem>>, %arg2: memref<4x32x8xbf16, #tpu.memory_space<vmem>>, %arg3: memref<4x32x8xbf16, #tpu.memory_space<vmem>>, %arg4: memref<4x32x8xbf16, #tpu.memory_space<vmem>>, %arg5: memref<4x1x8xf32, #tpu.memory_space<vmem>>, %arg6: memref<4x1x8xf32, #tpu.memory_space<vmem>>, %arg7: memref<4x1x8xf32, #tpu.memory_space<vmem>>, %arg8: memref<4x8x32xbf16, #tpu.memory_space<vmem>>, %arg9: memref<1x32xf32, #tpu.memory_space<vmem>>, %arg10: memref<1x32xf32, #tpu.memory_space<vmem>>, %arg11: memref<1x32xf32, #tpu.memory_space<vmem>>, %arg12: memref<1x8x32xbf16, #tpu.memory_space<vmem>>) attributes {dimension_semantics = [#tpu.dimension_semantics<parallel>], iteration_bounds = array<i64: 2>, scalar_prefetch = 0 : i64, scratch_operands = 0 : i64, tpu.core_type = #tpu.core_type<tc>, window_params = [{transform_indices = @transform_0, window_bounds = array<i64: 1, 8, 32>}, {pipeline_mode = #tpu.pipeline_mode<synchronous>, transform_indices = @transform_1, window_bounds = array<i64: 4, 32, 8>}, {pipeline_mode = #tpu.pipeline_mode<synchronous>, transform_indices = @transform_2, window_bounds = array<i64: 4, 32, 8>}, {pipeline_mode = #tpu.pipeline_mode<synchronous>, transform_indices = @transform_3, window_bounds = array<i64: 4, 32, 8>}, {pipeline_mode = #tpu.pipeline_mode<synchronous>, transform_indices = @transform_4, window_bounds = array<i64: 4, 1, 8>}, {pipeline_mode = #tpu.pipeline_mode<synchronous>, transform_indices = @transform_5, window_bounds = array<i64: 4, 1, 8>}, {pipeline_mode = #tpu.pipeline_mode<synchronous>, transform_indices = @transform_6, window_bounds = array<i64: 4, 1, 8>}, {pipeline_mode = #tpu.pipeline_mode<synchronous>, transform_indices = @transform_7, window_bounds = array<i64: 4, 8, 32>}, {pipeline_mode = #tpu.pipeline_mode<synchronous>, transform_indices = @transform_8, window_bounds = array<i64: 1, 32>}, {pipeline_mode = #tpu.pipeline_mode<synchronous>, transform_indices = @transform_9, window_bounds = array<i64: 1, 32>}, {pipeline_mode = #tpu.pipeline_mode<synchronous>, transform_indices = @transform_10, window_bounds = array<i64: 1, 32>}, {transform_indices = @transform_11, window_bounds = array<i64: 1, 8, 32>}]} {
    %c0 = arith.constant 0 : index
    %c0_0 = arith.constant 0 : index
    %c0_1 = arith.constant 0 : index
    %0 = vector.load %arg1[%c0, %c0_0, %c0_1] : memref<1x8x32xbf16, #tpu.memory_space<vmem>>, vector<1x8x32xbf16>
    %1 = vector.shape_cast %0 : vector<1x8x32xbf16> to vector<8x32xbf16>
    %c0_2 = arith.constant 0 : index
    %c0_3 = arith.constant 0 : index
    %2 = vector.load %arg9[%c0_2, %c0_3] : memref<1x32xf32, #tpu.memory_space<vmem>>, vector<1x32xf32>
    %3 = arith.extf %1 : vector<8x32xbf16> to vector<8x32xf32>
    %4 = vector.broadcast %2 : vector<1x32xf32> to vector<8x32xf32>
    %5 = arith.addf %4, %3 : vector<8x32xf32>
    %c0_4 = arith.constant 0 : index
    %c0_5 = arith.constant 0 : index
    %c0_6 = arith.constant 0 : index
    %6 = vector.load %arg2[%c0_4, %c0_5, %c0_6] : memref<4x32x8xbf16, #tpu.memory_space<vmem>>, vector<1x32x8xbf16>
    %7 = vector.shape_cast %6 : vector<1x32x8xbf16> to vector<32x8xbf16>
    %cst = arith.constant dense<0.000000e+00> : vector<8x8xf32>
    %8 = tpu.matmul %1, %7, %cst {dimension_numbers = #tpu.dot_dimension_numbers<[1], [0], [0], [1], [0, 0, 1, 1], [], []>} : vector<8x32xbf16>, vector<32x8xbf16>, vector<8x8xf32> -> vector<8x8xf32>
    %c0_7 = arith.constant 0 : index
    %c0_8 = arith.constant 0 : index
    %c0_9 = arith.constant 0 : index
    %9 = vector.load %arg5[%c0_7, %c0_8, %c0_9] : memref<4x1x8xf32, #tpu.memory_space<vmem>>, vector<1x1x8xf32>
    %10 = vector.shape_cast %9 : vector<1x1x8xf32> to vector<1x8xf32>
    %11 = vector.broadcast %10 : vector<1x8xf32> to vector<8x8xf32>
    %12 = arith.addf %8, %11 : vector<8x8xf32>
    %c0_10 = arith.constant 0 : index
    %c0_11 = arith.constant 0 : index
    %c0_12 = arith.constant 0 : index
    %13 = vector.load %arg3[%c0_10, %c0_11, %c0_12] : memref<4x32x8xbf16, #tpu.memory_space<vmem>>, vector<1x32x8xbf16>
    %14 = vector.shape_cast %13 : vector<1x32x8xbf16> to vector<32x8xbf16>
    %cst_13 = arith.constant dense<0.000000e+00> : vector<8x8xf32>
    %15 = tpu.matmul %1, %14, %cst_13 {dimension_numbers = #tpu.dot_dimension_numbers<[1], [0], [0], [1], [0, 0, 1, 1], [], []>} : vector<8x32xbf16>, vector<32x8xbf16>, vector<8x8xf32> -> vector<8x8xf32>
    %c0_14 = arith.constant 0 : index
    %c0_15 = arith.constant 0 : index
    %c0_16 = arith.constant 0 : index
    %16 = vector.load %arg6[%c0_14, %c0_15, %c0_16] : memref<4x1x8xf32, #tpu.memory_space<vmem>>, vector<1x1x8xf32>
    %17 = vector.shape_cast %16 : vector<1x1x8xf32> to vector<1x8xf32>
    %18 = vector.broadcast %17 : vector<1x8xf32> to vector<8x8xf32>
    %19 = arith.addf %15, %18 : vector<8x8xf32>
    %c0_17 = arith.constant 0 : index
    %c0_18 = arith.constant 0 : index
    %c0_19 = arith.constant 0 : index
    %20 = vector.load %arg4[%c0_17, %c0_18, %c0_19] : memref<4x32x8xbf16, #tpu.memory_space<vmem>>, vector<1x32x8xbf16>
    %21 = vector.shape_cast %20 : vector<1x32x8xbf16> to vector<32x8xbf16>
    %cst_20 = arith.constant dense<0.000000e+00> : vector<8x8xf32>
    %22 = tpu.matmul %1, %21, %cst_20 {dimension_numbers = #tpu.dot_dimension_numbers<[1], [0], [0], [1], [0, 0, 1, 1], [], []>} : vector<8x32xbf16>, vector<32x8xbf16>, vector<8x8xf32> -> vector<8x8xf32>
    %c0_21 = arith.constant 0 : index
    %c0_22 = arith.constant 0 : index
    %c0_23 = arith.constant 0 : index
    %23 = vector.load %arg7[%c0_21, %c0_22, %c0_23] : memref<4x1x8xf32, #tpu.memory_space<vmem>>, vector<1x1x8xf32>
    %24 = vector.shape_cast %23 : vector<1x1x8xf32> to vector<1x8xf32>
    %25 = vector.broadcast %24 : vector<1x8xf32> to vector<8x8xf32>
    %26 = arith.addf %22, %25 : vector<8x8xf32>
    %27 = arith.truncf %12 : vector<8x8xf32> to vector<8x8xbf16>
    %28 = arith.truncf %19 : vector<8x8xf32> to vector<8x8xbf16>
    %cst_24 = arith.constant dense<0.000000e+00> : vector<8x8xf32>
    %29 = tpu.matmul %27, %28, %cst_24 {dimension_numbers = #tpu.dot_dimension_numbers<[1], [1], [0], [0], [0, 0, 1, 0], [], []>} : vector<8x8xbf16>, vector<8x8xbf16>, vector<8x8xf32> -> vector<8x8xf32>
    %cst_25 = arith.constant 0.353553385 : f32
    %30 = vector.broadcast %cst_25 : f32 to vector<8x8xf32>
    %31 = arith.mulf %29, %30 : vector<8x8xf32>
    %cst_26 = arith.constant dense<0xFF800000> : vector<8xf32>
    %32 = vector.multi_reduction <maximumf>, %31, %cst_26 [1] : vector<8x8xf32> to vector<8xf32>
    %33 = vector.shape_cast %32 : vector<8xf32> to vector<8x1xf32>
    %34 = vector.broadcast %33 : vector<8x1xf32> to vector<8x8xf32>
    %35 = arith.subf %31, %34 : vector<8x8xf32>
    %36 = math.exp %35 : vector<8x8xf32>
    %cst_27 = arith.constant dense<0.000000e+00> : vector<8xf32>
    %37 = vector.multi_reduction <add>, %36, %cst_27 [1] : vector<8x8xf32> to vector<8xf32>
    %38 = vector.shape_cast %37 : vector<8xf32> to vector<8x1xf32>
    %39 = tpu.reciprocal %38 {approx = true} : vector<8x1xf32> -> vector<8x1xf32>
    %40 = vector.broadcast %39 : vector<8x1xf32> to vector<8x8xf32>
    %41 = arith.mulf %36, %40 : vector<8x8xf32>
    %42 = arith.truncf %41 : vector<8x8xf32> to vector<8x8xbf16>
    %43 = arith.truncf %26 : vector<8x8xf32> to vector<8x8xbf16>
    %cst_28 = arith.constant dense<0.000000e+00> : vector<8x8xf32>
    %44 = tpu.matmul %42, %43, %cst_28 {dimension_numbers = #tpu.dot_dimension_numbers<[1], [0], [0], [1], [0, 0, 1, 1], [], []>} : vector<8x8xbf16>, vector<8x8xbf16>, vector<8x8xf32> -> vector<8x8xf32>
    %45 = arith.truncf %44 : vector<8x8xf32> to vector<8x8xbf16>
    %c0_29 = arith.constant 0 : index
    %c0_30 = arith.constant 0 : index
    %c0_31 = arith.constant 0 : index
    %46 = vector.load %arg8[%c0_29, %c0_30, %c0_31] : memref<4x8x32xbf16, #tpu.memory_space<vmem>>, vector<1x8x32xbf16>
    %47 = vector.shape_cast %46 : vector<1x8x32xbf16> to vector<8x32xbf16>
    %cst_32 = arith.constant dense<0.000000e+00> : vector<8x32xf32>
    %48 = tpu.matmul %45, %47, %cst_32 {dimension_numbers = #tpu.dot_dimension_numbers<[1], [0], [0], [1], [0, 0, 1, 1], [], []>} : vector<8x8xbf16>, vector<8x32xbf16>, vector<8x32xf32> -> vector<8x32xf32>
    %49 = arith.addf %5, %48 : vector<8x32xf32>
    %c1 = arith.constant 1 : index
    %c0_33 = arith.constant 0 : index
    %c0_34 = arith.constant 0 : index
    %50 = vector.load %arg2[%c1, %c0_33, %c0_34] : memref<4x32x8xbf16, #tpu.memory_space<vmem>>, vector<1x32x8xbf16>
    %51 = vector.shape_cast %50 : vector<1x32x8xbf16> to vector<32x8xbf16>
    %cst_35 = arith.constant dense<0.000000e+00> : vector<8x8xf32>
    %52 = tpu.matmul %1, %51, %cst_35 {dimension_numbers = #tpu.dot_dimension_numbers<[1], [0], [0], [1], [0, 0, 1, 1], [], []>} : vector<8x32xbf16>, vector<32x8xbf16>, vector<8x8xf32> -> vector<8x8xf32>
    %c1_36 = arith.constant 1 : index
    %c0_37 = arith.constant 0 : index
    %c0_38 = arith.constant 0 : index
    %53 = vector.load %arg5[%c1_36, %c0_37, %c0_38] : memref<4x1x8xf32, #tpu.memory_space<vmem>>, vector<1x1x8xf32>
    %54 = vector.shape_cast %53 : vector<1x1x8xf32> to vector<1x8xf32>
    %55 = vector.broadcast %54 : vector<1x8xf32> to vector<8x8xf32>
    %56 = arith.addf %52, %55 : vector<8x8xf32>
    %c1_39 = arith.constant 1 : index
    %c0_40 = arith.constant 0 : index
    %c0_41 = arith.constant 0 : index
    %57 = vector.load %arg3[%c1_39, %c0_40, %c0_41] : memref<4x32x8xbf16, #tpu.memory_space<vmem>>, vector<1x32x8xbf16>
    %58 = vector.shape_cast %57 : vector<1x32x8xbf16> to vector<32x8xbf16>
    %cst_42 = arith.constant dense<0.000000e+00> : vector<8x8xf32>
    %59 = tpu.matmul %1, %58, %cst_42 {dimension_numbers = #tpu.dot_dimension_numbers<[1], [0], [0], [1], [0, 0, 1, 1], [], []>} : vector<8x32xbf16>, vector<32x8xbf16>, vector<8x8xf32> -> vector<8x8xf32>
    %c1_43 = arith.constant 1 : index
    %c0_44 = arith.constant 0 : index
    %c0_45 = arith.constant 0 : index
    %60 = vector.load %arg6[%c1_43, %c0_44, %c0_45] : memref<4x1x8xf32, #tpu.memory_space<vmem>>, vector<1x1x8xf32>
    %61 = vector.shape_cast %60 : vector<1x1x8xf32> to vector<1x8xf32>
    %62 = vector.broadcast %61 : vector<1x8xf32> to vector<8x8xf32>
    %63 = arith.addf %59, %62 : vector<8x8xf32>
    %c1_46 = arith.constant 1 : index
    %c0_47 = arith.constant 0 : index
    %c0_48 = arith.constant 0 : index
    %64 = vector.load %arg4[%c1_46, %c0_47, %c0_48] : memref<4x32x8xbf16, #tpu.memory_space<vmem>>, vector<1x32x8xbf16>
    %65 = vector.shape_cast %64 : vector<1x32x8xbf16> to vector<32x8xbf16>
    %cst_49 = arith.constant dense<0.000000e+00> : vector<8x8xf32>
    %66 = tpu.matmul %1, %65, %cst_49 {dimension_numbers = #tpu.dot_dimension_numbers<[1], [0], [0], [1], [0, 0, 1, 1], [], []>} : vector<8x32xbf16>, vector<32x8xbf16>, vector<8x8xf32> -> vector<8x8xf32>
    %c1_50 = arith.constant 1 : index
    %c0_51 = arith.constant 0 : index
    %c0_52 = arith.constant 0 : index
    %67 = vector.load %arg7[%c1_50, %c0_51, %c0_52] : memref<4x1x8xf32, #tpu.memory_space<vmem>>, vector<1x1x8xf32>
    %68 = vector.shape_cast %67 : vector<1x1x8xf32> to vector<1x8xf32>
    %69 = vector.broadcast %68 : vector<1x8xf32> to vector<8x8xf32>
    %70 = arith.addf %66, %69 : vector<8x8xf32>
    %71 = arith.truncf %56 : vector<8x8xf32> to vector<8x8xbf16>
    %72 = arith.truncf %63 : vector<8x8xf32> to vector<8x8xbf16>
    %cst_53 = arith.constant dense<0.000000e+00> : vector<8x8xf32>
    %73 = tpu.matmul %71, %72, %cst_53 {dimension_numbers = #tpu.dot_dimension_numbers<[1], [1], [0], [0], [0, 0, 1, 0], [], []>} : vector<8x8xbf16>, vector<8x8xbf16>, vector<8x8xf32> -> vector<8x8xf32>
    %cst_54 = arith.constant 0.353553385 : f32
    %74 = vector.broadcast %cst_54 : f32 to vector<8x8xf32>
    %75 = arith.mulf %73, %74 : vector<8x8xf32>
    %cst_55 = arith.constant dense<0xFF800000> : vector<8xf32>
    %76 = vector.multi_reduction <maximumf>, %75, %cst_55 [1] : vector<8x8xf32> to vector<8xf32>
    %77 = vector.shape_cast %76 : vector<8xf32> to vector<8x1xf32>
    %78 = vector.broadcast %77 : vector<8x1xf32> to vector<8x8xf32>
    %79 = arith.subf %75, %78 : vector<8x8xf32>
    %80 = math.exp %79 : vector<8x8xf32>
    %cst_56 = arith.constant dense<0.000000e+00> : vector<8xf32>
    %81 = vector.multi_reduction <add>, %80, %cst_56 [1] : vector<8x8xf32> to vector<8xf32>
    %82 = vector.shape_cast %81 : vector<8xf32> to vector<8x1xf32>
    %83 = tpu.reciprocal %82 {approx = true} : vector<8x1xf32> -> vector<8x1xf32>
    %84 = vector.broadcast %83 : vector<8x1xf32> to vector<8x8xf32>
    %85 = arith.mulf %80, %84 : vector<8x8xf32>
    %86 = arith.truncf %85 : vector<8x8xf32> to vector<8x8xbf16>
    %87 = arith.truncf %70 : vector<8x8xf32> to vector<8x8xbf16>
    %cst_57 = arith.constant dense<0.000000e+00> : vector<8x8xf32>
    %88 = tpu.matmul %86, %87, %cst_57 {dimension_numbers = #tpu.dot_dimension_numbers<[1], [0], [0], [1], [0, 0, 1, 1], [], []>} : vector<8x8xbf16>, vector<8x8xbf16>, vector<8x8xf32> -> vector<8x8xf32>
    %89 = arith.truncf %88 : vector<8x8xf32> to vector<8x8xbf16>
    %c1_58 = arith.constant 1 : index
    %c0_59 = arith.constant 0 : index
    %c0_60 = arith.constant 0 : index
    %90 = vector.load %arg8[%c1_58, %c0_59, %c0_60] : memref<4x8x32xbf16, #tpu.memory_space<vmem>>, vector<1x8x32xbf16>
    %91 = vector.shape_cast %90 : vector<1x8x32xbf16> to vector<8x32xbf16>
    %cst_61 = arith.constant dense<0.000000e+00> : vector<8x32xf32>
    %92 = tpu.matmul %89, %91, %cst_61 {dimension_numbers = #tpu.dot_dimension_numbers<[1], [0], [0], [1], [0, 0, 1, 1], [], []>} : vector<8x8xbf16>, vector<8x32xbf16>, vector<8x32xf32> -> vector<8x32xf32>
    %93 = arith.addf %49, %92 : vector<8x32xf32>
    %c2 = arith.constant 2 : index
    %c0_62 = arith.constant 0 : index
    %c0_63 = arith.constant 0 : index
    %94 = vector.load %arg2[%c2, %c0_62, %c0_63] : memref<4x32x8xbf16, #tpu.memory_space<vmem>>, vector<1x32x8xbf16>
    %95 = vector.shape_cast %94 : vector<1x32x8xbf16> to vector<32x8xbf16>
    %cst_64 = arith.constant dense<0.000000e+00> : vector<8x8xf32>
    %96 = tpu.matmul %1, %95, %cst_64 {dimension_numbers = #tpu.dot_dimension_numbers<[1], [0], [0], [1], [0, 0, 1, 1], [], []>} : vector<8x32xbf16>, vector<32x8xbf16>, vector<8x8xf32> -> vector<8x8xf32>
    %c2_65 = arith.constant 2 : index
    %c0_66 = arith.constant 0 : index
    %c0_67 = arith.constant 0 : index
    %97 = vector.load %arg5[%c2_65, %c0_66, %c0_67] : memref<4x1x8xf32, #tpu.memory_space<vmem>>, vector<1x1x8xf32>
    %98 = vector.shape_cast %97 : vector<1x1x8xf32> to vector<1x8xf32>
    %99 = vector.broadcast %98 : vector<1x8xf32> to vector<8x8xf32>
    %100 = arith.addf %96, %99 : vector<8x8xf32>
    %c2_68 = arith.constant 2 : index
    %c0_69 = arith.constant 0 : index
    %c0_70 = arith.constant 0 : index
    %101 = vector.load %arg3[%c2_68, %c0_69, %c0_70] : memref<4x32x8xbf16, #tpu.memory_space<vmem>>, vector<1x32x8xbf16>
    %102 = vector.shape_cast %101 : vector<1x32x8xbf16> to vector<32x8xbf16>
    %cst_71 = arith.constant dense<0.000000e+00> : vector<8x8xf32>
    %103 = tpu.matmul %1, %102, %cst_71 {dimension_numbers = #tpu.dot_dimension_numbers<[1], [0], [0], [1], [0, 0, 1, 1], [], []>} : vector<8x32xbf16>, vector<32x8xbf16>, vector<8x8xf32> -> vector<8x8xf32>
    %c2_72 = arith.constant 2 : index
    %c0_73 = arith.constant 0 : index
    %c0_74 = arith.constant 0 : index
    %104 = vector.load %arg6[%c2_72, %c0_73, %c0_74] : memref<4x1x8xf32, #tpu.memory_space<vmem>>, vector<1x1x8xf32>
    %105 = vector.shape_cast %104 : vector<1x1x8xf32> to vector<1x8xf32>
    %106 = vector.broadcast %105 : vector<1x8xf32> to vector<8x8xf32>
    %107 = arith.addf %103, %106 : vector<8x8xf32>
    %c2_75 = arith.constant 2 : index
    %c0_76 = arith.constant 0 : index
    %c0_77 = arith.constant 0 : index
    %108 = vector.load %arg4[%c2_75, %c0_76, %c0_77] : memref<4x32x8xbf16, #tpu.memory_space<vmem>>, vector<1x32x8xbf16>
    %109 = vector.shape_cast %108 : vector<1x32x8xbf16> to vector<32x8xbf16>
    %cst_78 = arith.constant dense<0.000000e+00> : vector<8x8xf32>
    %110 = tpu.matmul %1, %109, %cst_78 {dimension_numbers = #tpu.dot_dimension_numbers<[1], [0], [0], [1], [0, 0, 1, 1], [], []>} : vector<8x32xbf16>, vector<32x8xbf16>, vector<8x8xf32> -> vector<8x8xf32>
    %c2_79 = arith.constant 2 : index
    %c0_80 = arith.constant 0 : index
    %c0_81 = arith.constant 0 : index
    %111 = vector.load %arg7[%c2_79, %c0_80, %c0_81] : memref<4x1x8xf32, #tpu.memory_space<vmem>>, vector<1x1x8xf32>
    %112 = vector.shape_cast %111 : vector<1x1x8xf32> to vector<1x8xf32>
    %113 = vector.broadcast %112 : vector<1x8xf32> to vector<8x8xf32>
    %114 = arith.addf %110, %113 : vector<8x8xf32>
    %115 = arith.truncf %100 : vector<8x8xf32> to vector<8x8xbf16>
    %116 = arith.truncf %107 : vector<8x8xf32> to vector<8x8xbf16>
    %cst_82 = arith.constant dense<0.000000e+00> : vector<8x8xf32>
    %117 = tpu.matmul %115, %116, %cst_82 {dimension_numbers = #tpu.dot_dimension_numbers<[1], [1], [0], [0], [0, 0, 1, 0], [], []>} : vector<8x8xbf16>, vector<8x8xbf16>, vector<8x8xf32> -> vector<8x8xf32>
    %cst_83 = arith.constant 0.353553385 : f32
    %118 = vector.broadcast %cst_83 : f32 to vector<8x8xf32>
    %119 = arith.mulf %117, %118 : vector<8x8xf32>
    %cst_84 = arith.constant dense<0xFF800000> : vector<8xf32>
    %120 = vector.multi_reduction <maximumf>, %119, %cst_84 [1] : vector<8x8xf32> to vector<8xf32>
    %121 = vector.shape_cast %120 : vector<8xf32> to vector<8x1xf32>
    %122 = vector.broadcast %121 : vector<8x1xf32> to vector<8x8xf32>
    %123 = arith.subf %119, %122 : vector<8x8xf32>
    %124 = math.exp %123 : vector<8x8xf32>
    %cst_85 = arith.constant dense<0.000000e+00> : vector<8xf32>
    %125 = vector.multi_reduction <add>, %124, %cst_85 [1] : vector<8x8xf32> to vector<8xf32>
    %126 = vector.shape_cast %125 : vector<8xf32> to vector<8x1xf32>
    %127 = tpu.reciprocal %126 {approx = true} : vector<8x1xf32> -> vector<8x1xf32>
    %128 = vector.broadcast %127 : vector<8x1xf32> to vector<8x8xf32>
    %129 = arith.mulf %124, %128 : vector<8x8xf32>
    %130 = arith.truncf %129 : vector<8x8xf32> to vector<8x8xbf16>
    %131 = arith.truncf %114 : vector<8x8xf32> to vector<8x8xbf16>
    %cst_86 = arith.constant dense<0.000000e+00> : vector<8x8xf32>
    %132 = tpu.matmul %130, %131, %cst_86 {dimension_numbers = #tpu.dot_dimension_numbers<[1], [0], [0], [1], [0, 0, 1, 1], [], []>} : vector<8x8xbf16>, vector<8x8xbf16>, vector<8x8xf32> -> vector<8x8xf32>
    %133 = arith.truncf %132 : vector<8x8xf32> to vector<8x8xbf16>
    %c2_87 = arith.constant 2 : index
    %c0_88 = arith.constant 0 : index
    %c0_89 = arith.constant 0 : index
    %134 = vector.load %arg8[%c2_87, %c0_88, %c0_89] : memref<4x8x32xbf16, #tpu.memory_space<vmem>>, vector<1x8x32xbf16>
    %135 = vector.shape_cast %134 : vector<1x8x32xbf16> to vector<8x32xbf16>
    %cst_90 = arith.constant dense<0.000000e+00> : vector<8x32xf32>
    %136 = tpu.matmul %133, %135, %cst_90 {dimension_numbers = #tpu.dot_dimension_numbers<[1], [0], [0], [1], [0, 0, 1, 1], [], []>} : vector<8x8xbf16>, vector<8x32xbf16>, vector<8x32xf32> -> vector<8x32xf32>
    %137 = arith.addf %93, %136 : vector<8x32xf32>
    %c3 = arith.constant 3 : index
    %c0_91 = arith.constant 0 : index
    %c0_92 = arith.constant 0 : index
    %138 = vector.load %arg2[%c3, %c0_91, %c0_92] : memref<4x32x8xbf16, #tpu.memory_space<vmem>>, vector<1x32x8xbf16>
    %139 = vector.shape_cast %138 : vector<1x32x8xbf16> to vector<32x8xbf16>
    %cst_93 = arith.constant dense<0.000000e+00> : vector<8x8xf32>
    %140 = tpu.matmul %1, %139, %cst_93 {dimension_numbers = #tpu.dot_dimension_numbers<[1], [0], [0], [1], [0, 0, 1, 1], [], []>} : vector<8x32xbf16>, vector<32x8xbf16>, vector<8x8xf32> -> vector<8x8xf32>
    %c3_94 = arith.constant 3 : index
    %c0_95 = arith.constant 0 : index
    %c0_96 = arith.constant 0 : index
    %141 = vector.load %arg5[%c3_94, %c0_95, %c0_96] : memref<4x1x8xf32, #tpu.memory_space<vmem>>, vector<1x1x8xf32>
    %142 = vector.shape_cast %141 : vector<1x1x8xf32> to vector<1x8xf32>
    %143 = vector.broadcast %142 : vector<1x8xf32> to vector<8x8xf32>
    %144 = arith.addf %140, %143 : vector<8x8xf32>
    %c3_97 = arith.constant 3 : index
    %c0_98 = arith.constant 0 : index
    %c0_99 = arith.constant 0 : index
    %145 = vector.load %arg3[%c3_97, %c0_98, %c0_99] : memref<4x32x8xbf16, #tpu.memory_space<vmem>>, vector<1x32x8xbf16>
    %146 = vector.shape_cast %145 : vector<1x32x8xbf16> to vector<32x8xbf16>
    %cst_100 = arith.constant dense<0.000000e+00> : vector<8x8xf32>
    %147 = tpu.matmul %1, %146, %cst_100 {dimension_numbers = #tpu.dot_dimension_numbers<[1], [0], [0], [1], [0, 0, 1, 1], [], []>} : vector<8x32xbf16>, vector<32x8xbf16>, vector<8x8xf32> -> vector<8x8xf32>
    %c3_101 = arith.constant 3 : index
    %c0_102 = arith.constant 0 : index
    %c0_103 = arith.constant 0 : index
    %148 = vector.load %arg6[%c3_101, %c0_102, %c0_103] : memref<4x1x8xf32, #tpu.memory_space<vmem>>, vector<1x1x8xf32>
    %149 = vector.shape_cast %148 : vector<1x1x8xf32> to vector<1x8xf32>
    %150 = vector.broadcast %149 : vector<1x8xf32> to vector<8x8xf32>
    %151 = arith.addf %147, %150 : vector<8x8xf32>
    %c3_104 = arith.constant 3 : index
    %c0_105 = arith.constant 0 : index
    %c0_106 = arith.constant 0 : index
    %152 = vector.load %arg4[%c3_104, %c0_105, %c0_106] : memref<4x32x8xbf16, #tpu.memory_space<vmem>>, vector<1x32x8xbf16>
    %153 = vector.shape_cast %152 : vector<1x32x8xbf16> to vector<32x8xbf16>
    %cst_107 = arith.constant dense<0.000000e+00> : vector<8x8xf32>
    %154 = tpu.matmul %1, %153, %cst_107 {dimension_numbers = #tpu.dot_dimension_numbers<[1], [0], [0], [1], [0, 0, 1, 1], [], []>} : vector<8x32xbf16>, vector<32x8xbf16>, vector<8x8xf32> -> vector<8x8xf32>
    %c3_108 = arith.constant 3 : index
    %c0_109 = arith.constant 0 : index
    %c0_110 = arith.constant 0 : index
    %155 = vector.load %arg7[%c3_108, %c0_109, %c0_110] : memref<4x1x8xf32, #tpu.memory_space<vmem>>, vector<1x1x8xf32>
    %156 = vector.shape_cast %155 : vector<1x1x8xf32> to vector<1x8xf32>
    %157 = vector.broadcast %156 : vector<1x8xf32> to vector<8x8xf32>
    %158 = arith.addf %154, %157 : vector<8x8xf32>
    %159 = arith.truncf %144 : vector<8x8xf32> to vector<8x8xbf16>
    %160 = arith.truncf %151 : vector<8x8xf32> to vector<8x8xbf16>
    %cst_111 = arith.constant dense<0.000000e+00> : vector<8x8xf32>
    %161 = tpu.matmul %159, %160, %cst_111 {dimension_numbers = #tpu.dot_dimension_numbers<[1], [1], [0], [0], [0, 0, 1, 0], [], []>} : vector<8x8xbf16>, vector<8x8xbf16>, vector<8x8xf32> -> vector<8x8xf32>
    %cst_112 = arith.constant 0.353553385 : f32
    %162 = vector.broadcast %cst_112 : f32 to vector<8x8xf32>
    %163 = arith.mulf %161, %162 : vector<8x8xf32>
    %cst_113 = arith.constant dense<0xFF800000> : vector<8xf32>
    %164 = vector.multi_reduction <maximumf>, %163, %cst_113 [1] : vector<8x8xf32> to vector<8xf32>
    %165 = vector.shape_cast %164 : vector<8xf32> to vector<8x1xf32>
    %166 = vector.broadcast %165 : vector<8x1xf32> to vector<8x8xf32>
    %167 = arith.subf %163, %166 : vector<8x8xf32>
    %168 = math.exp %167 : vector<8x8xf32>
    %cst_114 = arith.constant dense<0.000000e+00> : vector<8xf32>
    %169 = vector.multi_reduction <add>, %168, %cst_114 [1] : vector<8x8xf32> to vector<8xf32>
    %170 = vector.shape_cast %169 : vector<8xf32> to vector<8x1xf32>
    %171 = tpu.reciprocal %170 {approx = true} : vector<8x1xf32> -> vector<8x1xf32>
    %172 = vector.broadcast %171 : vector<8x1xf32> to vector<8x8xf32>
    %173 = arith.mulf %168, %172 : vector<8x8xf32>
    %174 = arith.truncf %173 : vector<8x8xf32> to vector<8x8xbf16>
    %175 = arith.truncf %158 : vector<8x8xf32> to vector<8x8xbf16>
    %cst_115 = arith.constant dense<0.000000e+00> : vector<8x8xf32>
    %176 = tpu.matmul %174, %175, %cst_115 {dimension_numbers = #tpu.dot_dimension_numbers<[1], [0], [0], [1], [0, 0, 1, 1], [], []>} : vector<8x8xbf16>, vector<8x8xbf16>, vector<8x8xf32> -> vector<8x8xf32>
    %177 = arith.truncf %176 : vector<8x8xf32> to vector<8x8xbf16>
    %c3_116 = arith.constant 3 : index
    %c0_117 = arith.constant 0 : index
    %c0_118 = arith.constant 0 : index
    %178 = vector.load %arg8[%c3_116, %c0_117, %c0_118] : memref<4x8x32xbf16, #tpu.memory_space<vmem>>, vector<1x8x32xbf16>
    %179 = vector.shape_cast %178 : vector<1x8x32xbf16> to vector<8x32xbf16>
    %cst_119 = arith.constant dense<0.000000e+00> : vector<8x32xf32>
    %180 = tpu.matmul %177, %179, %cst_119 {dimension_numbers = #tpu.dot_dimension_numbers<[1], [0], [0], [1], [0, 0, 1, 1], [], []>} : vector<8x8xbf16>, vector<8x32xbf16>, vector<8x32xf32> -> vector<8x32xf32>
    %181 = arith.addf %137, %180 : vector<8x32xf32>
    %cst_120 = arith.constant dense<0.000000e+00> : vector<8xf32>
    %182 = vector.multi_reduction <add>, %181, %cst_120 [1] : vector<8x32xf32> to vector<8xf32>
    %183 = vector.shape_cast %182 : vector<8xf32> to vector<8x1xf32>
    %cst_121 = arith.constant 3.200000e+01 : f32
    %184 = vector.broadcast %cst_121 : f32 to vector<8x1xf32>
    %185 = arith.divf %183, %184 : vector<8x1xf32>
    %186 = vector.broadcast %185 : vector<8x1xf32> to vector<8x32xf32>
    %187 = arith.subf %181, %186 : vector<8x32xf32>
    %188 = arith.mulf %187, %187 : vector<8x32xf32>
    %cst_122 = arith.constant dense<0.000000e+00> : vector<8xf32>
    %189 = vector.multi_reduction <add>, %188, %cst_122 [1] : vector<8x32xf32> to vector<8xf32>
    %190 = vector.shape_cast %189 : vector<8xf32> to vector<8x1xf32>
    %cst_123 = arith.constant 3.200000e+01 : f32
    %191 = vector.broadcast %cst_123 : f32 to vector<8x1xf32>
    %192 = arith.divf %190, %191 : vector<8x1xf32>
    %cst_124 = arith.constant 9.99999974E-6 : f32
    %193 = vector.broadcast %cst_124 : f32 to vector<8x1xf32>
    %194 = arith.addf %192, %193 : vector<8x1xf32>
    %195 = math.rsqrt %194 : vector<8x1xf32>
    %196 = vector.broadcast %195 : vector<8x1xf32> to vector<8x32xf32>
    %197 = arith.mulf %187, %196 : vector<8x32xf32>
    %c0_125 = arith.constant 0 : index
    %c0_126 = arith.constant 0 : index
    %198 = vector.load %arg10[%c0_125, %c0_126] : memref<1x32xf32, #tpu.memory_space<vmem>>, vector<1x32xf32>
    %199 = vector.broadcast %198 : vector<1x32xf32> to vector<8x32xf32>
    %200 = arith.mulf %197, %199 : vector<8x32xf32>
    %c0_127 = arith.constant 0 : index
    %c0_128 = arith.constant 0 : index
    %201 = vector.load %arg11[%c0_127, %c0_128] : memref<1x32xf32, #tpu.memory_space<vmem>>, vector<1x32xf32>
    %202 = vector.broadcast %201 : vector<1x32xf32> to vector<8x32xf32>
    %203 = arith.addf %200, %202 : vector<8x32xf32>
    %204 = arith.truncf %203 : vector<8x32xf32> to vector<8x32xbf16>
    %c0_129 = arith.constant 0 : index
    %c0_130 = arith.constant 0 : index
    %c0_131 = arith.constant 0 : index
    %205 = vector.load %arg12[%c0_129, %c0_130, %c0_131] : memref<1x8x32xbf16, #tpu.memory_space<vmem>>, vector<1x8x32xbf16>
    %206 = vector.shape_cast %205 : vector<1x8x32xbf16> to vector<8x32xbf16>
    %207 = vector.shape_cast %204 : vector<8x32xbf16> to vector<1x8x32xbf16>
    tpu.vector_store %arg12[%c0_129, %c0_130, %c0_131], %207 {strides = array<i32>} : memref<1x8x32xbf16, #tpu.memory_space<vmem>>, vector<1x8x32xbf16>,
    return
  }
  func.func @transform_0(%arg0: i32) -> (i32, i32, i32) {
    %c0_i32 = arith.constant 0 : i32
    %c0_i32_0 = arith.constant 0 : i32
    %c0_i32_1 = arith.constant 0 : i32
    return %arg0, %c0_i32, %c0_i32_0 : i32, i32, i32
  }
  func.func @transform_1(%arg0: i32) -> (i32, i32, i32) {
    %c0_i32 = arith.constant 0 : i32
    %c0_i32_0 = arith.constant 0 : i32
    %c0_i32_1 = arith.constant 0 : i32
    %c0_i32_2 = arith.constant 0 : i32
    return %c0_i32, %c0_i32_0, %c0_i32_1 : i32, i32, i32
  }
  func.func @transform_2(%arg0: i32) -> (i32, i32, i32) {
    %c0_i32 = arith.constant 0 : i32
    %c0_i32_0 = arith.constant 0 : i32
    %c0_i32_1 = arith.constant 0 : i32
    %c0_i32_2 = arith.constant 0 : i32
    return %c0_i32, %c0_i32_0, %c0_i32_1 : i32, i32, i32
  }
  func.func @transform_3(%arg0: i32) -> (i32, i32, i32) {
    %c0_i32 = arith.constant 0 : i32
    %c0_i32_0 = arith.constant 0 : i32
    %c0_i32_1 = arith.constant 0 : i32
    %c0_i32_2 = arith.constant 0 : i32
    return %c0_i32, %c0_i32_0, %c0_i32_1 : i32, i32, i32
  }
  func.func @transform_4(%arg0: i32) -> (i32, i32, i32) {
    %c0_i32 = arith.constant 0 : i32
    %c0_i32_0 = arith.constant 0 : i32
    %c0_i32_1 = arith.constant 0 : i32
    %c0_i32_2 = arith.constant 0 : i32
    return %c0_i32, %c0_i32_0, %c0_i32_1 : i32, i32, i32
  }
  func.func @transform_5(%arg0: i32) -> (i32, i32, i32) {
    %c0_i32 = arith.constant 0 : i32
    %c0_i32_0 = arith.constant 0 : i32
    %c0_i32_1 = arith.constant 0 : i32
    %c0_i32_2 = arith.constant 0 : i32
    return %c0_i32, %c0_i32_0, %c0_i32_1 : i32, i32, i32
  }
  func.func @transform_6(%arg0: i32) -> (i32, i32, i32) {
    %c0_i32 = arith.constant 0 : i32
    %c0_i32_0 = arith.constant 0 : i32
    %c0_i32_1 = arith.constant 0 : i32
    %c0_i32_2 = arith.constant 0 : i32
    return %c0_i32, %c0_i32_0, %c0_i32_1 : i32, i32, i32
  }
  func.func @transform_7(%arg0: i32) -> (i32, i32, i32) {
    %c0_i32 = arith.constant 0 : i32
    %c0_i32_0 = arith.constant 0 : i32
    %c0_i32_1 = arith.constant 0 : i32
    %c0_i32_2 = arith.constant 0 : i32
    return %c0_i32, %c0_i32_0, %c0_i32_1 : i32, i32, i32
  }
  func.func @transform_8(%arg0: i32) -> (i32, i32) {
    %c0_i32 = arith.constant 0 : i32
    %c0_i32_0 = arith.constant 0 : i32
    %c0_i32_1 = arith.constant 0 : i32
    return %c0_i32, %c0_i32_0 : i32, i32
  }
  func.func @transform_9(%arg0: i32) -> (i32, i32) {
    %c0_i32 = arith.constant 0 : i32
    %c0_i32_0 = arith.constant 0 : i32
    %c0_i32_1 = arith.constant 0 : i32
    return %c0_i32, %c0_i32_0 : i32, i32
  }
  func.func @transform_10(%arg0: i32) -> (i32, i32) {
    %c0_i32 = arith.constant 0 : i32
    %c0_i32_0 = arith.constant 0 : i32
    %c0_i32_1 = arith.constant 0 : i32
    return %c0_i32, %c0_i32_0 : i32, i32
  }
  func.func @transform_11(%arg0: i32) -> (i32, i32, i32) {
    %c0_i32 = arith.constant 0 : i32
    %c0_i32_0 = arith.constant 0 : i32
    %c0_i32_1 = arith.constant 0 : i32
    return %arg0, %c0_i32, %c0_i32_0 : i32, i32, i32
  }
}

module attributes {stable_mosaic.version = 11 : i64} {
  func.func @_cross_attn_block_kernel(%arg0: i32, %arg1: memref<1x8x32xbf16, #tpu.memory_space<vmem>>, %arg2: memref<1x8x32xbf16, #tpu.memory_space<vmem>>, %arg3: memref<4x32x8xbf16, #tpu.memory_space<vmem>>, %arg4: memref<4x32x8xbf16, #tpu.memory_space<vmem>>, %arg5: memref<4x32x8xbf16, #tpu.memory_space<vmem>>, %arg6: memref<4x1x8xf32, #tpu.memory_space<vmem>>, %arg7: memref<4x1x8xf32, #tpu.memory_space<vmem>>, %arg8: memref<4x1x8xf32, #tpu.memory_space<vmem>>, %arg9: memref<4x8x32xbf16, #tpu.memory_space<vmem>>, %arg10: memref<1x32xf32, #tpu.memory_space<vmem>>, %arg11: memref<1x32xf32, #tpu.memory_space<vmem>>, %arg12: memref<1x32xf32, #tpu.memory_space<vmem>>, %arg13: memref<1x8x32xbf16, #tpu.memory_space<vmem>>) attributes {dimension_semantics = [#tpu.dimension_semantics<parallel>], iteration_bounds = array<i64: 2>, scalar_prefetch = 0 : i64, scratch_operands = 0 : i64, tpu.core_type = #tpu.core_type<tc>, window_params = [{transform_indices = @transform_0, window_bounds = array<i64: 1, 8, 32>}, {transform_indices = @transform_1, window_bounds = array<i64: 1, 8, 32>}, {pipeline_mode = #tpu.pipeline_mode<synchronous>, transform_indices = @transform_2, window_bounds = array<i64: 4, 32, 8>}, {pipeline_mode = #tpu.pipeline_mode<synchronous>, transform_indices = @transform_3, window_bounds = array<i64: 4, 32, 8>}, {pipeline_mode = #tpu.pipeline_mode<synchronous>, transform_indices = @transform_4, window_bounds = array<i64: 4, 32, 8>}, {pipeline_mode = #tpu.pipeline_mode<synchronous>, transform_indices = @transform_5, window_bounds = array<i64: 4, 1, 8>}, {pipeline_mode = #tpu.pipeline_mode<synchronous>, transform_indices = @transform_6, window_bounds = array<i64: 4, 1, 8>}, {pipeline_mode = #tpu.pipeline_mode<synchronous>, transform_indices = @transform_7, window_bounds = array<i64: 4, 1, 8>}, {pipeline_mode = #tpu.pipeline_mode<synchronous>, transform_indices = @transform_8, window_bounds = array<i64: 4, 8, 32>}, {pipeline_mode = #tpu.pipeline_mode<synchronous>, transform_indices = @transform_9, window_bounds = array<i64: 1, 32>}, {pipeline_mode = #tpu.pipeline_mode<synchronous>, transform_indices = @transform_10, window_bounds = array<i64: 1, 32>}, {pipeline_mode = #tpu.pipeline_mode<synchronous>, transform_indices = @transform_11, window_bounds = array<i64: 1, 32>}, {transform_indices = @transform_12, window_bounds = array<i64: 1, 8, 32>}]} {
    %c0 = arith.constant 0 : index
    %c0_0 = arith.constant 0 : index
    %c0_1 = arith.constant 0 : index
    %0 = vector.load %arg1[%c0, %c0_0, %c0_1] : memref<1x8x32xbf16, #tpu.memory_space<vmem>>, vector<1x8x32xbf16>
    %1 = vector.shape_cast %0 : vector<1x8x32xbf16> to vector<8x32xbf16>
    %c0_2 = arith.constant 0 : index
    %c0_3 = arith.constant 0 : index
    %c0_4 = arith.constant 0 : index
    %2 = vector.load %arg2[%c0_2, %c0_3, %c0_4] : memref<1x8x32xbf16, #tpu.memory_space<vmem>>, vector<1x8x32xbf16>
    %3 = vector.shape_cast %2 : vector<1x8x32xbf16> to vector<8x32xbf16>
    %c0_5 = arith.constant 0 : index
    %c0_6 = arith.constant 0 : index
    %4 = vector.load %arg10[%c0_5, %c0_6] : memref<1x32xf32, #tpu.memory_space<vmem>>, vector<1x32xf32>
    %5 = arith.extf %1 : vector<8x32xbf16> to vector<8x32xf32>
    %6 = vector.broadcast %4 : vector<1x32xf32> to vector<8x32xf32>
    %7 = arith.addf %6, %5 : vector<8x32xf32>
    %c0_7 = arith.constant 0 : index
    %c0_8 = arith.constant 0 : index
    %c0_9 = arith.constant 0 : index
    %8 = vector.load %arg3[%c0_7, %c0_8, %c0_9] : memref<4x32x8xbf16, #tpu.memory_space<vmem>>, vector<1x32x8xbf16>
    %9 = vector.shape_cast %8 : vector<1x32x8xbf16> to vector<32x8xbf16>
    %cst = arith.constant dense<0.000000e+00> : vector<8x8xf32>
    %10 = tpu.matmul %1, %9, %cst {dimension_numbers = #tpu.dot_dimension_numbers<[1], [0], [0], [1], [0, 0, 1, 1], [], []>} : vector<8x32xbf16>, vector<32x8xbf16>, vector<8x8xf32> -> vector<8x8xf32>
    %c0_10 = arith.constant 0 : index
    %c0_11 = arith.constant 0 : index
    %c0_12 = arith.constant 0 : index
    %11 = vector.load %arg6[%c0_10, %c0_11, %c0_12] : memref<4x1x8xf32, #tpu.memory_space<vmem>>, vector<1x1x8xf32>
    %12 = vector.shape_cast %11 : vector<1x1x8xf32> to vector<1x8xf32>
    %13 = vector.broadcast %12 : vector<1x8xf32> to vector<8x8xf32>
    %14 = arith.addf %10, %13 : vector<8x8xf32>
    %c0_13 = arith.constant 0 : index
    %c0_14 = arith.constant 0 : index
    %c0_15 = arith.constant 0 : index
    %15 = vector.load %arg4[%c0_13, %c0_14, %c0_15] : memref<4x32x8xbf16, #tpu.memory_space<vmem>>, vector<1x32x8xbf16>
    %16 = vector.shape_cast %15 : vector<1x32x8xbf16> to vector<32x8xbf16>
    %cst_16 = arith.constant dense<0.000000e+00> : vector<8x8xf32>
    %17 = tpu.matmul %3, %16, %cst_16 {dimension_numbers = #tpu.dot_dimension_numbers<[1], [0], [0], [1], [0, 0, 1, 1], [], []>} : vector<8x32xbf16>, vector<32x8xbf16>, vector<8x8xf32> -> vector<8x8xf32>
    %c0_17 = arith.constant 0 : index
    %c0_18 = arith.constant 0 : index
    %c0_19 = arith.constant 0 : index
    %18 = vector.load %arg7[%c0_17, %c0_18, %c0_19] : memref<4x1x8xf32, #tpu.memory_space<vmem>>, vector<1x1x8xf32>
    %19 = vector.shape_cast %18 : vector<1x1x8xf32> to vector<1x8xf32>
    %20 = vector.broadcast %19 : vector<1x8xf32> to vector<8x8xf32>
    %21 = arith.addf %17, %20 : vector<8x8xf32>
    %c0_20 = arith.constant 0 : index
    %c0_21 = arith.constant 0 : index
    %c0_22 = arith.constant 0 : index
    %22 = vector.load %arg5[%c0_20, %c0_21, %c0_22] : memref<4x32x8xbf16, #tpu.memory_space<vmem>>, vector<1x32x8xbf16>
    %23 = vector.shape_cast %22 : vector<1x32x8xbf16> to vector<32x8xbf16>
    %cst_23 = arith.constant dense<0.000000e+00> : vector<8x8xf32>
    %24 = tpu.matmul %3, %23, %cst_23 {dimension_numbers = #tpu.dot_dimension_numbers<[1], [0], [0], [1], [0, 0, 1, 1], [], []>} : vector<8x32xbf16>, vector<32x8xbf16>, vector<8x8xf32> -> vector<8x8xf32>
    %c0_24 = arith.constant 0 : index
    %c0_25 = arith.constant 0 : index
    %c0_26 = arith.constant 0 : index
    %25 = vector.load %arg8[%c0_24, %c0_25, %c0_26] : memref<4x1x8xf32, #tpu.memory_space<vmem>>, vector<1x1x8xf32>
    %26 = vector.shape_cast %25 : vector<1x1x8xf32> to vector<1x8xf32>
    %27 = vector.broadcast %26 : vector<1x8xf32> to vector<8x8xf32>
    %28 = arith.addf %24, %27 : vector<8x8xf32>
    %29 = arith.truncf %14 : vector<8x8xf32> to vector<8x8xbf16>
    %30 = arith.truncf %21 : vector<8x8xf32> to vector<8x8xbf16>
    %cst_27 = arith.constant dense<0.000000e+00> : vector<8x8xf32>
    %31 = tpu.matmul %29, %30, %cst_27 {dimension_numbers = #tpu.dot_dimension_numbers<[1], [1], [0], [0], [0, 0, 1, 0], [], []>} : vector<8x8xbf16>, vector<8x8xbf16>, vector<8x8xf32> -> vector<8x8xf32>
    %cst_28 = arith.constant 0.353553385 : f32
    %32 = vector.broadcast %cst_28 : f32 to vector<8x8xf32>
    %33 = arith.mulf %31, %32 : vector<8x8xf32>
    %cst_29 = arith.constant dense<0xFF800000> : vector<8xf32>
    %34 = vector.multi_reduction <maximumf>, %33, %cst_29 [1] : vector<8x8xf32> to vector<8xf32>
    %35 = vector.shape_cast %34 : vector<8xf32> to vector<8x1xf32>
    %36 = vector.broadcast %35 : vector<8x1xf32> to vector<8x8xf32>
    %37 = arith.subf %33, %36 : vector<8x8xf32>
    %38 = math.exp %37 : vector<8x8xf32>
    %cst_30 = arith.constant dense<0.000000e+00> : vector<8xf32>
    %39 = vector.multi_reduction <add>, %38, %cst_30 [1] : vector<8x8xf32> to vector<8xf32>
    %40 = vector.shape_cast %39 : vector<8xf32> to vector<8x1xf32>
    %41 = tpu.reciprocal %40 {approx = true} : vector<8x1xf32> -> vector<8x1xf32>
    %42 = vector.broadcast %41 : vector<8x1xf32> to vector<8x8xf32>
    %43 = arith.mulf %38, %42 : vector<8x8xf32>
    %44 = arith.truncf %43 : vector<8x8xf32> to vector<8x8xbf16>
    %45 = arith.truncf %28 : vector<8x8xf32> to vector<8x8xbf16>
    %cst_31 = arith.constant dense<0.000000e+00> : vector<8x8xf32>
    %46 = tpu.matmul %44, %45, %cst_31 {dimension_numbers = #tpu.dot_dimension_numbers<[1], [0], [0], [1], [0, 0, 1, 1], [], []>} : vector<8x8xbf16>, vector<8x8xbf16>, vector<8x8xf32> -> vector<8x8xf32>
    %47 = arith.truncf %46 : vector<8x8xf32> to vector<8x8xbf16>
    %c0_32 = arith.constant 0 : index
    %c0_33 = arith.constant 0 : index
    %c0_34 = arith.constant 0 : index
    %48 = vector.load %arg9[%c0_32, %c0_33, %c0_34] : memref<4x8x32xbf16, #tpu.memory_space<vmem>>, vector<1x8x32xbf16>
    %49 = vector.shape_cast %48 : vector<1x8x32xbf16> to vector<8x32xbf16>
    %cst_35 = arith.constant dense<0.000000e+00> : vector<8x32xf32>
    %50 = tpu.matmul %47, %49, %cst_35 {dimension_numbers = #tpu.dot_dimension_numbers<[1], [0], [0], [1], [0, 0, 1, 1], [], []>} : vector<8x8xbf16>, vector<8x32xbf16>, vector<8x32xf32> -> vector<8x32xf32>
    %51 = arith.addf %7, %50 : vector<8x32xf32>
    %c1 = arith.constant 1 : index
    %c0_36 = arith.constant 0 : index
    %c0_37 = arith.constant 0 : index
    %52 = vector.load %arg3[%c1, %c0_36, %c0_37] : memref<4x32x8xbf16, #tpu.memory_space<vmem>>, vector<1x32x8xbf16>
    %53 = vector.shape_cast %52 : vector<1x32x8xbf16> to vector<32x8xbf16>
    %cst_38 = arith.constant dense<0.000000e+00> : vector<8x8xf32>
    %54 = tpu.matmul %1, %53, %cst_38 {dimension_numbers = #tpu.dot_dimension_numbers<[1], [0], [0], [1], [0, 0, 1, 1], [], []>} : vector<8x32xbf16>, vector<32x8xbf16>, vector<8x8xf32> -> vector<8x8xf32>
    %c1_39 = arith.constant 1 : index
    %c0_40 = arith.constant 0 : index
    %c0_41 = arith.constant 0 : index
    %55 = vector.load %arg6[%c1_39, %c0_40, %c0_41] : memref<4x1x8xf32, #tpu.memory_space<vmem>>, vector<1x1x8xf32>
    %56 = vector.shape_cast %55 : vector<1x1x8xf32> to vector<1x8xf32>
    %57 = vector.broadcast %56 : vector<1x8xf32> to vector<8x8xf32>
    %58 = arith.addf %54, %57 : vector<8x8xf32>
    %c1_42 = arith.constant 1 : index
    %c0_43 = arith.constant 0 : index
    %c0_44 = arith.constant 0 : index
    %59 = vector.load %arg4[%c1_42, %c0_43, %c0_44] : memref<4x32x8xbf16, #tpu.memory_space<vmem>>, vector<1x32x8xbf16>
    %60 = vector.shape_cast %59 : vector<1x32x8xbf16> to vector<32x8xbf16>
    %cst_45 = arith.constant dense<0.000000e+00> : vector<8x8xf32>
    %61 = tpu.matmul %3, %60, %cst_45 {dimension_numbers = #tpu.dot_dimension_numbers<[1], [0], [0], [1], [0, 0, 1, 1], [], []>} : vector<8x32xbf16>, vector<32x8xbf16>, vector<8x8xf32> -> vector<8x8xf32>
    %c1_46 = arith.constant 1 : index
    %c0_47 = arith.constant 0 : index
    %c0_48 = arith.constant 0 : index
    %62 = vector.load %arg7[%c1_46, %c0_47, %c0_48] : memref<4x1x8xf32, #tpu.memory_space<vmem>>, vector<1x1x8xf32>
    %63 = vector.shape_cast %62 : vector<1x1x8xf32> to vector<1x8xf32>
    %64 = vector.broadcast %63 : vector<1x8xf32> to vector<8x8xf32>
    %65 = arith.addf %61, %64 : vector<8x8xf32>
    %c1_49 = arith.constant 1 : index
    %c0_50 = arith.constant 0 : index
    %c0_51 = arith.constant 0 : index
    %66 = vector.load %arg5[%c1_49, %c0_50, %c0_51] : memref<4x32x8xbf16, #tpu.memory_space<vmem>>, vector<1x32x8xbf16>
    %67 = vector.shape_cast %66 : vector<1x32x8xbf16> to vector<32x8xbf16>
    %cst_52 = arith.constant dense<0.000000e+00> : vector<8x8xf32>
    %68 = tpu.matmul %3, %67, %cst_52 {dimension_numbers = #tpu.dot_dimension_numbers<[1], [0], [0], [1], [0, 0, 1, 1], [], []>} : vector<8x32xbf16>, vector<32x8xbf16>, vector<8x8xf32> -> vector<8x8xf32>
    %c1_53 = arith.constant 1 : index
    %c0_54 = arith.constant 0 : index
    %c0_55 = arith.constant 0 : index
    %69 = vector.load %arg8[%c1_53, %c0_54, %c0_55] : memref<4x1x8xf32, #tpu.memory_space<vmem>>, vector<1x1x8xf32>
    %70 = vector.shape_cast %69 : vector<1x1x8xf32> to vector<1x8xf32>
    %71 = vector.broadcast %70 : vector<1x8xf32> to vector<8x8xf32>
    %72 = arith.addf %68, %71 : vector<8x8xf32>
    %73 = arith.truncf %58 : vector<8x8xf32> to vector<8x8xbf16>
    %74 = arith.truncf %65 : vector<8x8xf32> to vector<8x8xbf16>
    %cst_56 = arith.constant dense<0.000000e+00> : vector<8x8xf32>
    %75 = tpu.matmul %73, %74, %cst_56 {dimension_numbers = #tpu.dot_dimension_numbers<[1], [1], [0], [0], [0, 0, 1, 0], [], []>} : vector<8x8xbf16>, vector<8x8xbf16>, vector<8x8xf32> -> vector<8x8xf32>
    %cst_57 = arith.constant 0.353553385 : f32
    %76 = vector.broadcast %cst_57 : f32 to vector<8x8xf32>
    %77 = arith.mulf %75, %76 : vector<8x8xf32>
    %cst_58 = arith.constant dense<0xFF800000> : vector<8xf32>
    %78 = vector.multi_reduction <maximumf>, %77, %cst_58 [1] : vector<8x8xf32> to vector<8xf32>
    %79 = vector.shape_cast %78 : vector<8xf32> to vector<8x1xf32>
    %80 = vector.broadcast %79 : vector<8x1xf32> to vector<8x8xf32>
    %81 = arith.subf %77, %80 : vector<8x8xf32>
    %82 = math.exp %81 : vector<8x8xf32>
    %cst_59 = arith.constant dense<0.000000e+00> : vector<8xf32>
    %83 = vector.multi_reduction <add>, %82, %cst_59 [1] : vector<8x8xf32> to vector<8xf32>
    %84 = vector.shape_cast %83 : vector<8xf32> to vector<8x1xf32>
    %85 = tpu.reciprocal %84 {approx = true} : vector<8x1xf32> -> vector<8x1xf32>
    %86 = vector.broadcast %85 : vector<8x1xf32> to vector<8x8xf32>
    %87 = arith.mulf %82, %86 : vector<8x8xf32>
    %88 = arith.truncf %87 : vector<8x8xf32> to vector<8x8xbf16>
    %89 = arith.truncf %72 : vector<8x8xf32> to vector<8x8xbf16>
    %cst_60 = arith.constant dense<0.000000e+00> : vector<8x8xf32>
    %90 = tpu.matmul %88, %89, %cst_60 {dimension_numbers = #tpu.dot_dimension_numbers<[1], [0], [0], [1], [0, 0, 1, 1], [], []>} : vector<8x8xbf16>, vector<8x8xbf16>, vector<8x8xf32> -> vector<8x8xf32>
    %91 = arith.truncf %90 : vector<8x8xf32> to vector<8x8xbf16>
    %c1_61 = arith.constant 1 : index
    %c0_62 = arith.constant 0 : index
    %c0_63 = arith.constant 0 : index
    %92 = vector.load %arg9[%c1_61, %c0_62, %c0_63] : memref<4x8x32xbf16, #tpu.memory_space<vmem>>, vector<1x8x32xbf16>
    %93 = vector.shape_cast %92 : vector<1x8x32xbf16> to vector<8x32xbf16>
    %cst_64 = arith.constant dense<0.000000e+00> : vector<8x32xf32>
    %94 = tpu.matmul %91, %93, %cst_64 {dimension_numbers = #tpu.dot_dimension_numbers<[1], [0], [0], [1], [0, 0, 1, 1], [], []>} : vector<8x8xbf16>, vector<8x32xbf16>, vector<8x32xf32> -> vector<8x32xf32>
    %95 = arith.addf %51, %94 : vector<8x32xf32>
    %c2 = arith.constant 2 : index
    %c0_65 = arith.constant 0 : index
    %c0_66 = arith.constant 0 : index
    %96 = vector.load %arg3[%c2, %c0_65, %c0_66] : memref<4x32x8xbf16, #tpu.memory_space<vmem>>, vector<1x32x8xbf16>
    %97 = vector.shape_cast %96 : vector<1x32x8xbf16> to vector<32x8xbf16>
    %cst_67 = arith.constant dense<0.000000e+00> : vector<8x8xf32>
    %98 = tpu.matmul %1, %97, %cst_67 {dimension_numbers = #tpu.dot_dimension_numbers<[1], [0], [0], [1], [0, 0, 1, 1], [], []>} : vector<8x32xbf16>, vector<32x8xbf16>, vector<8x8xf32> -> vector<8x8xf32>
    %c2_68 = arith.constant 2 : index
    %c0_69 = arith.constant 0 : index
    %c0_70 = arith.constant 0 : index
    %99 = vector.load %arg6[%c2_68, %c0_69, %c0_70] : memref<4x1x8xf32, #tpu.memory_space<vmem>>, vector<1x1x8xf32>
    %100 = vector.shape_cast %99 : vector<1x1x8xf32> to vector<1x8xf32>
    %101 = vector.broadcast %100 : vector<1x8xf32> to vector<8x8xf32>
    %102 = arith.addf %98, %101 : vector<8x8xf32>
    %c2_71 = arith.constant 2 : index
    %c0_72 = arith.constant 0 : index
    %c0_73 = arith.constant 0 : index
    %103 = vector.load %arg4[%c2_71, %c0_72, %c0_73] : memref<4x32x8xbf16, #tpu.memory_space<vmem>>, vector<1x32x8xbf16>
    %104 = vector.shape_cast %103 : vector<1x32x8xbf16> to vector<32x8xbf16>
    %cst_74 = arith.constant dense<0.000000e+00> : vector<8x8xf32>
    %105 = tpu.matmul %3, %104, %cst_74 {dimension_numbers = #tpu.dot_dimension_numbers<[1], [0], [0], [1], [0, 0, 1, 1], [], []>} : vector<8x32xbf16>, vector<32x8xbf16>, vector<8x8xf32> -> vector<8x8xf32>
    %c2_75 = arith.constant 2 : index
    %c0_76 = arith.constant 0 : index
    %c0_77 = arith.constant 0 : index
    %106 = vector.load %arg7[%c2_75, %c0_76, %c0_77] : memref<4x1x8xf32, #tpu.memory_space<vmem>>, vector<1x1x8xf32>
    %107 = vector.shape_cast %106 : vector<1x1x8xf32> to vector<1x8xf32>
    %108 = vector.broadcast %107 : vector<1x8xf32> to vector<8x8xf32>
    %109 = arith.addf %105, %108 : vector<8x8xf32>
    %c2_78 = arith.constant 2 : index
    %c0_79 = arith.constant 0 : index
    %c0_80 = arith.constant 0 : index
    %110 = vector.load %arg5[%c2_78, %c0_79, %c0_80] : memref<4x32x8xbf16, #tpu.memory_space<vmem>>, vector<1x32x8xbf16>
    %111 = vector.shape_cast %110 : vector<1x32x8xbf16> to vector<32x8xbf16>
    %cst_81 = arith.constant dense<0.000000e+00> : vector<8x8xf32>
    %112 = tpu.matmul %3, %111, %cst_81 {dimension_numbers = #tpu.dot_dimension_numbers<[1], [0], [0], [1], [0, 0, 1, 1], [], []>} : vector<8x32xbf16>, vector<32x8xbf16>, vector<8x8xf32> -> vector<8x8xf32>
    %c2_82 = arith.constant 2 : index
    %c0_83 = arith.constant 0 : index
    %c0_84 = arith.constant 0 : index
    %113 = vector.load %arg8[%c2_82, %c0_83, %c0_84] : memref<4x1x8xf32, #tpu.memory_space<vmem>>, vector<1x1x8xf32>
    %114 = vector.shape_cast %113 : vector<1x1x8xf32> to vector<1x8xf32>
    %115 = vector.broadcast %114 : vector<1x8xf32> to vector<8x8xf32>
    %116 = arith.addf %112, %115 : vector<8x8xf32>
    %117 = arith.truncf %102 : vector<8x8xf32> to vector<8x8xbf16>
    %118 = arith.truncf %109 : vector<8x8xf32> to vector<8x8xbf16>
    %cst_85 = arith.constant dense<0.000000e+00> : vector<8x8xf32>
    %119 = tpu.matmul %117, %118, %cst_85 {dimension_numbers = #tpu.dot_dimension_numbers<[1], [1], [0], [0], [0, 0, 1, 0], [], []>} : vector<8x8xbf16>, vector<8x8xbf16>, vector<8x8xf32> -> vector<8x8xf32>
    %cst_86 = arith.constant 0.353553385 : f32
    %120 = vector.broadcast %cst_86 : f32 to vector<8x8xf32>
    %121 = arith.mulf %119, %120 : vector<8x8xf32>
    %cst_87 = arith.constant dense<0xFF800000> : vector<8xf32>
    %122 = vector.multi_reduction <maximumf>, %121, %cst_87 [1] : vector<8x8xf32> to vector<8xf32>
    %123 = vector.shape_cast %122 : vector<8xf32> to vector<8x1xf32>
    %124 = vector.broadcast %123 : vector<8x1xf32> to vector<8x8xf32>
    %125 = arith.subf %121, %124 : vector<8x8xf32>
    %126 = math.exp %125 : vector<8x8xf32>
    %cst_88 = arith.constant dense<0.000000e+00> : vector<8xf32>
    %127 = vector.multi_reduction <add>, %126, %cst_88 [1] : vector<8x8xf32> to vector<8xf32>
    %128 = vector.shape_cast %127 : vector<8xf32> to vector<8x1xf32>
    %129 = tpu.reciprocal %128 {approx = true} : vector<8x1xf32> -> vector<8x1xf32>
    %130 = vector.broadcast %129 : vector<8x1xf32> to vector<8x8xf32>
    %131 = arith.mulf %126, %130 : vector<8x8xf32>
    %132 = arith.truncf %131 : vector<8x8xf32> to vector<8x8xbf16>
    %133 = arith.truncf %116 : vector<8x8xf32> to vector<8x8xbf16>
    %cst_89 = arith.constant dense<0.000000e+00> : vector<8x8xf32>
    %134 = tpu.matmul %132, %133, %cst_89 {dimension_numbers = #tpu.dot_dimension_numbers<[1], [0], [0], [1], [0, 0, 1, 1], [], []>} : vector<8x8xbf16>, vector<8x8xbf16>, vector<8x8xf32> -> vector<8x8xf32>
    %135 = arith.truncf %134 : vector<8x8xf32> to vector<8x8xbf16>
    %c2_90 = arith.constant 2 : index
    %c0_91 = arith.constant 0 : index
    %c0_92 = arith.constant 0 : index
    %136 = vector.load %arg9[%c2_90, %c0_91, %c0_92] : memref<4x8x32xbf16, #tpu.memory_space<vmem>>, vector<1x8x32xbf16>
    %137 = vector.shape_cast %136 : vector<1x8x32xbf16> to vector<8x32xbf16>
    %cst_93 = arith.constant dense<0.000000e+00> : vector<8x32xf32>
    %138 = tpu.matmul %135, %137, %cst_93 {dimension_numbers = #tpu.dot_dimension_numbers<[1], [0], [0], [1], [0, 0, 1, 1], [], []>} : vector<8x8xbf16>, vector<8x32xbf16>, vector<8x32xf32> -> vector<8x32xf32>
    %139 = arith.addf %95, %138 : vector<8x32xf32>
    %c3 = arith.constant 3 : index
    %c0_94 = arith.constant 0 : index
    %c0_95 = arith.constant 0 : index
    %140 = vector.load %arg3[%c3, %c0_94, %c0_95] : memref<4x32x8xbf16, #tpu.memory_space<vmem>>, vector<1x32x8xbf16>
    %141 = vector.shape_cast %140 : vector<1x32x8xbf16> to vector<32x8xbf16>
    %cst_96 = arith.constant dense<0.000000e+00> : vector<8x8xf32>
    %142 = tpu.matmul %1, %141, %cst_96 {dimension_numbers = #tpu.dot_dimension_numbers<[1], [0], [0], [1], [0, 0, 1, 1], [], []>} : vector<8x32xbf16>, vector<32x8xbf16>, vector<8x8xf32> -> vector<8x8xf32>
    %c3_97 = arith.constant 3 : index
    %c0_98 = arith.constant 0 : index
    %c0_99 = arith.constant 0 : index
    %143 = vector.load %arg6[%c3_97, %c0_98, %c0_99] : memref<4x1x8xf32, #tpu.memory_space<vmem>>, vector<1x1x8xf32>
    %144 = vector.shape_cast %143 : vector<1x1x8xf32> to vector<1x8xf32>
    %145 = vector.broadcast %144 : vector<1x8xf32> to vector<8x8xf32>
    %146 = arith.addf %142, %145 : vector<8x8xf32>
    %c3_100 = arith.constant 3 : index
    %c0_101 = arith.constant 0 : index
    %c0_102 = arith.constant 0 : index
    %147 = vector.load %arg4[%c3_100, %c0_101, %c0_102] : memref<4x32x8xbf16, #tpu.memory_space<vmem>>, vector<1x32x8xbf16>
    %148 = vector.shape_cast %147 : vector<1x32x8xbf16> to vector<32x8xbf16>
    %cst_103 = arith.constant dense<0.000000e+00> : vector<8x8xf32>
    %149 = tpu.matmul %3, %148, %cst_103 {dimension_numbers = #tpu.dot_dimension_numbers<[1], [0], [0], [1], [0, 0, 1, 1], [], []>} : vector<8x32xbf16>, vector<32x8xbf16>, vector<8x8xf32> -> vector<8x8xf32>
    %c3_104 = arith.constant 3 : index
    %c0_105 = arith.constant 0 : index
    %c0_106 = arith.constant 0 : index
    %150 = vector.load %arg7[%c3_104, %c0_105, %c0_106] : memref<4x1x8xf32, #tpu.memory_space<vmem>>, vector<1x1x8xf32>
    %151 = vector.shape_cast %150 : vector<1x1x8xf32> to vector<1x8xf32>
    %152 = vector.broadcast %151 : vector<1x8xf32> to vector<8x8xf32>
    %153 = arith.addf %149, %152 : vector<8x8xf32>
    %c3_107 = arith.constant 3 : index
    %c0_108 = arith.constant 0 : index
    %c0_109 = arith.constant 0 : index
    %154 = vector.load %arg5[%c3_107, %c0_108, %c0_109] : memref<4x32x8xbf16, #tpu.memory_space<vmem>>, vector<1x32x8xbf16>
    %155 = vector.shape_cast %154 : vector<1x32x8xbf16> to vector<32x8xbf16>
    %cst_110 = arith.constant dense<0.000000e+00> : vector<8x8xf32>
    %156 = tpu.matmul %3, %155, %cst_110 {dimension_numbers = #tpu.dot_dimension_numbers<[1], [0], [0], [1], [0, 0, 1, 1], [], []>} : vector<8x32xbf16>, vector<32x8xbf16>, vector<8x8xf32> -> vector<8x8xf32>
    %c3_111 = arith.constant 3 : index
    %c0_112 = arith.constant 0 : index
    %c0_113 = arith.constant 0 : index
    %157 = vector.load %arg8[%c3_111, %c0_112, %c0_113] : memref<4x1x8xf32, #tpu.memory_space<vmem>>, vector<1x1x8xf32>
    %158 = vector.shape_cast %157 : vector<1x1x8xf32> to vector<1x8xf32>
    %159 = vector.broadcast %158 : vector<1x8xf32> to vector<8x8xf32>
    %160 = arith.addf %156, %159 : vector<8x8xf32>
    %161 = arith.truncf %146 : vector<8x8xf32> to vector<8x8xbf16>
    %162 = arith.truncf %153 : vector<8x8xf32> to vector<8x8xbf16>
    %cst_114 = arith.constant dense<0.000000e+00> : vector<8x8xf32>
    %163 = tpu.matmul %161, %162, %cst_114 {dimension_numbers = #tpu.dot_dimension_numbers<[1], [1], [0], [0], [0, 0, 1, 0], [], []>} : vector<8x8xbf16>, vector<8x8xbf16>, vector<8x8xf32> -> vector<8x8xf32>
    %cst_115 = arith.constant 0.353553385 : f32
    %164 = vector.broadcast %cst_115 : f32 to vector<8x8xf32>
    %165 = arith.mulf %163, %164 : vector<8x8xf32>
    %cst_116 = arith.constant dense<0xFF800000> : vector<8xf32>
    %166 = vector.multi_reduction <maximumf>, %165, %cst_116 [1] : vector<8x8xf32> to vector<8xf32>
    %167 = vector.shape_cast %166 : vector<8xf32> to vector<8x1xf32>
    %168 = vector.broadcast %167 : vector<8x1xf32> to vector<8x8xf32>
    %169 = arith.subf %165, %168 : vector<8x8xf32>
    %170 = math.exp %169 : vector<8x8xf32>
    %cst_117 = arith.constant dense<0.000000e+00> : vector<8xf32>
    %171 = vector.multi_reduction <add>, %170, %cst_117 [1] : vector<8x8xf32> to vector<8xf32>
    %172 = vector.shape_cast %171 : vector<8xf32> to vector<8x1xf32>
    %173 = tpu.reciprocal %172 {approx = true} : vector<8x1xf32> -> vector<8x1xf32>
    %174 = vector.broadcast %173 : vector<8x1xf32> to vector<8x8xf32>
    %175 = arith.mulf %170, %174 : vector<8x8xf32>
    %176 = arith.truncf %175 : vector<8x8xf32> to vector<8x8xbf16>
    %177 = arith.truncf %160 : vector<8x8xf32> to vector<8x8xbf16>
    %cst_118 = arith.constant dense<0.000000e+00> : vector<8x8xf32>
    %178 = tpu.matmul %176, %177, %cst_118 {dimension_numbers = #tpu.dot_dimension_numbers<[1], [0], [0], [1], [0, 0, 1, 1], [], []>} : vector<8x8xbf16>, vector<8x8xbf16>, vector<8x8xf32> -> vector<8x8xf32>
    %179 = arith.truncf %178 : vector<8x8xf32> to vector<8x8xbf16>
    %c3_119 = arith.constant 3 : index
    %c0_120 = arith.constant 0 : index
    %c0_121 = arith.constant 0 : index
    %180 = vector.load %arg9[%c3_119, %c0_120, %c0_121] : memref<4x8x32xbf16, #tpu.memory_space<vmem>>, vector<1x8x32xbf16>
    %181 = vector.shape_cast %180 : vector<1x8x32xbf16> to vector<8x32xbf16>
    %cst_122 = arith.constant dense<0.000000e+00> : vector<8x32xf32>
    %182 = tpu.matmul %179, %181, %cst_122 {dimension_numbers = #tpu.dot_dimension_numbers<[1], [0], [0], [1], [0, 0, 1, 1], [], []>} : vector<8x8xbf16>, vector<8x32xbf16>, vector<8x32xf32> -> vector<8x32xf32>
    %183 = arith.addf %139, %182 : vector<8x32xf32>
    %cst_123 = arith.constant dense<0.000000e+00> : vector<8xf32>
    %184 = vector.multi_reduction <add>, %183, %cst_123 [1] : vector<8x32xf32> to vector<8xf32>
    %185 = vector.shape_cast %184 : vector<8xf32> to vector<8x1xf32>
    %cst_124 = arith.constant 3.200000e+01 : f32
    %186 = vector.broadcast %cst_124 : f32 to vector<8x1xf32>
    %187 = arith.divf %185, %186 : vector<8x1xf32>
    %188 = vector.broadcast %187 : vector<8x1xf32> to vector<8x32xf32>
    %189 = arith.subf %183, %188 : vector<8x32xf32>
    %190 = arith.mulf %189, %189 : vector<8x32xf32>
    %cst_125 = arith.constant dense<0.000000e+00> : vector<8xf32>
    %191 = vector.multi_reduction <add>, %190, %cst_125 [1] : vector<8x32xf32> to vector<8xf32>
    %192 = vector.shape_cast %191 : vector<8xf32> to vector<8x1xf32>
    %cst_126 = arith.constant 3.200000e+01 : f32
    %193 = vector.broadcast %cst_126 : f32 to vector<8x1xf32>
    %194 = arith.divf %192, %193 : vector<8x1xf32>
    %cst_127 = arith.constant 9.99999974E-6 : f32
    %195 = vector.broadcast %cst_127 : f32 to vector<8x1xf32>
    %196 = arith.addf %194, %195 : vector<8x1xf32>
    %197 = math.rsqrt %196 : vector<8x1xf32>
    %198 = vector.broadcast %197 : vector<8x1xf32> to vector<8x32xf32>
    %199 = arith.mulf %189, %198 : vector<8x32xf32>
    %c0_128 = arith.constant 0 : index
    %c0_129 = arith.constant 0 : index
    %200 = vector.load %arg11[%c0_128, %c0_129] : memref<1x32xf32, #tpu.memory_space<vmem>>, vector<1x32xf32>
    %201 = vector.broadcast %200 : vector<1x32xf32> to vector<8x32xf32>
    %202 = arith.mulf %199, %201 : vector<8x32xf32>
    %c0_130 = arith.constant 0 : index
    %c0_131 = arith.constant 0 : index
    %203 = vector.load %arg12[%c0_130, %c0_131] : memref<1x32xf32, #tpu.memory_space<vmem>>, vector<1x32xf32>
    %204 = vector.broadcast %203 : vector<1x32xf32> to vector<8x32xf32>
    %205 = arith.addf %202, %204 : vector<8x32xf32>
    %206 = arith.truncf %205 : vector<8x32xf32> to vector<8x32xbf16>
    %c0_132 = arith.constant 0 : index
    %c0_133 = arith.constant 0 : index
    %c0_134 = arith.constant 0 : index
    %207 = vector.load %arg13[%c0_132, %c0_133, %c0_134] : memref<1x8x32xbf16, #tpu.memory_space<vmem>>, vector<1x8x32xbf16>
    %208 = vector.shape_cast %207 : vector<1x8x32xbf16> to vector<8x32xbf16>
    %209 = vector.shape_cast %206 : vector<8x32xbf16> to vector<1x8x32xbf16>
    tpu.vector_store %arg13[%c0_132, %c0_133, %c0_134], %209 {strides = array<i32>} : memref<1x8x32xbf16, #tpu.memory_space<vmem>>, vector<1x8x32xbf16>,
    return
  }
  func.func @transform_0(%arg0: i32) -> (i32, i32, i32) {
    %c0_i32 = arith.constant 0 : i32
    %c0_i32_0 = arith.constant 0 : i32
    %c0_i32_1 = arith.constant 0 : i32
    return %arg0, %c0_i32, %c0_i32_0 : i32, i32, i32
  }
  func.func @transform_1(%arg0: i32) -> (i32, i32, i32) {
    %c0_i32 = arith.constant 0 : i32
    %c0_i32_0 = arith.constant 0 : i32
    %c0_i32_1 = arith.constant 0 : i32
    return %arg0, %c0_i32, %c0_i32_0 : i32, i32, i32
  }
  func.func @transform_2(%arg0: i32) -> (i32, i32, i32) {
    %c0_i32 = arith.constant 0 : i32
    %c0_i32_0 = arith.constant 0 : i32
    %c0_i32_1 = arith.constant 0 : i32
    %c0_i32_2 = arith.constant 0 : i32
    return %c0_i32, %c0_i32_0, %c0_i32_1 : i32, i32, i32
  }
  func.func @transform_3(%arg0: i32) -> (i32, i32, i32) {
    %c0_i32 = arith.constant 0 : i32
    %c0_i32_0 = arith.constant 0 : i32
    %c0_i32_1 = arith.constant 0 : i32
    %c0_i32_2 = arith.constant 0 : i32
    return %c0_i32, %c0_i32_0, %c0_i32_1 : i32, i32, i32
  }
  func.func @transform_4(%arg0: i32) -> (i32, i32, i32) {
    %c0_i32 = arith.constant 0 : i32
    %c0_i32_0 = arith.constant 0 : i32
    %c0_i32_1 = arith.constant 0 : i32
    %c0_i32_2 = arith.constant 0 : i32
    return %c0_i32, %c0_i32_0, %c0_i32_1 : i32, i32, i32
  }
  func.func @transform_5(%arg0: i32) -> (i32, i32, i32) {
    %c0_i32 = arith.constant 0 : i32
    %c0_i32_0 = arith.constant 0 : i32
    %c0_i32_1 = arith.constant 0 : i32
    %c0_i32_2 = arith.constant 0 : i32
    return %c0_i32, %c0_i32_0, %c0_i32_1 : i32, i32, i32
  }
  func.func @transform_6(%arg0: i32) -> (i32, i32, i32) {
    %c0_i32 = arith.constant 0 : i32
    %c0_i32_0 = arith.constant 0 : i32
    %c0_i32_1 = arith.constant 0 : i32
    %c0_i32_2 = arith.constant 0 : i32
    return %c0_i32, %c0_i32_0, %c0_i32_1 : i32, i32, i32
  }
  func.func @transform_7(%arg0: i32) -> (i32, i32, i32) {
    %c0_i32 = arith.constant 0 : i32
    %c0_i32_0 = arith.constant 0 : i32
    %c0_i32_1 = arith.constant 0 : i32
    %c0_i32_2 = arith.constant 0 : i32
    return %c0_i32, %c0_i32_0, %c0_i32_1 : i32, i32, i32
  }
  func.func @transform_8(%arg0: i32) -> (i32, i32, i32) {
    %c0_i32 = arith.constant 0 : i32
    %c0_i32_0 = arith.constant 0 : i32
    %c0_i32_1 = arith.constant 0 : i32
    %c0_i32_2 = arith.constant 0 : i32
    return %c0_i32, %c0_i32_0, %c0_i32_1 : i32, i32, i32
  }
  func.func @transform_9(%arg0: i32) -> (i32, i32) {
    %c0_i32 = arith.constant 0 : i32
    %c0_i32_0 = arith.constant 0 : i32
    %c0_i32_1 = arith.constant 0 : i32
    return %c0_i32, %c0_i32_0 : i32, i32
  }
  func.func @transform_10(%arg0: i32) -> (i32, i32) {
    %c0_i32 = arith.constant 0 : i32
    %c0_i32_0 = arith.constant 0 : i32
    %c0_i32_1 = arith.constant 0 : i32
    return %c0_i32, %c0_i32_0 : i32, i32
  }
  func.func @transform_11(%arg0: i32) -> (i32, i32) {
    %c0_i32 = arith.constant 0 : i32
    %c0_i32_0 = arith.constant 0 : i32
    %c0_i32_1 = arith.constant 0 : i32
    return %c0_i32, %c0_i32_0 : i32, i32
  }
  func.func @transform_12(%arg0: i32) -> (i32, i32, i32) {
    %c0_i32 = arith.constant 0 : i32
    %c0_i32_0 = arith.constant 0 : i32
    %c0_i32_1 = arith.constant 0 : i32
    return %arg0, %c0_i32, %c0_i32_0 : i32, i32, i32
  }
}

module attributes {stable_mosaic.version = 11 : i64} {
  func.func @_linear_logsoftmax_kernel(%arg0: i32, %arg1: i32, %arg2: memref<16x32xbf16, #tpu.memory_space<vmem>>, %arg3: memref<32x20xbf16, #tpu.memory_space<vmem>>, %arg4: memref<1x20xf32, #tpu.memory_space<vmem>>, %arg5: memref<16x20xf32, #tpu.memory_space<vmem>>, %arg6: memref<16x20xf32, #tpu.memory_space<vmem>>) attributes {dimension_semantics = [#tpu.dimension_semantics<parallel>, #tpu.dimension_semantics<arbitrary>], iteration_bounds = array<i64: 1, 1>, scalar_prefetch = 0 : i64, scratch_operands = 1 : i64, tpu.core_type = #tpu.core_type<tc>, window_params = [{transform_indices = @transform_0, window_bounds = array<i64: 16, 32>}, {transform_indices = @transform_1, window_bounds = array<i64: 32, 20>}, {pipeline_mode = #tpu.pipeline_mode<synchronous>, transform_indices = @transform_2, window_bounds = array<i64: 1, 20>}, {transform_indices = @transform_3, window_bounds = array<i64: 16, 20>}]} {
    %c0_i32 = arith.constant 0 : i32
    %0 = arith.cmpi eq, %arg1, %c0_i32 : i32
    %1 = arith.extui %0 : i1 to i32
    %c0_i32_0 = arith.constant 0 : i32
    %2 = arith.cmpi ne, %1, %c0_i32_0 : i32
    scf.if %2 {
      %c0_10 = arith.constant 0 : index
      %c0_11 = arith.constant 0 : index
      %12 = vector.load %arg4[%c0_10, %c0_11] : memref<1x20xf32, #tpu.memory_space<vmem>>, vector<1x20xf32>
      %13 = vector.shape_cast %12 : vector<1x20xf32> to vector<1x20xf32>
      %14 = vector.broadcast %13 : vector<1x20xf32> to vector<16x20xf32>
      %c0_12 = arith.constant 0 : index
      %c0_13 = arith.constant 0 : index
      %15 = vector.load %arg6[%c0_12, %c0_13] : memref<16x20xf32, #tpu.memory_space<vmem>>, vector<16x20xf32>
      tpu.vector_store %arg6[%c0_12, %c0_13], %14 {strides = array<i32>} : memref<16x20xf32, #tpu.memory_space<vmem>>, vector<16x20xf32>,
    } else {
    }
    %c0 = arith.constant 0 : index
    %c0_1 = arith.constant 0 : index
    %3 = vector.load %arg6[%c0, %c0_1] : memref<16x20xf32, #tpu.memory_space<vmem>>, vector<16x20xf32>
    %c0_2 = arith.constant 0 : index
    %c0_3 = arith.constant 0 : index
    %4 = vector.load %arg2[%c0_2, %c0_3] : memref<16x32xbf16, #tpu.memory_space<vmem>>, vector<16x32xbf16>
    %c0_4 = arith.constant 0 : index
    %c0_5 = arith.constant 0 : index
    %5 = vector.load %arg3[%c0_4, %c0_5] : memref<32x20xbf16, #tpu.memory_space<vmem>>, vector<32x20xbf16>
    %cst = arith.constant dense<0.000000e+00> : vector<16x20xf32>
    %6 = tpu.matmul %4, %5, %cst {dimension_numbers = #tpu.dot_dimension_numbers<[1], [0], [0], [1], [0, 0, 1, 1], [], []>} : vector<16x32xbf16>, vector<32x20xbf16>, vector<16x20xf32> -> vector<16x20xf32>
    %7 = arith.addf %3, %6 : vector<16x20xf32>
    %c0_6 = arith.constant 0 : index
    %c0_7 = arith.constant 0 : index
    %8 = vector.load %arg6[%c0_6, %c0_7] : memref<16x20xf32, #tpu.memory_space<vmem>>, vector<16x20xf32>
    tpu.vector_store %arg6[%c0_6, %c0_7], %7 {strides = array<i32>} : memref<16x20xf32, #tpu.memory_space<vmem>>, vector<16x20xf32>,
    %c0_i32_8 = arith.constant 0 : i32
    %9 = arith.cmpi eq, %arg1, %c0_i32_8 : i32
    %10 = arith.extui %9 : i1 to i32
    %c0_i32_9 = arith.constant 0 : i32
    %11 = arith.cmpi ne, %10, %c0_i32_9 : i32
    scf.if %11 {
      %c0_10 = arith.constant 0 : index
      %c0_11 = arith.constant 0 : index
      %12 = vector.load %arg6[%c0_10, %c0_11] : memref<16x20xf32, #tpu.memory_space<vmem>>, vector<16x20xf32>
      %cst_12 = arith.constant dense<0xFF800000> : vector<16xf32>
      %13 = vector.multi_reduction <maximumf>, %12, %cst_12 [1] : vector<16x20xf32> to vector<16xf32>
      %14 = vector.shape_cast %13 : vector<16xf32> to vector<16x1xf32>
      %15 = vector.broadcast %14 : vector<16x1xf32> to vector<16x20xf32>
      %16 = arith.subf %12, %15 : vector<16x20xf32>
      %17 = math.exp %16 : vector<16x20xf32>
      %cst_13 = arith.constant dense<0.000000e+00> : vector<16xf32>
      %18 = vector.multi_reduction <add>, %17, %cst_13 [1] : vector<16x20xf32> to vector<16xf32>
      %19 = vector.shape_cast %18 : vector<16xf32> to vector<16x1xf32>
      %20 = math.log %19 : vector<16x1xf32>
      %21 = arith.addf %20, %14 : vector<16x1xf32>
      %22 = vector.broadcast %21 : vector<16x1xf32> to vector<16x20xf32>
      %23 = arith.subf %12, %22 : vector<16x20xf32>
      %c0_14 = arith.constant 0 : index
      %c0_15 = arith.constant 0 : index
      %24 = vector.load %arg5[%c0_14, %c0_15] : memref<16x20xf32, #tpu.memory_space<vmem>>, vector<16x20xf32>
      tpu.vector_store %arg5[%c0_14, %c0_15], %23 {strides = array<i32>} : memref<16x20xf32, #tpu.memory_space<vmem>>, vector<16x20xf32>,
    } else {
    }
    return
  }
  func.func @transform_0(%arg0: i32, %arg1: i32) -> (i32, i32) {
    %c0_i32 = arith.constant 0 : i32
    return %arg0, %arg1 : i32, i32
  }
  func.func @transform_1(%arg0: i32, %arg1: i32) -> (i32, i32) {
    %c0_i32 = arith.constant 0 : i32
    %c0_i32_0 = arith.constant 0 : i32
    return %arg1, %c0_i32 : i32, i32
  }
  func.func @transform_2(%arg0: i32, %arg1: i32) -> (i32, i32) {
    %c0_i32 = arith.constant 0 : i32
    %c0_i32_0 = arith.constant 0 : i32
    %c0_i32_1 = arith.constant 0 : i32
    return %c0_i32, %c0_i32_0 : i32, i32
  }
  func.func @transform_3(%arg0: i32, %arg1: i32) -> (i32, i32) {
    %c0_i32 = arith.constant 0 : i32
    %c0_i32_0 = arith.constant 0 : i32
    return %arg0, %c0_i32 : i32, i32
  }
}

</mosaic_0001>

<llo_original>
// kernel: trfm_seq2seq_forward.17
$region0: #{trfm_seq2seq_forward.17}
  #allocation0 [shape = 'u32[]', space=smem, size = 0x4, offset = 0x4, fixed_abs, tag = 'smem constant byte address 0x4 - core index']
  #allocation1 [shape = 'u32[144,128]{1,0:T(1,128)}', space=vmem, size = 0x12000, scoped, tag = 'internal scratch']
  %s0 = inlined_call_operand.vmem [shape: bf16[16,32], index: 0, kind: input, shape index: {}]
  %s1 = inlined_call_operand.vmem [shape: f32[1,32], index: 1, kind: input, shape index: {}]
  %s2 = inlined_call_operand.vmem [shape: f32[1,32], index: 2, kind: input, shape index: {}]
  %s3 = inlined_call_operand.vmem [shape: bf16[16,32], index: 3, kind: output, shape index: {}]
  %s4 = sld [smem:[#allocation0]]
  $region22: #{trfm_seq2seq_forward.17} parent=0
    _
  %s6 = ssub.s32 1, %s4
  %s7 = scalar_select 0, %s6, %s4
  // Predicated region
  $region2: #{trfm_seq2seq_forward.17} parent=0 // pred_check
    _
  $region3: #{trfm_seq2seq_forward.17} parent=0 // pred_check_branch
    %9 = sbr.rel (0) target = $region5
  $region4: #{trfm_seq2seq_forward.17} parent=0 // pred_region
    _
  $region5: #{trfm_seq2seq_forward.17} parent=0 // pred_fallthru
    _
  // Predicated region
  $region6: #{trfm_seq2seq_forward.17} parent=0 // pred_check
    _
  $region7: #{trfm_seq2seq_forward.17} parent=0 // pred_check_branch
    %11 = sbr.rel (0) target = $region9
  $region8: #{trfm_seq2seq_forward.17} parent=0 // pred_region
    _
  $region9: #{trfm_seq2seq_forward.17} parent=0 // pred_fallthru
    _
  // Predicated region
  $region10: #{trfm_seq2seq_forward.17} parent=0 // pred_check
    _
  $region11: #{trfm_seq2seq_forward.17} parent=0 // pred_check_branch
    %13 = sbr.rel (0) target = $region13
  $region12: #{trfm_seq2seq_forward.17} parent=0 // pred_region
    _
  $region13: #{trfm_seq2seq_forward.17} parent=0 // pred_fallthru
    _
  %v14 = vld [vmem:[%s0] sm:$0xf]
  %v15 = vld [vmem:[%s0 + $0x4] sm:$0xf]
  %v16 = vunpack.c.l.bf16 %v14
  %v17 = vunpack.c.l.bf16 %v15
  %vm18 = vcmask 261120
  %v19 = vsel %vm18, %v16, 0.0
  %20 = vadd.xlane.f32.xlu0 %v19
  %v21 = vpop.xlane.xlu0 %20
  %v22 = vsel %vm18, %v17, 0.0
  %23 = vadd.xlane.f32.xlu0 %v22
  %v24 = vpop.xlane.xlu0 %23
  %v25 = vrcp.pop 32.0
  %v26 = vmul.f32 %v21, %v25
  %v27 = vmul.f32 %v24, %v25
  %v28 = vsub.f32 %v16, %v26
  %v29 = vsub.f32 %v17, %v27
  %v30 = vmul.f32 %v28, %v28
  %v31 = vmul.f32 %v29, %v29
  %v32 = vsel %vm18, %v30, 0.0
  %33 = vadd.xlane.f32.xlu0 %v32
  %v34 = vpop.xlane.xlu0 %33
  %v35 = vsel %vm18, %v31, 0.0
  %36 = vadd.xlane.f32.xlu0 %v35
  %v37 = vpop.xlane.xlu0 %36
  %v38 = vmul.f32 %v34, %v25
  %v39 = vmul.f32 %v37, %v25
  %v40 = vadd.f32 %v38, 1e-05
  %v41 = vadd.f32 %v39, 1e-05
  %v42 = vrsqrt.pop %v40
  %v43 = vrsqrt.pop %v41
  %v44 = vmul.f32 %v28, %v42
  %v45 = vmul.f32 %v29, %v43
  %v46 = vld [vmem:[%s1] sm:$0x1]
  %v48 = vlaneseq
  %v49 = vshrl.u32 %v48, 7
  %v50 = vsub.s32 0, %v49
  %v51 = vrot.slane %v46, %v50
  %v53 = vmul.f32 %v44, %v51
  %v54 = vmul.f32 %v45, %v51
  %v55 = vld [vmem:[%s2] sm:$0x1]
  %v57 = vlaneseq
  %v58 = vshrl.u32 %v57, 7
  %v59 = vsub.s32 0, %v58
  %v60 = vrot.slane %v55, %v59
  %v62 = vadd.f32 %v53, %v60
  %v63 = vadd.f32 %v54, %v60
  %v64 = vpack.c.bf16 %v63, %v62
  %v66 = vunpack.c.l.b16 %v64
  %v67 = vunpack.c.h.b16 %v64
  %v68 = vpack.c.b16 %v66, %v66
  %v69 = vpack.c.b16 %v67, %v67
  %vm72 = vcmask 257024
  %73 = vst.msk [vmem:[%s3] sm:$0xf] %vm72, %v68
  %74 = vst.msk [vmem:[%s3 + $0x4] sm:$0xf] %vm72, %v69
  // Predicated region
  $region14: #{trfm_seq2seq_forward.17} parent=0 // pred_check
    _
  $region15: #{trfm_seq2seq_forward.17} parent=0 // pred_check_branch
    %76 = sbr.rel (0) target = $region17
  $region16: #{trfm_seq2seq_forward.17} parent=0 // pred_region
    _
  $region17: #{trfm_seq2seq_forward.17} parent=0 // pred_fallthru
    _
  // Predicated region
  $region18: #{trfm_seq2seq_forward.17} parent=0 // pred_check
    _
  $region19: #{trfm_seq2seq_forward.17} parent=0 // pred_check_branch
    %78 = sbr.rel (0) target = $region21
  $region20: #{trfm_seq2seq_forward.17} parent=0 // pred_region
    _
  $region21: #{trfm_seq2seq_forward.17} parent=0 // pred_fallthru
    _

// kernel: trfm_seq2seq_forward.14
$region0: #{trfm_seq2seq_forward.14}
  #allocation0 [shape = 'u32[]', space=smem, size = 0x4, offset = 0x4, fixed_abs, tag = 'smem constant byte address 0x4 - core index']
  #allocation1 [shape = 'u32[144,128]{1,0:T(1,128)}', space=vmem, size = 0x12000, scoped, tag = 'internal scratch']
  #allocation2 [shape = 'f32[16,32]{1,0:T(8,128)}', space=vmem, size = 0x2000, scoped, tag = 'scratch operand']
  %s0 = inlined_call_operand.vmem [shape: bf16[16,32], index: 0, kind: input, shape index: {}]
  %s1 = inlined_call_operand.vmem [shape: bf16[32,32], index: 1, kind: input, shape index: {}]
  %s2 = inlined_call_operand.vmem [shape: f32[1,32], index: 2, kind: input, shape index: {}]
  %s3 = inlined_call_operand.vmem [shape: bf16[32,32], index: 3, kind: input, shape index: {}]
  %s4 = inlined_call_operand.vmem [shape: f32[1,32], index: 4, kind: input, shape index: {}]
  %s5 = inlined_call_operand.vmem [shape: f32[1,32], index: 5, kind: input, shape index: {}]
  %s6 = inlined_call_operand.vmem [shape: f32[1,32], index: 6, kind: input, shape index: {}]
  %s7 = inlined_call_operand.vmem [shape: bf16[16,32], index: 7, kind: output, shape index: {}]
  %s8 = sld [smem:[#allocation0]]
  $region46: #{trfm_seq2seq_forward.14} parent=0
    _
  %s10 = ssub.s32 1, %s8
  %s11 = scalar_select 0, %s10, %s8
  // Predicated region
  $region2: #{trfm_seq2seq_forward.14} parent=0 // pred_check
    _
  $region3: #{trfm_seq2seq_forward.14} parent=0 // pred_check_branch
    %13 = sbr.rel (0) target = $region5
  $region4: #{trfm_seq2seq_forward.14} parent=0 // pred_region
    _
  $region5: #{trfm_seq2seq_forward.14} parent=0 // pred_fallthru
    _
  // Predicated region
  $region6: #{trfm_seq2seq_forward.14} parent=0 // pred_check
    _
  $region7: #{trfm_seq2seq_forward.14} parent=0 // pred_check_branch
    %15 = sbr.rel (0) target = $region9
  $region8: #{trfm_seq2seq_forward.14} parent=0 // pred_region
    _
  $region9: #{trfm_seq2seq_forward.14} parent=0 // pred_fallthru
    _
  // Predicated region
  $region10: #{trfm_seq2seq_forward.14} parent=0 // pred_check
    _
  $region11: #{trfm_seq2seq_forward.14} parent=0 // pred_check_branch
    %17 = sbr.rel (0) target = $region13
  $region12: #{trfm_seq2seq_forward.14} parent=0 // pred_region
    _
  $region13: #{trfm_seq2seq_forward.14} parent=0 // pred_fallthru
    _
  // Predicated region
  $region14: #{trfm_seq2seq_forward.14} parent=0 // pred_check
    _
  $region15: #{trfm_seq2seq_forward.14} parent=0 // pred_check_branch
    %19 = sbr.rel (0) target = $region17
  $region16: #{trfm_seq2seq_forward.14} parent=0 // pred_region
    _
  $region17: #{trfm_seq2seq_forward.14} parent=0 // pred_fallthru
    _
  // Predicated region
  $region18: #{trfm_seq2seq_forward.14} parent=0 // pred_check
    _
  $region19: #{trfm_seq2seq_forward.14} parent=0 // pred_check_branch
    %21 = sbr.rel (0) target = $region21
  $region20: #{trfm_seq2seq_forward.14} parent=0 // pred_region
    _
  $region21: #{trfm_seq2seq_forward.14} parent=0 // pred_fallthru
    _
  // Predicated region
  $region22: #{trfm_seq2seq_forward.14} parent=0 // pred_check
    _
  $region23: #{trfm_seq2seq_forward.14} parent=0 // pred_check_branch
    %23 = sbr.rel (0) target = $region25
  $region24: #{trfm_seq2seq_forward.14} parent=0 // pred_region
    _
  $region25: #{trfm_seq2seq_forward.14} parent=0 // pred_fallthru
    _
  // Predicated region
  $region26: #{trfm_seq2seq_forward.14} parent=0 // pred_check
    _
  $region27: #{trfm_seq2seq_forward.14} parent=0 // pred_check_branch
    %25 = sbr.rel (0) target = $region29
  $region28: #{trfm_seq2seq_forward.14} parent=0 // pred_region
    _
  $region29: #{trfm_seq2seq_forward.14} parent=0 // pred_fallthru
    _
  %v27 = vld [vmem:[%s0] sm:$0xf]
  %v28 = vld [vmem:[%s0 + $0x4] sm:$0xf]
  %p29 = scmp.eq.s32.totalorder 0, 0
  // Predicated region
  $region30: #{trfm_seq2seq_forward.14} parent=0 // pred_check
    %p30 = pneg %p29
  $region31: #{trfm_seq2seq_forward.14} parent=0 // pred_check_branch
    %32 = sbr.rel (%p30) target = $region33
  $region32: #{trfm_seq2seq_forward.14} parent=0 // pred_region
    %v33 = vld [vmem:[%s4] sm:$0x1]
    %v34 = vunpack.c.l.bf16 %v27
    %v35 = vunpack.c.l.bf16 %v28
    %v37 = vlaneseq
    %v38 = vshrl.u32 %v37, 7
    %v39 = vsub.s32 0, %v38
    %v40 = vrot.slane %v33, %v39
    %v42 = vadd.f32 %v40, %v34
    %v43 = vadd.f32 %v40, %v35
    %vm44 = vcmask 261120
    %45 = vst.msk [vmem:[#allocation2] sm:$0xff] %vm44, %v42
    %46 = vst.msk [vmem:[#allocation2 + $0x8] sm:$0xff] %vm44, %v43
  $region33: #{trfm_seq2seq_forward.14} parent=0 // pred_fallthru
    _
  %v47 = vld [vmem:[%s1] sm:$0xf]
  %v48 = vld [vmem:[%s1 + $0x4] sm:$0xf]
  %v49 = vld [vmem:[%s1 + $0x8] sm:$0xf]
  %v50 = vld [vmem:[%s1 + $0xc] sm:$0xf]
  %v51 = vld [vmem:[%s2] sm:$0x1]
  %v53 = vlaneseq
  %v54 = vshrl.u32 %v53, 7
  %v55 = vsub.s32 0, %v54
  %v56 = vrot.slane %v51, %v55
  %v60 = vunpack.c.l.b16 %v27
  %v61 = vunpack.c.l.b16 %v28
  %v62 = vpack.c.b16 %v61, %v60
  %v67 = vunpack.c.l.b16 %v47
  %v68 = vunpack.c.l.b16 %v48
  %v69 = vunpack.c.l.b16 %v49
  %v70 = vunpack.c.l.b16 %v50
  %v71 = vpack.c.b16 %v68, %v67
  %v72 = vpack.c.b16 %v70, %v69
  %vm75 = vcmask 261120
  %v77 = vsel %vm75, %v62, 0
  %79 = vmatprep.subr.bf16.mxu0 0
  %80 = vmatpush1.bf16.msra.mxu0 %v71
  %81 = vmatprep.subr.bf16.mxu0 0
  %82 = vmatpush1.bf16.msra.mxu0 %v72
  %83 = vmatprep.subr.bf16.mxu0 0
  %84 = vmatpush1.bf16.msra.mxu0 0
  %85 = vmatprep.subr.bf16.mxu0 0
  %86 = vmatpush1.bf16.msra.mxu0 0
  %87 = vmatprep.subr.bf16.mxu0 0
  %88 = vmatpush1.bf16.msra.mxu0 0
  %89 = vmatprep.subr.bf16.mxu0 0
  %90 = vmatpush1.bf16.msra.mxu0 0
  %91 = vmatprep.subr.bf16.mxu0 0
  %92 = vmatpush1.bf16.msra.mxu0 0
  %93 = vmatprep.subr.bf16.mxu0 0
  %94 = vmatpush1.bf16.msra.mxu0 0
  %95 = vmatprep.subr.bf16.mxu0 0
  %96 = vmatpush1.bf16.msra.mxu0 0
  %97 = vmatprep.subr.bf16.mxu0 0
  %98 = vmatpush1.bf16.msra.mxu0 0
  %99 = vmatprep.subr.bf16.mxu0 0
  %100 = vmatpush1.bf16.msra.mxu0 0
  %101 = vmatprep.subr.bf16.mxu0 0
  %102 = vmatpush1.bf16.msra.mxu0 0
  %103 = vmatprep.subr.bf16.mxu0 0
  %104 = vmatpush1.bf16.msra.mxu0 0
  %105 = vmatprep.subr.bf16.mxu0 0
  %106 = vmatpush1.bf16.msra.mxu0 0
  %107 = vmatprep.subr.bf16.mxu0 0
  %108 = vmatpush1.bf16.msra.mxu0 0
  %109 = vmatprep.subr.bf16.mxu0 0
  %110 = vmatpush1.bf16.msra.mxu0 0
  %111 = vmatprep.mubr.bf16.mxu0 0
  %112 = vmatmul.mubr.bf16.gmra.mrb[0].mxu0 %v77
  %v113 = vpop.f32.mrb[0].mxu0
  %v114 = vadd.f32 %v56, %v113
  %v115 = vpop.f32.mrb[0].mxu0
  %v116 = vpop.f32.mrb[0].mxu0
  %v117 = vadd.f32 %v56, %v116
  %v118 = vpop.f32.mrb[0].mxu0
  %119 = vdwg.mxu0
  %v120 = vmax.f32 %v114, 0.0
  %v121 = vmax.f32 %v117, 0.0
  %v122 = vld [vmem:[#allocation2] sm:$0xff]
  %v123 = vld [vmem:[#allocation2 + $0x8] sm:$0xff]
  %v124 = vpack.c.bf16 %v121, %v120
  %v125 = vld [vmem:[%s3] sm:$0xf]
  %v126 = vld [vmem:[%s3 + $0x4] sm:$0xf]
  %v127 = vld [vmem:[%s3 + $0x8] sm:$0xf]
  %v128 = vld [vmem:[%s3 + $0xc] sm:$0xf]
  %v133 = vunpack.c.l.b16 %v125
  %v134 = vunpack.c.l.b16 %v126
  %v135 = vunpack.c.l.b16 %v127
  %v136 = vunpack.c.l.b16 %v128
  %v137 = vpack.c.b16 %v134, %v133
  %v138 = vpack.c.b16 %v136, %v135
  %v142 = vsel %vm75, %v124, 0
  %144 = vmatprep.subr.bf16.mxu0 0
  %145 = vmatpush1.bf16.msra.mxu0 %v137
  %146 = vmatprep.subr.bf16.mxu0 0
  %147 = vmatpush1.bf16.msra.mxu0 %v138
  %148 = vmatprep.subr.bf16.mxu0 0
  %149 = vmatpush1.bf16.msra.mxu0 0
  %150 = vmatprep.subr.bf16.mxu0 0
  %151 = vmatpush1.bf16.msra.mxu0 0
  %152 = vmatprep.subr.bf16.mxu0 0
  %153 = vmatpush1.bf16.msra.mxu0 0
  %154 = vmatprep.subr.bf16.mxu0 0
  %155 = vmatpush1.bf16.msra.mxu0 0
  %156 = vmatprep.subr.bf16.mxu0 0
  %157 = vmatpush1.bf16.msra.mxu0 0
  %158 = vmatprep.subr.bf16.mxu0 0
  %159 = vmatpush1.bf16.msra.mxu0 0
  %160 = vmatprep.subr.bf16.mxu0 0
  %161 = vmatpush1.bf16.msra.mxu0 0
  %162 = vmatprep.subr.bf16.mxu0 0
  %163 = vmatpush1.bf16.msra.mxu0 0
  %164 = vmatprep.subr.bf16.mxu0 0
  %165 = vmatpush1.bf16.msra.mxu0 0
  %166 = vmatprep.subr.bf16.mxu0 0
  %167 = vmatpush1.bf16.msra.mxu0 0
  %168 = vmatprep.subr.bf16.mxu0 0
  %169 = vmatpush1.bf16.msra.mxu0 0
  %170 = vmatprep.subr.bf16.mxu0 0
  %171 = vmatpush1.bf16.msra.mxu0 0
  %172 = vmatprep.subr.bf16.mxu0 0
  %173 = vmatpush1.bf16.msra.mxu0 0
  %174 = vmatprep.subr.bf16.mxu0 0
  %175 = vmatpush1.bf16.msra.mxu0 0
  %176 = vmatprep.mubr.bf16.mxu0 0
  %177 = vmatmul.mubr.bf16.gmra.mrb[0].mxu0 %v142
  %v178 = vpop.f32.mrb[0].mxu0
  %v179 = vadd.f32 0.0, %v178
  %v180 = vpop.f32.mrb[0].mxu0
  %v181 = vpop.f32.mrb[0].mxu0
  %v182 = vadd.f32 0.0, %v181
  %v183 = vpop.f32.mrb[0].mxu0
  %184 = vdwg.mxu0
  %v185 = vadd.f32 %v122, %v179
  %v186 = vadd.f32 %v123, %v182
  %187 = vst.msk [vmem:[#allocation2] sm:$0xff] %vm75, %v185
  %188 = vst.msk [vmem:[#allocation2 + $0x8] sm:$0xff] %vm75, %v186
  // Predicated region
  $region34: #{trfm_seq2seq_forward.14} parent=0 // pred_check
    %p189 = pneg %p29
  $region35: #{trfm_seq2seq_forward.14} parent=0 // pred_check_branch
    %191 = sbr.rel (%p189) target = $region37
  $region36: #{trfm_seq2seq_forward.14} parent=0 // pred_region
    %v192 = vld [vmem:[#allocation2] sm:$0xff]
    %v193 = vld [vmem:[#allocation2 + $0x8] sm:$0xff]
    %v194 = vsel %vm75, %v192, 0.0
    %195 = vadd.xlane.f32.xlu0 %v194
    %v196 = vpop.xlane.xlu0 %195
    %v197 = vsel %vm75, %v193, 0.0
    %198 = vadd.xlane.f32.xlu0 %v197
    %v199 = vpop.xlane.xlu0 %198
    %v200 = vrcp.pop 32.0
    %v201 = vmul.f32 %v196, %v200
    %v202 = vmul.f32 %v199, %v200
    %v203 = vsub.f32 %v192, %v201
    %v204 = vsub.f32 %v193, %v202
    %v205 = vmul.f32 %v203, %v203
    %v206 = vmul.f32 %v204, %v204
    %v207 = vsel %vm75, %v205, 0.0
    %208 = vadd.xlane.f32.xlu0 %v207
    %v209 = vpop.xlane.xlu0 %208
    %v210 = vsel %vm75, %v206, 0.0
    %211 = vadd.xlane.f32.xlu0 %v210
    %v212 = vpop.xlane.xlu0 %211
    %v213 = vmul.f32 %v209, %v200
    %v214 = vmul.f32 %v212, %v200
    %v215 = vadd.f32 %v213, 1e-05
    %v216 = vadd.f32 %v214, 1e-05
    %v217 = vrsqrt.pop %v215
    %v218 = vrsqrt.pop %v216
    %v219 = vmul.f32 %v203, %v217
    %v220 = vmul.f32 %v204, %v218
    %v221 = vld [vmem:[%s5] sm:$0x1]
    %v223 = vlaneseq
    %v224 = vshrl.u32 %v223, 7
    %v225 = vsub.s32 0, %v224
    %v226 = vrot.slane %v221, %v225
    %v228 = vmul.f32 %v219, %v226
    %v229 = vmul.f32 %v220, %v226
    %v230 = vld [vmem:[%s6] sm:$0x1]
    %v232 = vlaneseq
    %v233 = vshrl.u32 %v232, 7
    %v234 = vsub.s32 0, %v233
    %v235 = vrot.slane %v230, %v234
    %v237 = vadd.f32 %v228, %v235
    %v238 = vadd.f32 %v229, %v235
    %v239 = vpack.c.bf16 %v238, %v237
    %v241 = vunpack.c.l.b16 %v239
    %v242 = vunpack.c.h.b16 %v239
    %v243 = vpack.c.b16 %v241, %v241
    %v244 = vpack.c.b16 %v242, %v242
    %vm247 = vcmask 257024
    %248 = vst.msk [vmem:[%s7] sm:$0xf] %vm247, %v243
    %249 = vst.msk [vmem:[%s7 + $0x4] sm:$0xf] %vm247, %v244
  $region37: #{trfm_seq2seq_forward.14} parent=0 // pred_fallthru
    _
  // Predicated region
  $region38: #{trfm_seq2seq_forward.14} parent=0 // pred_check
    _
  $region39: #{trfm_seq2seq_forward.14} parent=0 // pred_check_branch
    %251 = sbr.rel (0) target = $region41
  $region40: #{trfm_seq2seq_forward.14} parent=0 // pred_region
    _
  $region41: #{trfm_seq2seq_forward.14} parent=0 // pred_fallthru
    _
  // Predicated region
  $region42: #{trfm_seq2seq_forward.14} parent=0 // pred_check
    _
  $region43: #{trfm_seq2seq_forward.14} parent=0 // pred_check_branch
    %253 = sbr.rel (0) target = $region45
  $region44: #{trfm_seq2seq_forward.14} parent=0 // pred_region
    _
  $region45: #{trfm_seq2seq_forward.14} parent=0 // pred_fallthru
    _

// kernel: trfm_seq2seq_forward.13
$region0: #{trfm_seq2seq_forward.13}
  #allocation0 [shape = 'u32[]', space=smem, size = 0x4, offset = 0x4, fixed_abs, tag = 'smem constant byte address 0x4 - core index']
  #allocation1 [shape = 'u32[144,128]{1,0:T(1,128)}', space=vmem, size = 0x12000, scoped, tag = 'internal scratch']
  %s0 = inlined_call_operand.vmem [shape: bf16[2,8,32], index: 0, kind: input, shape index: {}]
  %s1 = inlined_call_operand.vmem [shape: bf16[4,32,8], index: 1, kind: input, shape index: {}]
  %s2 = inlined_call_operand.vmem [shape: bf16[4,32,8], index: 2, kind: input, shape index: {}]
  %s3 = inlined_call_operand.vmem [shape: bf16[4,32,8], index: 3, kind: input, shape index: {}]
  %s4 = inlined_call_operand.vmem [shape: f32[4,1,8], index: 4, kind: input, shape index: {}]
  %s5 = inlined_call_operand.vmem [shape: f32[4,1,8], index: 5, kind: input, shape index: {}]
  %s6 = inlined_call_operand.vmem [shape: f32[4,1,8], index: 6, kind: input, shape index: {}]
  %s7 = inlined_call_operand.vmem [shape: bf16[4,8,32], index: 7, kind: input, shape index: {}]
  %s8 = inlined_call_operand.vmem [shape: f32[1,32], index: 8, kind: input, shape index: {}]
  %s9 = inlined_call_operand.vmem [shape: f32[1,32], index: 9, kind: input, shape index: {}]
  %s10 = inlined_call_operand.vmem [shape: f32[1,32], index: 10, kind: input, shape index: {}]
  %s11 = inlined_call_operand.vmem [shape: bf16[2,8,32], index: 11, kind: output, shape index: {}]
  %s12 = sld [smem:[#allocation0]]
  $region77: #{trfm_seq2seq_forward.13} parent=0
    _
  %s14 = ssub.s32 1, %s12
  %s15 = scalar_select 0, %s14, %s12
  loop: start=0, step=1, limit=4
  $region2: #{trfm_seq2seq_forward.13} parent=0 // loop_pre_header
    _
  $region3: #{trfm_seq2seq_forward.13} parent=0 // loop_header
    %s17 = sphi 0, %s21
    %p18 = scmp.ge.s32.totalorder %s17, 4
    %s27 = sphi 0, %s29
    %s30 = sphi 0, %s27
    %s31 = sphi 0, %s30
    %s47 = sphi 0, %s31
    %s51 = sphi 0, %s51
    %s53 = sphi 0, %s51
    %s54 = sphi 0, %s53
    %s68 = sphi 0, %s54
    %s72 = sphi 0, %s72
    %s74 = sphi 0, %s72
    %s75 = sphi 0, %s74
    %s89 = sphi 0, %s75
    %s93 = sphi 0, %s93
    %s95 = sphi 0, %s93
    %s96 = sphi 0, %s95
    %s110 = sphi 0, %s96
    %s114 = sphi 0, %s114
    %s116 = sphi 0, %s114
    %s117 = sphi 0, %s116
    %s131 = sphi 0, %s117
    %s135 = sphi 0, %s135
    %s137 = sphi 0, %s135
    %s138 = sphi 0, %s137
    %s152 = sphi 0, %s138
    %s156 = sphi 0, %s156
    %s158 = sphi 0, %s156
    %s159 = sphi 0, %s158
    %s173 = sphi 0, %s159
    %s177 = sphi 0, %s177
    %s179 = sphi 0, %s177
    %s180 = sphi 0, %s179
    %s194 = sphi 0, %s180
    %s198 = sphi 0, %s198
    %s200 = sphi 0, %s198
    %s201 = sphi 0, %s200
    %s215 = sphi 0, %s201
    %s219 = sphi 0, %s219
    %s221 = sphi 0, %s219
    %s222 = sphi 0, %s221
    %s236 = sphi 0, %s222
    %s240 = sphi 0, %s240
    %s242 = sphi 0, %s240
    %s243 = sphi 0, %s242
    %s257 = sphi 0, %s243
    %s263 = sphi 0, %s265
    %s266 = sphi 0, %s263
    %s267 = sphi 0, %s266
    %s283 = sphi 0, %s267
  $region4: #{trfm_seq2seq_forward.13} parent=0 // loop_header_branch
    %20 = sbr.rel (%p18) target = $region8
  $region5: #{trfm_seq2seq_forward.13} parent=0 // loop_body
    %s22 = ssub.s32 %s17, 1
    %s23 = ssub.s32 %s17, 2
    %s24 = sadd.s32 %s17, 1
    %s25 = ssub.s32 %s17, %s24
    %p26 = scmp.eq.s32.totalorder %s25, 0
    %s28 = sadd.s32 %s27, 1
    %s29 = scalar_select %p26, %s27, %s28
    %p32 = pneg %p26
    %p33 = scmp.eq.s32.totalorder %s17, 1
    %p34 = por %p32, %p33
    %p35 = scmp.ne.s32.totalorder %s27, %s30
    %p36 = scmp.eq.s32.totalorder %s17, 0
    %p37 = por %p35, %p36
    %p38 = scmp.ne.s32.totalorder %s27, %s30
    %p39 = scmp.eq.s32.totalorder %s22, 1
    %p40 = por %p38, %p39
    %p41 = scmp.ne.s32.totalorder %s30, %s31
    %p42 = scmp.eq.s32.totalorder %s22, 0
    %p43 = por %p41, %p42
    %p44 = scmp.ne.s32.totalorder %s30, %s31
    %p45 = scmp.eq.s32.totalorder %s23, 1
    %p46 = por %p44, %p45
    %p48 = scmp.ne.s32.totalorder %s31, %s47
    %p49 = scmp.eq.s32.totalorder %s23, 0
    %p50 = por %p48, %p49
    %s52 = sadd.s32 %s51, 1
    %p55 = scmp.eq.s32.totalorder %s17, 1
    %p56 = scmp.ne.s32.totalorder %s51, %s53
    %p57 = scmp.eq.s32.totalorder %s17, 0
    %p58 = por %p56, %p57
    %p59 = scmp.ne.s32.totalorder %s51, %s53
    %p60 = scmp.eq.s32.totalorder %s22, 1
    %p61 = por %p59, %p60
    %p62 = scmp.ne.s32.totalorder %s53, %s54
    %p63 = scmp.eq.s32.totalorder %s22, 0
    %p64 = por %p62, %p63
    %p65 = scmp.ne.s32.totalorder %s53, %s54
    %p66 = scmp.eq.s32.totalorder %s23, 1
    %p67 = por %p65, %p66
    %p69 = scmp.ne.s32.totalorder %s54, %s68
    %p70 = scmp.eq.s32.totalorder %s23, 0
    %p71 = por %p69, %p70
    %s73 = sadd.s32 %s72, 1
    %p76 = scmp.eq.s32.totalorder %s17, 1
    %p77 = scmp.ne.s32.totalorder %s72, %s74
    %p78 = scmp.eq.s32.totalorder %s17, 0
    %p79 = por %p77, %p78
    %p80 = scmp.ne.s32.totalorder %s72, %s74
    %p81 = scmp.eq.s32.totalorder %s22, 1
    %p82 = por %p80, %p81
    %p83 = scmp.ne.s32.totalorder %s74, %s75
    %p84 = scmp.eq.s32.totalorder %s22, 0
    %p85 = por %p83, %p84
    %p86 = scmp.ne.s32.totalorder %s74, %s75
    %p87 = scmp.eq.s32.totalorder %s23, 1
    %p88 = por %p86, %p87
    %p90 = scmp.ne.s32.totalorder %s75, %s89
    %p91 = scmp.eq.s32.totalorder %s23, 0
    %p92 = por %p90, %p91
    %s94 = sadd.s32 %s93, 1
    %p97 = scmp.eq.s32.totalorder %s17, 1
    %p98 = scmp.ne.s32.totalorder %s93, %s95
    %p99 = scmp.eq.s32.totalorder %s17, 0
    %p100 = por %p98, %p99
    %p101 = scmp.ne.s32.totalorder %s93, %s95
    %p102 = scmp.eq.s32.totalorder %s22, 1
    %p103 = por %p101, %p102
    %p104 = scmp.ne.s32.totalorder %s95, %s96
    %p105 = scmp.eq.s32.totalorder %s22, 0
    %p106 = por %p104, %p105
    %p107 = scmp.ne.s32.totalorder %s95, %s96
    %p108 = scmp.eq.s32.totalorder %s23, 1
    %p109 = por %p107, %p108
    %p111 = scmp.ne.s32.totalorder %s96, %s110
    %p112 = scmp.eq.s32.totalorder %s23, 0
    %p113 = por %p111, %p112
    %s115 = sadd.s32 %s114, 1
    %p118 = scmp.eq.s32.totalorder %s17, 1
    %p119 = scmp.ne.s32.totalorder %s114, %s116
    %p120 = scmp.eq.s32.totalorder %s17, 0
    %p121 = por %p119, %p120
    %p122 = scmp.ne.s32.totalorder %s114, %s116
    %p123 = scmp.eq.s32.totalorder %s22, 1
    %p124 = por %p122, %p123
    %p125 = scmp.ne.s32.totalorder %s116, %s117
    %p126 = scmp.eq.s32.totalorder %s22, 0
    %p127 = por %p125, %p126
    %p128 = scmp.ne.s32.totalorder %s116, %s117
    %p129 = scmp.eq.s32.totalorder %s23, 1
    %p130 = por %p128, %p129
    %p132 = scmp.ne.s32.totalorder %s117, %s131
    %p133 = scmp.eq.s32.totalorder %s23, 0
    %p134 = por %p132, %p133
    %s136 = sadd.s32 %s135, 1
    %p139 = scmp.eq.s32.totalorder %s17, 1
    %p140 = scmp.ne.s32.totalorder %s135, %s137
    %p141 = scmp.eq.s32.totalorder %s17, 0
    %p142 = por %p140, %p141
    %p143 = scmp.ne.s32.totalorder %s135, %s137
    %p144 = scmp.eq.s32.totalorder %s22, 1
    %p145 = por %p143, %p144
    %p146 = scmp.ne.s32.totalorder %s137, %s138
    %p147 = scmp.eq.s32.totalorder %s22, 0
    %p148 = por %p146, %p147
    %p149 = scmp.ne.s32.totalorder %s137, %s138
    %p150 = scmp.eq.s32.totalorder %s23, 1
    %p151 = por %p149, %p150
    %p153 = scmp.ne.s32.totalorder %s138, %s152
    %p154 = scmp.eq.s32.totalorder %s23, 0
    %p155 = por %p153, %p154
    %s157 = sadd.s32 %s156, 1
    %p160 = scmp.eq.s32.totalorder %s17, 1
    %p161 = scmp.ne.s32.totalorder %s156, %s158
    %p162 = scmp.eq.s32.totalorder %s17, 0
    %p163 = por %p161, %p162
    %p164 = scmp.ne.s32.totalorder %s156, %s158
    %p165 = scmp.eq.s32.totalorder %s22, 1
    %p166 = por %p164, %p165
    %p167 = scmp.ne.s32.totalorder %s158, %s159
    %p168 = scmp.eq.s32.totalorder %s22, 0
    %p169 = por %p167, %p168
    %p170 = scmp.ne.s32.totalorder %s158, %s159
    %p171 = scmp.eq.s32.totalorder %s23, 1
    %p172 = por %p170, %p171
    %p174 = scmp.ne.s32.totalorder %s159, %s173
    %p175 = scmp.eq.s32.totalorder %s23, 0
    %p176 = por %p174, %p175
    %s178 = sadd.s32 %s177, 1
    %p181 = scmp.eq.s32.totalorder %s17, 1
    %p182 = scmp.ne.s32.totalorder %s177, %s179
    %p183 = scmp.eq.s32.totalorder %s17, 0
    %p184 = por %p182, %p183
    %p185 = scmp.ne.s32.totalorder %s177, %s179
    %p186 = scmp.eq.s32.totalorder %s22, 1
    %p187 = por %p185, %p186
    %p188 = scmp.ne.s32.totalorder %s179, %s180
    %p189 = scmp.eq.s32.totalorder %s22, 0
    %p190 = por %p188, %p189
    %p191 = scmp.ne.s32.totalorder %s179, %s180
    %p192 = scmp.eq.s32.totalorder %s23, 1
    %p193 = por %p191, %p192
    %p195 = scmp.ne.s32.totalorder %s180, %s194
    %p196 = scmp.eq.s32.totalorder %s23, 0
    %p197 = por %p195, %p196
    %s199 = sadd.s32 %s198, 1
    %p202 = scmp.eq.s32.totalorder %s17, 1
    %p203 = scmp.ne.s32.totalorder %s198, %s200
    %p204 = scmp.eq.s32.totalorder %s17, 0
    %p205 = por %p203, %p204
    %p206 = scmp.ne.s32.totalorder %s198, %s200
    %p207 = scmp.eq.s32.totalorder %s22, 1
    %p208 = por %p206, %p207
    %p209 = scmp.ne.s32.totalorder %s200, %s201
    %p210 = scmp.eq.s32.totalorder %s22, 0
    %p211 = por %p209, %p210
    %p212 = scmp.ne.s32.totalorder %s200, %s201
    %p213 = scmp.eq.s32.totalorder %s23, 1
    %p214 = por %p212, %p213
    %p216 = scmp.ne.s32.totalorder %s201, %s215
    %p217 = scmp.eq.s32.totalorder %s23, 0
    %p218 = por %p216, %p217
    %s220 = sadd.s32 %s219, 1
    %p223 = scmp.eq.s32.totalorder %s17, 1
    %p224 = scmp.ne.s32.totalorder %s219, %s221
    %p225 = scmp.eq.s32.totalorder %s17, 0
    %p226 = por %p224, %p225
    %p227 = scmp.ne.s32.totalorder %s219, %s221
    %p228 = scmp.eq.s32.totalorder %s22, 1
    %p229 = por %p227, %p228
    %p230 = scmp.ne.s32.totalorder %s221, %s222
    %p231 = scmp.eq.s32.totalorder %s22, 0
    %p232 = por %p230, %p231
    %p233 = scmp.ne.s32.totalorder %s221, %s222
    %p234 = scmp.eq.s32.totalorder %s23, 1
    %p235 = por %p233, %p234
    %p237 = scmp.ne.s32.totalorder %s222, %s236
    %p238 = scmp.eq.s32.totalorder %s23, 0
    %p239 = por %p237, %p238
    %s241 = sadd.s32 %s240, 1
    %p244 = scmp.eq.s32.totalorder %s17, 1
    %p245 = scmp.ne.s32.totalorder %s240, %s242
    %p246 = scmp.eq.s32.totalorder %s17, 0
    %p247 = por %p245, %p246
    %p248 = scmp.ne.s32.totalorder %s240, %s242
    %p249 = scmp.eq.s32.totalorder %s22, 1
    %p250 = por %p248, %p249
    %p251 = scmp.ne.s32.totalorder %s242, %s243
    %p252 = scmp.eq.s32.totalorder %s22, 0
    %p253 = por %p251, %p252
    %p254 = scmp.ne.s32.totalorder %s242, %s243
    %p255 = scmp.eq.s32.totalorder %s23, 1
    %p256 = por %p254, %p255
    %p258 = scmp.ne.s32.totalorder %s243, %s257
    %p259 = scmp.eq.s32.totalorder %s23, 0
    %p260 = por %p258, %p259
    %s261 = ssub.s32 %s17, %s24
    %p262 = scmp.eq.s32.totalorder %s261, 0
    %s264 = sadd.s32 %s263, 1
    %s265 = scalar_select %p262, %s263, %s264
    %p268 = pneg %p262
    %p269 = scmp.eq.s32.totalorder %s17, 1
    %p270 = por %p268, %p269
    %p271 = scmp.ne.s32.totalorder %s263, %s266
    %p272 = scmp.eq.s32.totalorder %s17, 0
    %p273 = por %p271, %p272
    %p274 = scmp.ne.s32.totalorder %s263, %s266
    %p275 = scmp.eq.s32.totalorder %s22, 1
    %p276 = por %p274, %p275
    %p277 = scmp.ne.s32.totalorder %s266, %s267
    %p278 = scmp.eq.s32.totalorder %s22, 0
    %p279 = por %p277, %p278
    %p280 = scmp.ne.s32.totalorder %s266, %s267
    %p281 = scmp.eq.s32.totalorder %s23, 1
    %p282 = por %p280, %p281
    %p284 = scmp.ne.s32.totalorder %s267, %s283
    %p285 = scmp.eq.s32.totalorder %s23, 0
    %p286 = por %p284, %p285
    %p287 = scmp.le.s32.totalorder 1, %s17
    %p288 = scmp.lt.s32.totalorder %s17, 3
    %p289 = pnand %p287, %p288
    %p290 = pneg %p289
    // Predicated region
    $region9: #{trfm_seq2seq_forward.13} parent=5 // pred_check
      _
    $region10: #{trfm_seq2seq_forward.13} parent=5 // pred_check_branch
      %292 = sbr.rel (%p289) target = $region12
    $region11: #{trfm_seq2seq_forward.13} parent=5 // pred_region
      %s293 = ssub.s32 %s17, 1
      // Predicated region
      $region13: #{trfm_seq2seq_forward.13} parent=11 // pred_check
        %p294 = pneg %p64
      $region14: #{trfm_seq2seq_forward.13} parent=11 // pred_check_branch
        %296 = sbr.rel (%p294) target = $region16
      $region15: #{trfm_seq2seq_forward.13} parent=11 // pred_region
        _
      $region16: #{trfm_seq2seq_forward.13} parent=11 // pred_fallthru
        _
      // Predicated region
      $region17: #{trfm_seq2seq_forward.13} parent=11 // pred_check
        %p297 = pneg %p85
      $region18: #{trfm_seq2seq_forward.13} parent=11 // pred_check_branch
        %299 = sbr.rel (%p297) target = $region20
      $region19: #{trfm_seq2seq_forward.13} parent=11 // pred_region
        _
      $region20: #{trfm_seq2seq_forward.13} parent=11 // pred_fallthru
        _
      // Predicated region
      $region21: #{trfm_seq2seq_forward.13} parent=11 // pred_check
        %p300 = pneg %p106
      $region22: #{trfm_seq2seq_forward.13} parent=11 // pred_check_branch
        %302 = sbr.rel (%p300) target = $region24
      $region23: #{trfm_seq2seq_forward.13} parent=11 // pred_region
        _
      $region24: #{trfm_seq2seq_forward.13} parent=11 // pred_fallthru
        _
      // Predicated region
      $region25: #{trfm_seq2seq_forward.13} parent=11 // pred_check
        %p303 = pneg %p127
      $region26: #{trfm_seq2seq_forward.13} parent=11 // pred_check_branch
        %305 = sbr.rel (%p303) target = $region28
      $region27: #{trfm_seq2seq_forward.13} parent=11 // pred_region
        _
      $region28: #{trfm_seq2seq_forward.13} parent=11 // pred_fallthru
        _
      // Predicated region
      $region29: #{trfm_seq2seq_forward.13} parent=11 // pred_check
        %p306 = pneg %p148
      $region30: #{trfm_seq2seq_forward.13} parent=11 // pred_check_branch
        %308 = sbr.rel (%p306) target = $region32
      $region31: #{trfm_seq2seq_forward.13} parent=11 // pred_region
        _
      $region32: #{trfm_seq2seq_forward.13} parent=11 // pred_fallthru
        _
      // Predicated region
      $region33: #{trfm_seq2seq_forward.13} parent=11 // pred_check
        %p309 = pneg %p169
      $region34: #{trfm_seq2seq_forward.13} parent=11 // pred_check_branch
        %311 = sbr.rel (%p309) target = $region36
      $region35: #{trfm_seq2seq_forward.13} parent=11 // pred_region
        _
      $region36: #{trfm_seq2seq_forward.13} parent=11 // pred_fallthru
        _
      // Predicated region
      $region37: #{trfm_seq2seq_forward.13} parent=11 // pred_check
        %p312 = pneg %p190
      $region38: #{trfm_seq2seq_forward.13} parent=11 // pred_check_branch
        %314 = sbr.rel (%p312) target = $region40
      $region39: #{trfm_seq2seq_forward.13} parent=11 // pred_region
        _
      $region40: #{trfm_seq2seq_forward.13} parent=11 // pred_fallthru
        _
      // Predicated region
      $region41: #{trfm_seq2seq_forward.13} parent=11 // pred_check
        %p315 = pneg %p211
      $region42: #{trfm_seq2seq_forward.13} parent=11 // pred_check_branch
        %317 = sbr.rel (%p315) target = $region44
      $region43: #{trfm_seq2seq_forward.13} parent=11 // pred_region
        _
      $region44: #{trfm_seq2seq_forward.13} parent=11 // pred_fallthru
        _
      // Predicated region
      $region45: #{trfm_seq2seq_forward.13} parent=11 // pred_check
        %p318 = pneg %p232
      $region46: #{trfm_seq2seq_forward.13} parent=11 // pred_check_branch
        %320 = sbr.rel (%p318) target = $region48
      $region47: #{trfm_seq2seq_forward.13} parent=11 // pred_region
        _
      $region48: #{trfm_seq2seq_forward.13} parent=11 // pred_fallthru
        _
      // Predicated region
      $region49: #{trfm_seq2seq_forward.13} parent=11 // pred_check
        %p321 = pneg %p253
      $region50: #{trfm_seq2seq_forward.13} parent=11 // pred_check_branch
        %323 = sbr.rel (%p321) target = $region52
      $region51: #{trfm_seq2seq_forward.13} parent=11 // pred_region
        _
      $region52: #{trfm_seq2seq_forward.13} parent=11 // pred_fallthru
        _
    $region12: #{trfm_seq2seq_forward.13} parent=5 // pred_fallthru
      _
    %p324 = scmp.lt.s32.totalorder %s17, 2
    // Predicated region
    $region53: #{trfm_seq2seq_forward.13} parent=5 // pred_check
      %p325 = pneg %p324
    $region54: #{trfm_seq2seq_forward.13} parent=5 // pred_check_branch
      %327 = sbr.rel (%p325) target = $region56
    $region55: #{trfm_seq2seq_forward.13} parent=5 // pred_region
      // Predicated region
      $region57: #{trfm_seq2seq_forward.13} parent=55 // pred_check
        %p328 = pneg %p37
      $region58: #{trfm_seq2seq_forward.13} parent=55 // pred_check_branch
        %330 = sbr.rel (%p328) target = $region60
      $region59: #{trfm_seq2seq_forward.13} parent=55 // pred_region
        %p331 = scmp.lt.s32.totalorder %s17, 1
        %s332 = scalar_select %p331, %s17, 1
        %s333 = smul.addr %s332, 4
        %s334 = scalar_lea.vmem %s0, %s333
      $region60: #{trfm_seq2seq_forward.13} parent=55 // pred_fallthru
        _
    $region56: #{trfm_seq2seq_forward.13} parent=5 // pred_fallthru
      _
    %p335 = scmp.le.s32.totalorder 1, %s17
    %p336 = scmp.lt.s32.totalorder %s17, 3
    %p337 = pnand %p335, %p336
    %p338 = pneg %p337
    // Predicated region
    $region61: #{trfm_seq2seq_forward.13} parent=5 // pred_check
      _
    $region62: #{trfm_seq2seq_forward.13} parent=5 // pred_check_branch
      %340 = sbr.rel (%p337) target = $region64
    $region63: #{trfm_seq2seq_forward.13} parent=5 // pred_region
      %s341 = ssub.s32 %s17, 1
      %p342 = scmp.lt.s32.totalorder %s22, 1
      %s343 = scalar_select %p342, %s22, 1
      %s344 = smul.addr %s343, 4
      %s345 = scalar_lea.vmem %s0, %s344
      %p346 = pneg %p43
      %p347 = pneg %p40
      %p348 = pneg %p64
      %p349 = pneg %p61
      %p350 = pneg %p85
      %p351 = pneg %p82
      %p352 = pneg %p106
      %p353 = pneg %p103
      %p354 = pneg %p127
      %p355 = pneg %p124
      %p356 = pneg %p148
      %p357 = pneg %p145
      %p358 = pneg %p169
      %p359 = pneg %p166
      %p360 = pneg %p190
      %p361 = pneg %p187
      %p362 = pneg %p211
      %p363 = pneg %p208
      %p364 = pneg %p232
      %p365 = pneg %p229
      %p366 = pneg %p253
      %p367 = pneg %p250
      %p368 = pneg %p279
      %p369 = pneg %p276
      %p370 = scmp.lt.s32.totalorder %s22, 1
      %s371 = scalar_select %p370, %s22, 1
      %s372 = smul.addr %s371, 4
      %s373 = scalar_lea.vmem %s11, %s372
      %p374 = scmp.lt.s32.totalorder %s22, 1
      %s375 = scalar_select %p374, %s22, 1
      %s376 = smul.addr %s375, 4
      %s377 = scalar_lea.vmem %s0, %s376
      %p378 = scmp.lt.s32.totalorder %s22, 1
      %s379 = scalar_select %p378, %s22, 1
      %s380 = smul.addr %s379, 4
      %s381 = scalar_lea.vmem %s11, %s380
      %v383 = vld [vmem:[%s377] sm:$0xf]
      %v384 = vld [vmem:[%s8] sm:$0x1]
      %v385 = vunpack.c.l.bf16 %v383
      %v387 = vlaneseq
      %v388 = vshrl.u32 %v387, 7
      %v389 = vsub.s32 0, %v388
      %v390 = vrot.slane %v384, %v389
      %v392 = vadd.f32 %v390, %v385
      %v393 = vld [vmem:[%s1] sm:$0xf]
      %v394 = vld [vmem:[%s1 + $0x4] sm:$0xf]
      %v395 = vld [vmem:[%s1 + $0x8] sm:$0xf]
      %v396 = vld [vmem:[%s1 + $0xc] sm:$0xf]
      %v397 = vld [vmem:[%s4] sm:$0x1]
      %v399 = vlaneseq
      %v400 = vshrl.u32 %v399, 7
      %v401 = vsub.s32 0, %v400
      %v402 = vrot.slane %v397, %v401
      %v408 = vunpack.c.l.b16 %v393
      %v409 = vunpack.c.l.b16 %v394
      %v410 = vunpack.c.l.b16 %v395
      %v411 = vunpack.c.l.b16 %v396
      %v412 = vpack.c.b16 %v409, %v408
      %v413 = vpack.c.b16 %v411, %v410
      %vm416 = vcmask 261120
      %v418 = vsel %vm416, %v383, 0
      %420 = vmatprep.subr.bf16.mxu0 0
      %421 = vmatpush1.bf16.msra.mxu0 %v412
      %422 = vmatprep.subr.bf16.mxu0 0
      %423 = vmatpush1.bf16.msra.mxu0 %v413
      %424 = vmatprep.subr.bf16.mxu0 0
      %425 = vmatpush1.bf16.msra.mxu0 0
      %426 = vmatprep.subr.bf16.mxu0 0
      %427 = vmatpush1.bf16.msra.mxu0 0
      %428 = vmatprep.subr.bf16.mxu0 0
      %429 = vmatpush1.bf16.msra.mxu0 0
      %430 = vmatprep.subr.bf16.mxu0 0
      %431 = vmatpush1.bf16.msra.mxu0 0
      %432 = vmatprep.subr.bf16.mxu0 0
      %433 = vmatpush1.bf16.msra.mxu0 0
      %434 = vmatprep.subr.bf16.mxu0 0
      %435 = vmatpush1.bf16.msra.mxu0 0
      %436 = vmatprep.subr.bf16.mxu0 0
      %437 = vmatpush1.bf16.msra.mxu0 0
      %438 = vmatprep.subr.bf16.mxu0 0
      %439 = vmatpush1.bf16.msra.mxu0 0
      %440 = vmatprep.subr.bf16.mxu0 0
      %441 = vmatpush1.bf16.msra.mxu0 0
      %442 = vmatprep.subr.bf16.mxu0 0
      %443 = vmatpush1.bf16.msra.mxu0 0
      %444 = vmatprep.subr.bf16.mxu0 0
      %445 = vmatpush1.bf16.msra.mxu0 0
      %446 = vmatprep.subr.bf16.mxu0 0
      %447 = vmatpush1.bf16.msra.mxu0 0
      %448 = vmatprep.subr.bf16.mxu0 0
      %449 = vmatpush1.bf16.msra.mxu0 0
      %450 = vmatprep.subr.bf16.mxu0 0
      %451 = vmatpush1.bf16.msra.mxu0 0
      %452 = vmatprep.mubr.bf16.mxu0 0
      %453 = vmatmul.mubr.bf16.gmra.mrb[0].mxu0 %v418
      %v454 = vpop.f32.mrb[0].mxu0
      %v455 = vadd.f32 %v402, %v454
      %v456 = vpop.f32.mrb[0].mxu0
      %v457 = vpop.f32.mrb[0].mxu0
      %v458 = vpop.f32.mrb[0].mxu0
      %459 = vdwg.mxu0
      %v460 = vld [vmem:[%s2] sm:$0xf]
      %v461 = vld [vmem:[%s2 + $0x4] sm:$0xf]
      %v462 = vld [vmem:[%s2 + $0x8] sm:$0xf]
      %v463 = vld [vmem:[%s2 + $0xc] sm:$0xf]
      %v464 = vld [vmem:[%s5] sm:$0x1]
      %v466 = vlaneseq
      %v467 = vshrl.u32 %v466, 7
      %v468 = vsub.s32 0, %v467
      %v469 = vrot.slane %v464, %v468
      %v475 = vunpack.c.l.b16 %v460
      %v476 = vunpack.c.l.b16 %v461
      %v477 = vunpack.c.l.b16 %v462
      %v478 = vunpack.c.l.b16 %v463
      %v479 = vpack.c.b16 %v476, %v475
      %v480 = vpack.c.b16 %v478, %v477
      %483 = vmatprep.subr.bf16.mxu0 0
      %484 = vmatpush1.bf16.msra.mxu0 %v479
      %485 = vmatprep.subr.bf16.mxu0 0
      %486 = vmatpush1.bf16.msra.mxu0 %v480
      %487 = vmatprep.subr.bf16.mxu0 0
      %488 = vmatpush1.bf16.msra.mxu0 0
      %489 = vmatprep.subr.bf16.mxu0 0
      %490 = vmatpush1.bf16.msra.mxu0 0
      %491 = vmatprep.subr.bf16.mxu0 0
      %492 = vmatpush1.bf16.msra.mxu0 0
      %493 = vmatprep.subr.bf16.mxu0 0
      %494 = vmatpush1.bf16.msra.mxu0 0
      %495 = vmatprep.subr.bf16.mxu0 0
      %496 = vmatpush1.bf16.msra.mxu0 0
      %497 = vmatprep.subr.bf16.mxu0 0
      %498 = vmatpush1.bf16.msra.mxu0 0
      %499 = vmatprep.subr.bf16.mxu0 0
      %500 = vmatpush1.bf16.msra.mxu0 0
      %501 = vmatprep.subr.bf16.mxu0 0
      %502 = vmatpush1.bf16.msra.mxu0 0
      %503 = vmatprep.subr.bf16.mxu0 0
      %504 = vmatpush1.bf16.msra.mxu0 0
      %505 = vmatprep.subr.bf16.mxu0 0
      %506 = vmatpush1.bf16.msra.mxu0 0
      %507 = vmatprep.subr.bf16.mxu0 0
      %508 = vmatpush1.bf16.msra.mxu0 0
      %509 = vmatprep.subr.bf16.mxu0 0
      %510 = vmatpush1.bf16.msra.mxu0 0
      %511 = vmatprep.subr.bf16.mxu0 0
      %512 = vmatpush1.bf16.msra.mxu0 0
      %513 = vmatprep.subr.bf16.mxu0 0
      %514 = vmatpush1.bf16.msra.mxu0 0
      %515 = vmatprep.mubr.bf16.mxu0 0
      %516 = vmatmul.mubr.bf16.gmra.mrb[0].mxu0 %v418
      %v517 = vpop.f32.mrb[0].mxu0
      %v518 = vadd.f32 %v469, %v517
      %v519 = vpop.f32.mrb[0].mxu0
      %v520 = vpop.f32.mrb[0].mxu0
      %v521 = vpop.f32.mrb[0].mxu0
      %522 = vdwg.mxu0
      %v523 = vld [vmem:[%s3] sm:$0xf]
      %v524 = vld [vmem:[%s3 + $0x4] sm:$0xf]
      %v525 = vld [vmem:[%s3 + $0x8] sm:$0xf]
      %v526 = vld [vmem:[%s3 + $0xc] sm:$0xf]
      %v527 = vld [vmem:[%s6] sm:$0x1]
      %v529 = vlaneseq
      %v530 = vshrl.u32 %v529, 7
      %v531 = vsub.s32 0, %v530
      %v532 = vrot.slane %v527, %v531
      %v538 = vunpack.c.l.b16 %v523
      %v539 = vunpack.c.l.b16 %v524
      %v540 = vunpack.c.l.b16 %v525
      %v541 = vunpack.c.l.b16 %v526
      %v542 = vpack.c.b16 %v539, %v538
      %v543 = vpack.c.b16 %v541, %v540
      %546 = vmatprep.subr.bf16.mxu0 0
      %547 = vmatpush1.bf16.msra.mxu0 %v542
      %548 = vmatprep.subr.bf16.mxu0 0
      %549 = vmatpush1.bf16.msra.mxu0 %v543
      %550 = vmatprep.subr.bf16.mxu0 0
      %551 = vmatpush1.bf16.msra.mxu0 0
      %552 = vmatprep.subr.bf16.mxu0 0
      %553 = vmatpush1.bf16.msra.mxu0 0
      %554 = vmatprep.subr.bf16.mxu0 0
      %555 = vmatpush1.bf16.msra.mxu0 0
      %556 = vmatprep.subr.bf16.mxu0 0
      %557 = vmatpush1.bf16.msra.mxu0 0
      %558 = vmatprep.subr.bf16.mxu0 0
      %559 = vmatpush1.bf16.msra.mxu0 0
      %560 = vmatprep.subr.bf16.mxu0 0
      %561 = vmatpush1.bf16.msra.mxu0 0
      %562 = vmatprep.subr.bf16.mxu0 0
      %563 = vmatpush1.bf16.msra.mxu0 0
      %564 = vmatprep.subr.bf16.mxu0 0
      %565 = vmatpush1.bf16.msra.mxu0 0
      %566 = vmatprep.subr.bf16.mxu0 0
      %567 = vmatpush1.bf16.msra.mxu0 0
      %568 = vmatprep.subr.bf16.mxu0 0
      %569 = vmatpush1.bf16.msra.mxu0 0
      %570 = vmatprep.subr.bf16.mxu0 0
      %571 = vmatpush1.bf16.msra.mxu0 0
      %572 = vmatprep.subr.bf16.mxu0 0
      %573 = vmatpush1.bf16.msra.mxu0 0
      %574 = vmatprep.subr.bf16.mxu0 0
      %575 = vmatpush1.bf16.msra.mxu0 0
      %576 = vmatprep.subr.bf16.mxu0 0
      %577 = vmatpush1.bf16.msra.mxu0 0
      %578 = vmatprep.mubr.bf16.mxu0 0
      %579 = vmatmul.mubr.bf16.gmra.mrb[0].mxu0 %v418
      %v580 = vpop.f32.mrb[0].mxu0
      %v581 = vadd.f32 %v532, %v580
      %v582 = vpop.f32.mrb[0].mxu0
      %v583 = vpop.f32.mrb[0].mxu0
      %v584 = vpop.f32.mrb[0].mxu0
      %585 = vdwg.mxu0
      %v586 = vpack.c.bf16 %v455, %v455
      %v587 = vpack.c.bf16 %v518, %v518
      %vm588 = vcmask 64512
      %v590 = vsel %vm588, %v586, 0
      %v593 = vsel %vm588, %v587, 0
      %595 = vmatprep.subr.bf16.mxu0 0
      %596 = vmatpush1.bf16.xpose.msra.mxu0 %v593
      %597 = vmatprep.subr.bf16.mxu0 0
      %598 = vmatpush1.bf16.xpose.msra.mxu0 0
      %599 = vmatprep.subr.bf16.mxu0 0
      %600 = vmatpush1.bf16.xpose.msra.mxu0 0
      %601 = vmatprep.subr.bf16.mxu0 0
      %602 = vmatpush1.bf16.xpose.msra.mxu0 0
      %603 = vmatprep.subr.bf16.mxu0 0
      %604 = vmatpush1.bf16.xpose.msra.mxu0 0
      %605 = vmatprep.subr.bf16.mxu0 0
      %606 = vmatpush1.bf16.xpose.msra.mxu0 0
      %607 = vmatprep.subr.bf16.mxu0 0
      %608 = vmatpush1.bf16.xpose.msra.mxu0 0
      %609 = vmatprep.subr.bf16.mxu0 0
      %610 = vmatpush1.bf16.xpose.msra.mxu0 0
      %611 = vmatprep.subr.bf16.mxu0 0
      %612 = vmatpush1.bf16.xpose.msra.mxu0 0
      %613 = vmatprep.subr.bf16.mxu0 0
      %614 = vmatpush1.bf16.xpose.msra.mxu0 0
      %615 = vmatprep.subr.bf16.mxu0 0
      %616 = vmatpush1.bf16.xpose.msra.mxu0 0
      %617 = vmatprep.subr.bf16.mxu0 0
      %618 = vmatpush1.bf16.xpose.msra.mxu0 0
      %619 = vmatprep.subr.bf16.mxu0 0
      %620 = vmatpush1.bf16.xpose.msra.mxu0 0
      %621 = vmatprep.subr.bf16.mxu0 0
      %622 = vmatpush1.bf16.xpose.msra.mxu0 0
      %623 = vmatprep.subr.bf16.mxu0 0
      %624 = vmatpush1.bf16.xpose.msra.mxu0 0
      %625 = vmatprep.subr.bf16.mxu0 0
      %626 = vmatpush1.bf16.xpose.msra.mxu0 0
      %627 = vmatprep.mubr.bf16.mxu0 0
      %628 = vmatmul.mubr.bf16.gmra.mrb[0].mxu0 %v590
      %v629 = vpop.f32.mrb[0].mxu0
      %v630 = vadd.f32 0.0, %v629
      %v631 = vpop.f32.mrb[0].mxu0
      %v632 = vpop.f32.mrb[0].mxu0
      %v633 = vpop.f32.mrb[0].mxu0
      %634 = vdwg.mxu0
      %v635 = vmul.f32 %v630, 0.35355338
      %v636 = vsel %vm588, %v635, -inf
      %637 = vmax.xlane.f32.xlu0 %v636
      %v638 = vpop.xlane.xlu0 %637
      %v639 = vsub.f32 %v635, %v638
      %v640 = vmul.f32 %v639, 1.442695
      %v641 = vpow.pop %v640
      %v642 = vsel %vm588, %v641, 0.0
      %643 = vadd.xlane.f32.xlu0 %v642
      %v644 = vpop.xlane.xlu0 %643
      %v645 = vrcp.pop %v644
      %v646 = vmul.f32 %v641, %v645
      %v647 = vpack.c.bf16 %v646, %v646
      %v648 = vpack.c.bf16 %v581, %v581
      %v650 = vsel %vm588, %v647, 0
      %vm652 = vcmask 1043456
      %v654 = vsel %vm652, %v648, 0
      %656 = vmatprep.subr.bf16.mxu0 0
      %657 = vmatpush1.bf16.msra.mxu0 %v654
      %658 = vmatprep.subr.bf16.mxu0 0
      %659 = vmatpush1.bf16.msra.mxu0 0
      %660 = vmatprep.subr.bf16.mxu0 0
      %661 = vmatpush1.bf16.msra.mxu0 0
      %662 = vmatprep.subr.bf16.mxu0 0
      %663 = vmatpush1.bf16.msra.mxu0 0
      %664 = vmatprep.subr.bf16.mxu0 0
      %665 = vmatpush1.bf16.msra.mxu0 0
      %666 = vmatprep.subr.bf16.mxu0 0
      %667 = vmatpush1.bf16.msra.mxu0 0
      %668 = vmatprep.subr.bf16.mxu0 0
      %669 = vmatpush1.bf16.msra.mxu0 0
      %670 = vmatprep.subr.bf16.mxu0 0
      %671 = vmatpush1.bf16.msra.mxu0 0
      %672 = vmatprep.subr.bf16.mxu0 0
      %673 = vmatpush1.bf16.msra.mxu0 0
      %674 = vmatprep.subr.bf16.mxu0 0
      %675 = vmatpush1.bf16.msra.mxu0 0
      %676 = vmatprep.subr.bf16.mxu0 0
      %677 = vmatpush1.bf16.msra.mxu0 0
      %678 = vmatprep.subr.bf16.mxu0 0
      %679 = vmatpush1.bf16.msra.mxu0 0
      %680 = vmatprep.subr.bf16.mxu0 0
      %681 = vmatpush1.bf16.msra.mxu0 0
      %682 = vmatprep.subr.bf16.mxu0 0
      %683 = vmatpush1.bf16.msra.mxu0 0
      %684 = vmatprep.subr.bf16.mxu0 0
      %685 = vmatpush1.bf16.msra.mxu0 0
      %686 = vmatprep.subr.bf16.mxu0 0
      %687 = vmatpush1.bf16.msra.mxu0 0
      %688 = vmatprep.mubr.bf16.mxu0 0
      %689 = vmatmul.mubr.bf16.gmra.mrb[0].mxu0 %v650
      %v690 = vpop.f32.mrb[0].mxu0
      %v691 = vadd.f32 0.0, %v690
      %v692 = vpop.f32.mrb[0].mxu0
      %v693 = vpop.f32.mrb[0].mxu0
      %v694 = vpop.f32.mrb[0].mxu0
      %695 = vdwg.mxu0
      %v696 = vpack.c.bf16 %v691, %v691
      %v697 = vld [vmem:[%s7] sm:$0xf]
      %v699 = vsel %vm588, %v696, 0
      %v702 = vsel %vm652, %v697, 0
      %704 = vmatprep.subr.bf16.mxu0 0
      %705 = vmatpush1.bf16.msra.mxu0 %v702
      %706 = vmatprep.subr.bf16.mxu0 0
      %707 = vmatpush1.bf16.msra.mxu0 0
      %708 = vmatprep.subr.bf16.mxu0 0
      %709 = vmatpush1.bf16.msra.mxu0 0
      %710 = vmatprep.subr.bf16.mxu0 0
      %711 = vmatpush1.bf16.msra.mxu0 0
      %712 = vmatprep.subr.bf16.mxu0 0
      %713 = vmatpush1.bf16.msra.mxu0 0
      %714 = vmatprep.subr.bf16.mxu0 0
      %715 = vmatpush1.bf16.msra.mxu0 0
      %716 = vmatprep.subr.bf16.mxu0 0
      %717 = vmatpush1.bf16.msra.mxu0 0
      %718 = vmatprep.subr.bf16.mxu0 0
      %719 = vmatpush1.bf16.msra.mxu0 0
      %720 = vmatprep.subr.bf16.mxu0 0
      %721 = vmatpush1.bf16.msra.mxu0 0
      %722 = vmatprep.subr.bf16.mxu0 0
      %723 = vmatpush1.bf16.msra.mxu0 0
      %724 = vmatprep.subr.bf16.mxu0 0
      %725 = vmatpush1.bf16.msra.mxu0 0
      %726 = vmatprep.subr.bf16.mxu0 0
      %727 = vmatpush1.bf16.msra.mxu0 0
      %728 = vmatprep.subr.bf16.mxu0 0
      %729 = vmatpush1.bf16.msra.mxu0 0
      %730 = vmatprep.subr.bf16.mxu0 0
      %731 = vmatpush1.bf16.msra.mxu0 0
      %732 = vmatprep.subr.bf16.mxu0 0
      %733 = vmatpush1.bf16.msra.mxu0 0
      %734 = vmatprep.subr.bf16.mxu0 0
      %735 = vmatpush1.bf16.msra.mxu0 0
      %736 = vmatprep.mubr.bf16.mxu0 0
      %737 = vmatmul.mubr.bf16.gmra.mrb[0].mxu0 %v699
      %v738 = vpop.f32.mrb[0].mxu0
      %v739 = vadd.f32 0.0, %v738
      %v740 = vpop.f32.mrb[0].mxu0
      %v741 = vpop.f32.mrb[0].mxu0
      %v742 = vpop.f32.mrb[0].mxu0
      %743 = vdwg.mxu0
      %v744 = vadd.f32 %v392, %v739
      %s745 = scalar_lea.vmem %s1, 16
      %v746 = vld [vmem:[%s745] sm:$0xf]
      %v747 = vld [vmem:[%s745 + $0x4] sm:$0xf]
      %v748 = vld [vmem:[%s745 + $0x8] sm:$0xf]
      %v749 = vld [vmem:[%s745 + $0xc] sm:$0xf]
      %s750 = scalar_lea.vmem %s4, 1
      %v751 = vld [vmem:[%s750] sm:$0x1]
      %v753 = vlaneseq
      %v754 = vshrl.u32 %v753, 7
      %v755 = vsub.s32 0, %v754
      %v756 = vrot.slane %v751, %v755
      %v762 = vunpack.c.l.b16 %v746
      %v763 = vunpack.c.l.b16 %v747
      %v764 = vunpack.c.l.b16 %v748
      %v765 = vunpack.c.l.b16 %v749
      %v766 = vpack.c.b16 %v763, %v762
      %v767 = vpack.c.b16 %v765, %v764
      %770 = vmatprep.subr.bf16.mxu0 0
      %771 = vmatpush1.bf16.msra.mxu0 %v766
      %772 = vmatprep.subr.bf16.mxu0 0
      %773 = vmatpush1.bf16.msra.mxu0 %v767
      %774 = vmatprep.subr.bf16.mxu0 0
      %775 = vmatpush1.bf16.msra.mxu0 0
      %776 = vmatprep.subr.bf16.mxu0 0
      %777 = vmatpush1.bf16.msra.mxu0 0
      %778 = vmatprep.subr.bf16.mxu0 0
      %779 = vmatpush1.bf16.msra.mxu0 0
      %780 = vmatprep.subr.bf16.mxu0 0
      %781 = vmatpush1.bf16.msra.mxu0 0
      %782 = vmatprep.subr.bf16.mxu0 0
      %783 = vmatpush1.bf16.msra.mxu0 0
      %784 = vmatprep.subr.bf16.mxu0 0
      %785 = vmatpush1.bf16.msra.mxu0 0
      %786 = vmatprep.subr.bf16.mxu0 0
      %787 = vmatpush1.bf16.msra.mxu0 0
      %788 = vmatprep.subr.bf16.mxu0 0
      %789 = vmatpush1.bf16.msra.mxu0 0
      %790 = vmatprep.subr.bf16.mxu0 0
      %791 = vmatpush1.bf16.msra.mxu0 0
      %792 = vmatprep.subr.bf16.mxu0 0
      %793 = vmatpush1.bf16.msra.mxu0 0
      %794 = vmatprep.subr.bf16.mxu0 0
      %795 = vmatpush1.bf16.msra.mxu0 0
      %796 = vmatprep.subr.bf16.mxu0 0
      %797 = vmatpush1.bf16.msra.mxu0 0
      %798 = vmatprep.subr.bf16.mxu0 0
      %799 = vmatpush1.bf16.msra.mxu0 0
      %800 = vmatprep.subr.bf16.mxu0 0
      %801 = vmatpush1.bf16.msra.mxu0 0
      %802 = vmatprep.mubr.bf16.mxu0 0
      %803 = vmatmul.mubr.bf16.gmra.mrb[0].mxu0 %v418
      %v804 = vpop.f32.mrb[0].mxu0
      %v805 = vadd.f32 %v756, %v804
      %v806 = vpop.f32.mrb[0].mxu0
      %v807 = vpop.f32.mrb[0].mxu0
      %v808 = vpop.f32.mrb[0].mxu0
      %809 = vdwg.mxu0
      %s810 = scalar_lea.vmem %s2, 16
      %v811 = vld [vmem:[%s810] sm:$0xf]
      %v812 = vld [vmem:[%s810 + $0x4] sm:$0xf]
      %v813 = vld [vmem:[%s810 + $0x8] sm:$0xf]
      %v814 = vld [vmem:[%s810 + $0xc] sm:$0xf]
      %s815 = scalar_lea.vmem %s5, 1
      %v816 = vld [vmem:[%s815] sm:$0x1]
      %v818 = vlaneseq
      %v819 = vshrl.u32 %v818, 7
      %v820 = vsub.s32 0, %v819
      %v821 = vrot.slane %v816, %v820
      %v827 = vunpack.c.l.b16 %v811
      %v828 = vunpack.c.l.b16 %v812
      %v829 = vunpack.c.l.b16 %v813
      %v830 = vunpack.c.l.b16 %v814
      %v831 = vpack.c.b16 %v828, %v827
      %v832 = vpack.c.b16 %v830, %v829
      %835 = vmatprep.subr.bf16.mxu0 0
      %836 = vmatpush1.bf16.msra.mxu0 %v831
      %837 = vmatprep.subr.bf16.mxu0 0
      %838 = vmatpush1.bf16.msra.mxu0 %v832
      %839 = vmatprep.subr.bf16.mxu0 0
      %840 = vmatpush1.bf16.msra.mxu0 0
      %841 = vmatprep.subr.bf16.mxu0 0
      %842 = vmatpush1.bf16.msra.mxu0 0
      %843 = vmatprep.subr.bf16.mxu0 0
      %844 = vmatpush1.bf16.msra.mxu0 0
      %845 = vmatprep.subr.bf16.mxu0 0
      %846 = vmatpush1.bf16.msra.mxu0 0
      %847 = vmatprep.subr.bf16.mxu0 0
      %848 = vmatpush1.bf16.msra.mxu0 0
      %849 = vmatprep.subr.bf16.mxu0 0
      %850 = vmatpush1.bf16.msra.mxu0 0
      %851 = vmatprep.subr.bf16.mxu0 0
      %852 = vmatpush1.bf16.msra.mxu0 0
      %853 = vmatprep.subr.bf16.mxu0 0
      %854 = vmatpush1.bf16.msra.mxu0 0
      %855 = vmatprep.subr.bf16.mxu0 0
      %856 = vmatpush1.bf16.msra.mxu0 0
      %857 = vmatprep.subr.bf16.mxu0 0
      %858 = vmatpush1.bf16.msra.mxu0 0
      %859 = vmatprep.subr.bf16.mxu0 0
      %860 = vmatpush1.bf16.msra.mxu0 0
      %861 = vmatprep.subr.bf16.mxu0 0
      %862 = vmatpush1.bf16.msra.mxu0 0
      %863 = vmatprep.subr.bf16.mxu0 0
      %864 = vmatpush1.bf16.msra.mxu0 0
      %865 = vmatprep.subr.bf16.mxu0 0
      %866 = vmatpush1.bf16.msra.mxu0 0
      %867 = vmatprep.mubr.bf16.mxu0 0
      %868 = vmatmul.mubr.bf16.gmra.mrb[0].mxu0 %v418
      %v869 = vpop.f32.mrb[0].mxu0
      %v870 = vadd.f32 %v821, %v869
      %v871 = vpop.f32.mrb[0].mxu0
      %v872 = vpop.f32.mrb[0].mxu0
      %v873 = vpop.f32.mrb[0].mxu0
      %874 = vdwg.mxu0
      %s875 = scalar_lea.vmem %s3, 16
      %v876 = vld [vmem:[%s875] sm:$0xf]
      %v877 = vld [vmem:[%s875 + $0x4] sm:$0xf]
      %v878 = vld [vmem:[%s875 + $0x8] sm:$0xf]
      %v879 = vld [vmem:[%s875 + $0xc] sm:$0xf]
      %s880 = scalar_lea.vmem %s6, 1
      %v881 = vld [vmem:[%s880] sm:$0x1]
      %v883 = vlaneseq
      %v884 = vshrl.u32 %v883, 7
      %v885 = vsub.s32 0, %v884
      %v886 = vrot.slane %v881, %v885
      %v892 = vunpack.c.l.b16 %v876
      %v893 = vunpack.c.l.b16 %v877
      %v894 = vunpack.c.l.b16 %v878
      %v895 = vunpack.c.l.b16 %v879
      %v896 = vpack.c.b16 %v893, %v892
      %v897 = vpack.c.b16 %v895, %v894
      %900 = vmatprep.subr.bf16.mxu0 0
      %901 = vmatpush1.bf16.msra.mxu0 %v896
      %902 = vmatprep.subr.bf16.mxu0 0
      %903 = vmatpush1.bf16.msra.mxu0 %v897
      %904 = vmatprep.subr.bf16.mxu0 0
      %905 = vmatpush1.bf16.msra.mxu0 0
      %906 = vmatprep.subr.bf16.mxu0 0
      %907 = vmatpush1.bf16.msra.mxu0 0
      %908 = vmatprep.subr.bf16.mxu0 0
      %909 = vmatpush1.bf16.msra.mxu0 0
      %910 = vmatprep.subr.bf16.mxu0 0
      %911 = vmatpush1.bf16.msra.mxu0 0
      %912 = vmatprep.subr.bf16.mxu0 0
      %913 = vmatpush1.bf16.msra.mxu0 0
      %914 = vmatprep.subr.bf16.mxu0 0
      %915 = vmatpush1.bf16.msra.mxu0 0
      %916 = vmatprep.subr.bf16.mxu0 0
      %917 = vmatpush1.bf16.msra.mxu0 0
      %918 = vmatprep.subr.bf16.mxu0 0
      %919 = vmatpush1.bf16.msra.mxu0 0
      %920 = vmatprep.subr.bf16.mxu0 0
      %921 = vmatpush1.bf16.msra.mxu0 0
      %922 = vmatprep.subr.bf16.mxu0 0
      %923 = vmatpush1.bf16.msra.mxu0 0
      %924 = vmatprep.subr.bf16.mxu0 0
      %925 = vmatpush1.bf16.msra.mxu0 0
      %926 = vmatprep.subr.bf16.mxu0 0
      %927 = vmatpush1.bf16.msra.mxu0 0
      %928 = vmatprep.subr.bf16.mxu0 0
      %929 = vmatpush1.bf16.msra.mxu0 0
      %930 = vmatprep.subr.bf16.mxu0 0
      %931 = vmatpush1.bf16.msra.mxu0 0
      %932 = vmatprep.mubr.bf16.mxu0 0
      %933 = vmatmul.mubr.bf16.gmra.mrb[0].mxu0 %v418
      %v934 = vpop.f32.mrb[0].mxu0
      %v935 = vadd.f32 %v886, %v934
      %v936 = vpop.f32.mrb[0].mxu0
      %v937 = vpop.f32.mrb[0].mxu0
      %v938 = vpop.f32.mrb[0].mxu0
      %939 = vdwg.mxu0
      %v940 = vpack.c.bf16 %v805, %v805
      %v941 = vpack.c.bf16 %v870, %v870
      %v943 = vsel %vm588, %v940, 0
      %v946 = vsel %vm588, %v941, 0
      %948 = vmatprep.subr.bf16.mxu0 0
      %949 = vmatpush1.bf16.xpose.msra.mxu0 %v946
      %950 = vmatprep.subr.bf16.mxu0 0
      %951 = vmatpush1.bf16.xpose.msra.mxu0 0
      %952 = vmatprep.subr.bf16.mxu0 0
      %953 = vmatpush1.bf16.xpose.msra.mxu0 0
      %954 = vmatprep.subr.bf16.mxu0 0
      %955 = vmatpush1.bf16.xpose.msra.mxu0 0
      %956 = vmatprep.subr.bf16.mxu0 0
      %957 = vmatpush1.bf16.xpose.msra.mxu0 0
      %958 = vmatprep.subr.bf16.mxu0 0
      %959 = vmatpush1.bf16.xpose.msra.mxu0 0
      %960 = vmatprep.subr.bf16.mxu0 0
      %961 = vmatpush1.bf16.xpose.msra.mxu0 0
      %962 = vmatprep.subr.bf16.mxu0 0
      %963 = vmatpush1.bf16.xpose.msra.mxu0 0
      %964 = vmatprep.subr.bf16.mxu0 0
      %965 = vmatpush1.bf16.xpose.msra.mxu0 0
      %966 = vmatprep.subr.bf16.mxu0 0
      %967 = vmatpush1.bf16.xpose.msra.mxu0 0
      %968 = vmatprep.subr.bf16.mxu0 0
      %969 = vmatpush1.bf16.xpose.msra.mxu0 0
      %970 = vmatprep.subr.bf16.mxu0 0
      %971 = vmatpush1.bf16.xpose.msra.mxu0 0
      %972 = vmatprep.subr.bf16.mxu0 0
      %973 = vmatpush1.bf16.xpose.msra.mxu0 0
      %974 = vmatprep.subr.bf16.mxu0 0
      %975 = vmatpush1.bf16.xpose.msra.mxu0 0
      %976 = vmatprep.subr.bf16.mxu0 0
      %977 = vmatpush1.bf16.xpose.msra.mxu0 0
      %978 = vmatprep.subr.bf16.mxu0 0
      %979 = vmatpush1.bf16.xpose.msra.mxu0 0
      %980 = vmatprep.mubr.bf16.mxu0 0
      %981 = vmatmul.mubr.bf16.gmra.mrb[0].mxu0 %v943
      %v982 = vpop.f32.mrb[0].mxu0
      %v983 = vadd.f32 0.0, %v982
      %v984 = vpop.f32.mrb[0].mxu0
      %v985 = vpop.f32.mrb[0].mxu0
      %v986 = vpop.f32.mrb[0].mxu0
      %987 = vdwg.mxu0
      %v988 = vmul.f32 %v983, 0.35355338
      %v989 = vsel %vm588, %v988, -inf
      %990 = vmax.xlane.f32.xlu0 %v989
      %v991 = vpop.xlane.xlu0 %990
      %v992 = vsub.f32 %v988, %v991
      %v993 = vmul.f32 %v992, 1.442695
      %v994 = vpow.pop %v993
      %v995 = vsel %vm588, %v994, 0.0
      %996 = vadd.xlane.f32.xlu0 %v995
      %v997 = vpop.xlane.xlu0 %996
      %v998 = vrcp.pop %v997
      %v999 = vmul.f32 %v994, %v998
      %v1000 = vpack.c.bf16 %v999, %v999
      %v1001 = vpack.c.bf16 %v935, %v935
      %v1003 = vsel %vm588, %v1000, 0
      %v1006 = vsel %vm652, %v1001, 0
      %1008 = vmatprep.subr.bf16.mxu0 0
      %1009 = vmatpush1.bf16.msra.mxu0 %v1006
      %1010 = vmatprep.subr.bf16.mxu0 0
      %1011 = vmatpush1.bf16.msra.mxu0 0
      %1012 = vmatprep.subr.bf16.mxu0 0
      %1013 = vmatpush1.bf16.msra.mxu0 0
      %1014 = vmatprep.subr.bf16.mxu0 0
      %1015 = vmatpush1.bf16.msra.mxu0 0
      %1016 = vmatprep.subr.bf16.mxu0 0
      %1017 = vmatpush1.bf16.msra.mxu0 0
      %1018 = vmatprep.subr.bf16.mxu0 0
      %1019 = vmatpush1.bf16.msra.mxu0 0
      %1020 = vmatprep.subr.bf16.mxu0 0
      %1021 = vmatpush1.bf16.msra.mxu0 0
      %1022 = vmatprep.subr.bf16.mxu0 0
      %1023 = vmatpush1.bf16.msra.mxu0 0
      %1024 = vmatprep.subr.bf16.mxu0 0
      %1025 = vmatpush1.bf16.msra.mxu0 0
      %1026 = vmatprep.subr.bf16.mxu0 0
      %1027 = vmatpush1.bf16.msra.mxu0 0
      %1028 = vmatprep.subr.bf16.mxu0 0
      %1029 = vmatpush1.bf16.msra.mxu0 0
      %1030 = vmatprep.subr.bf16.mxu0 0
      %1031 = vmatpush1.bf16.msra.mxu0 0
      %1032 = vmatprep.subr.bf16.mxu0 0
      %1033 = vmatpush1.bf16.msra.mxu0 0
      %1034 = vmatprep.subr.bf16.mxu0 0
      %1035 = vmatpush1.bf16.msra.mxu0 0
      %1036 = vmatprep.subr.bf16.mxu0 0
      %1037 = vmatpush1.bf16.msra.mxu0 0
      %1038 = vmatprep.subr.bf16.mxu0 0
      %1039 = vmatpush1.bf16.msra.mxu0 0
      %1040 = vmatprep.mubr.bf16.mxu0 0
      %1041 = vmatmul.mubr.bf16.gmra.mrb[0].mxu0 %v1003
      %v1042 = vpop.f32.mrb[0].mxu0
      %v1043 = vadd.f32 0.0, %v1042
      %v1044 = vpop.f32.mrb[0].mxu0
      %v1045 = vpop.f32.mrb[0].mxu0
      %v1046 = vpop.f32.mrb[0].mxu0
      %1047 = vdwg.mxu0
      %v1048 = vpack.c.bf16 %v1043, %v1043
      %s1049 = scalar_lea.vmem %s7, 4
      %v1050 = vld [vmem:[%s1049] sm:$0xf]
      %v1052 = vsel %vm588, %v1048, 0
      %v1055 = vsel %vm652, %v1050, 0
      %1057 = vmatprep.subr.bf16.mxu0 0
      %1058 = vmatpush1.bf16.msra.mxu0 %v1055
      %1059 = vmatprep.subr.bf16.mxu0 0
      %1060 = vmatpush1.bf16.msra.mxu0 0
      %1061 = vmatprep.subr.bf16.mxu0 0
      %1062 = vmatpush1.bf16.msra.mxu0 0
      %1063 = vmatprep.subr.bf16.mxu0 0
      %1064 = vmatpush1.bf16.msra.mxu0 0
      %1065 = vmatprep.subr.bf16.mxu0 0
      %1066 = vmatpush1.bf16.msra.mxu0 0
      %1067 = vmatprep.subr.bf16.mxu0 0
      %1068 = vmatpush1.bf16.msra.mxu0 0
      %1069 = vmatprep.subr.bf16.mxu0 0
      %1070 = vmatpush1.bf16.msra.mxu0 0
      %1071 = vmatprep.subr.bf16.mxu0 0
      %1072 = vmatpush1.bf16.msra.mxu0 0
      %1073 = vmatprep.subr.bf16.mxu0 0
      %1074 = vmatpush1.bf16.msra.mxu0 0
      %1075 = vmatprep.subr.bf16.mxu0 0
      %1076 = vmatpush1.bf16.msra.mxu0 0
      %1077 = vmatprep.subr.bf16.mxu0 0
      %1078 = vmatpush1.bf16.msra.mxu0 0
      %1079 = vmatprep.subr.bf16.mxu0 0
      %1080 = vmatpush1.bf16.msra.mxu0 0
      %1081 = vmatprep.subr.bf16.mxu0 0
      %1082 = vmatpush1.bf16.msra.mxu0 0
      %1083 = vmatprep.subr.bf16.mxu0 0
      %1084 = vmatpush1.bf16.msra.mxu0 0
      %1085 = vmatprep.subr.bf16.mxu0 0
      %1086 = vmatpush1.bf16.msra.mxu0 0
      %1087 = vmatprep.subr.bf16.mxu0 0
      %1088 = vmatpush1.bf16.msra.mxu0 0
      %1089 = vmatprep.mubr.bf16.mxu0 0
      %1090 = vmatmul.mubr.bf16.gmra.mrb[0].mxu0 %v1052
      %v1091 = vpop.f32.mrb[0].mxu0
      %v1092 = vadd.f32 0.0, %v1091
      %v1093 = vpop.f32.mrb[0].mxu0
      %v1094 = vpop.f32.mrb[0].mxu0
      %v1095 = vpop.f32.mrb[0].mxu0
      %1096 = vdwg.mxu0
      %v1097 = vadd.f32 %v744, %v1092
      %s1098 = scalar_lea.vmem %s1, 32
      %v1099 = vld [vmem:[%s1098] sm:$0xf]
      %v1100 = vld [vmem:[%s1098 + $0x4] sm:$0xf]
      %v1101 = vld [vmem:[%s1098 + $0x8] sm:$0xf]
      %v1102 = vld [vmem:[%s1098 + $0xc] sm:$0xf]
      %s1103 = scalar_lea.vmem %s4, 2
      %v1104 = vld [vmem:[%s1103] sm:$0x1]
      %v1106 = vlaneseq
      %v1107 = vshrl.u32 %v1106, 7
      %v1108 = vsub.s32 0, %v1107
      %v1109 = vrot.slane %v1104, %v1108
      %v1115 = vunpack.c.l.b16 %v1099
      %v1116 = vunpack.c.l.b16 %v1100
      %v1117 = vunpack.c.l.b16 %v1101
      %v1118 = vunpack.c.l.b16 %v1102
      %v1119 = vpack.c.b16 %v1116, %v1115
      %v1120 = vpack.c.b16 %v1118, %v1117
      %1123 = vmatprep.subr.bf16.mxu0 0
      %1124 = vmatpush1.bf16.msra.mxu0 %v1119
      %1125 = vmatprep.subr.bf16.mxu0 0
      %1126 = vmatpush1.bf16.msra.mxu0 %v1120
      %1127 = vmatprep.subr.bf16.mxu0 0
      %1128 = vmatpush1.bf16.msra.mxu0 0
      %1129 = vmatprep.subr.bf16.mxu0 0
      %1130 = vmatpush1.bf16.msra.mxu0 0
      %1131 = vmatprep.subr.bf16.mxu0 0
      %1132 = vmatpush1.bf16.msra.mxu0 0
      %1133 = vmatprep.subr.bf16.mxu0 0
      %1134 = vmatpush1.bf16.msra.mxu0 0
      %1135 = vmatprep.subr.bf16.mxu0 0
      %1136 = vmatpush1.bf16.msra.mxu0 0
      %1137 = vmatprep.subr.bf16.mxu0 0
      %1138 = vmatpush1.bf16.msra.mxu0 0
      %1139 = vmatprep.subr.bf16.mxu0 0
      %1140 = vmatpush1.bf16.msra.mxu0 0
      %1141 = vmatprep.subr.bf16.mxu0 0
      %1142 = vmatpush1.bf16.msra.mxu0 0
      %1143 = vmatprep.subr.bf16.mxu0 0
      %1144 = vmatpush1.bf16.msra.mxu0 0
      %1145 = vmatprep.subr.bf16.mxu0 0
      %1146 = vmatpush1.bf16.msra.mxu0 0
      %1147 = vmatprep.subr.bf16.mxu0 0
      %1148 = vmatpush1.bf16.msra.mxu0 0
      %1149 = vmatprep.subr.bf16.mxu0 0
      %1150 = vmatpush1.bf16.msra.mxu0 0
      %1151 = vmatprep.subr.bf16.mxu0 0
      %1152 = vmatpush1.bf16.msra.mxu0 0
      %1153 = vmatprep.subr.bf16.mxu0 0
      %1154 = vmatpush1.bf16.msra.mxu0 0
      %1155 = vmatprep.mubr.bf16.mxu0 0
      %1156 = vmatmul.mubr.bf16.gmra.mrb[0].mxu0 %v418
      %v1157 = vpop.f32.mrb[0].mxu0
      %v1158 = vadd.f32 %v1109, %v1157
      %v1159 = vpop.f32.mrb[0].mxu0
      %v1160 = vpop.f32.mrb[0].mxu0
      %v1161 = vpop.f32.mrb[0].mxu0
      %1162 = vdwg.mxu0
      %s1163 = scalar_lea.vmem %s2, 32
      %v1164 = vld [vmem:[%s1163] sm:$0xf]
      %v1165 = vld [vmem:[%s1163 + $0x4] sm:$0xf]
      %v1166 = vld [vmem:[%s1163 + $0x8] sm:$0xf]
      %v1167 = vld [vmem:[%s1163 + $0xc] sm:$0xf]
      %s1168 = scalar_lea.vmem %s5, 2
      %v1169 = vld [vmem:[%s1168] sm:$0x1]
      %v1171 = vlaneseq
      %v1172 = vshrl.u32 %v1171, 7
      %v1173 = vsub.s32 0, %v1172
      %v1174 = vrot.slane %v1169, %v1173
      %v1180 = vunpack.c.l.b16 %v1164
      %v1181 = vunpack.c.l.b16 %v1165
      %v1182 = vunpack.c.l.b16 %v1166
      %v1183 = vunpack.c.l.b16 %v1167
      %v1184 = vpack.c.b16 %v1181, %v1180
      %v1185 = vpack.c.b16 %v1183, %v1182
      %1188 = vmatprep.subr.bf16.mxu0 0
      %1189 = vmatpush1.bf16.msra.mxu0 %v1184
      %1190 = vmatprep.subr.bf16.mxu0 0
      %1191 = vmatpush1.bf16.msra.mxu0 %v1185
      %1192 = vmatprep.subr.bf16.mxu0 0
      %1193 = vmatpush1.bf16.msra.mxu0 0
      %1194 = vmatprep.subr.bf16.mxu0 0
      %1195 = vmatpush1.bf16.msra.mxu0 0
      %1196 = vmatprep.subr.bf16.mxu0 0
      %1197 = vmatpush1.bf16.msra.mxu0 0
      %1198 = vmatprep.subr.bf16.mxu0 0
      %1199 = vmatpush1.bf16.msra.mxu0 0
      %1200 = vmatprep.subr.bf16.mxu0 0
      %1201 = vmatpush1.bf16.msra.mxu0 0
      %1202 = vmatprep.subr.bf16.mxu0 0
      %1203 = vmatpush1.bf16.msra.mxu0 0
      %1204 = vmatprep.subr.bf16.mxu0 0
      %1205 = vmatpush1.bf16.msra.mxu0 0
      %1206 = vmatprep.subr.bf16.mxu0 0
      %1207 = vmatpush1.bf16.msra.mxu0 0
      %1208 = vmatprep.subr.bf16.mxu0 0
      %1209 = vmatpush1.bf16.msra.mxu0 0
      %1210 = vmatprep.subr.bf16.mxu0 0
      %1211 = vmatpush1.bf16.msra.mxu0 0
      %1212 = vmatprep.subr.bf16.mxu0 0
      %1213 = vmatpush1.bf16.msra.mxu0 0
      %1214 = vmatprep.subr.bf16.mxu0 0
      %1215 = vmatpush1.bf16.msra.mxu0 0
      %1216 = vmatprep.subr.bf16.mxu0 0
      %1217 = vmatpush1.bf16.msra.mxu0 0
      %1218 = vmatprep.subr.bf16.mxu0 0
      %1219 = vmatpush1.bf16.msra.mxu0 0
      %1220 = vmatprep.mubr.bf16.mxu0 0
      %1221 = vmatmul.mubr.bf16.gmra.mrb[0].mxu0 %v418
      %v1222 = vpop.f32.mrb[0].mxu0
      %v1223 = vadd.f32 %v1174, %v1222
      %v1224 = vpop.f32.mrb[0].mxu0
      %v1225 = vpop.f32.mrb[0].mxu0
      %v1226 = vpop.f32.mrb[0].mxu0
      %1227 = vdwg.mxu0
      %s1228 = scalar_lea.vmem %s3, 32
      %v1229 = vld [vmem:[%s1228] sm:$0xf]
      %v1230 = vld [vmem:[%s1228 + $0x4] sm:$0xf]
      %v1231 = vld [vmem:[%s1228 + $0x8] sm:$0xf]
      %v1232 = vld [vmem:[%s1228 + $0xc] sm:$0xf]
      %s1233 = scalar_lea.vmem %s6, 2
      %v1234 = vld [vmem:[%s1233] sm:$0x1]
      %v1236 = vlaneseq
      %v1237 = vshrl.u32 %v1236, 7
      %v1238 = vsub.s32 0, %v1237
      %v1239 = vrot.slane %v1234, %v1238
      %v1245 = vunpack.c.l.b16 %v1229
      %v1246 = vunpack.c.l.b16 %v1230
      %v1247 = vunpack.c.l.b16 %v1231
      %v1248 = vunpack.c.l.b16 %v1232
      %v1249 = vpack.c.b16 %v1246, %v1245
      %v1250 = vpack.c.b16 %v1248, %v1247
      %1253 = vmatprep.subr.bf16.mxu0 0
      %1254 = vmatpush1.bf16.msra.mxu0 %v1249
      %1255 = vmatprep.subr.bf16.mxu0 0
      %1256 = vmatpush1.bf16.msra.mxu0 %v1250
      %1257 = vmatprep.subr.bf16.mxu0 0
      %1258 = vmatpush1.bf16.msra.mxu0 0
      %1259 = vmatprep.subr.bf16.mxu0 0
      %1260 = vmatpush1.bf16.msra.mxu0 0
      %1261 = vmatprep.subr.bf16.mxu0 0
      %1262 = vmatpush1.bf16.msra.mxu0 0
      %1263 = vmatprep.subr.bf16.mxu0 0
      %1264 = vmatpush1.bf16.msra.mxu0 0
      %1265 = vmatprep.subr.bf16.mxu0 0
      %1266 = vmatpush1.bf16.msra.mxu0 0
      %1267 = vmatprep.subr.bf16.mxu0 0
      %1268 = vmatpush1.bf16.msra.mxu0 0
      %1269 = vmatprep.subr.bf16.mxu0 0
      %1270 = vmatpush1.bf16.msra.mxu0 0
      %1271 = vmatprep.subr.bf16.mxu0 0
      %1272 = vmatpush1.bf16.msra.mxu0 0
      %1273 = vmatprep.subr.bf16.mxu0 0
      %1274 = vmatpush1.bf16.msra.mxu0 0
      %1275 = vmatprep.subr.bf16.mxu0 0
      %1276 = vmatpush1.bf16.msra.mxu0 0
      %1277 = vmatprep.subr.bf16.mxu0 0
      %1278 = vmatpush1.bf16.msra.mxu0 0
      %1279 = vmatprep.subr.bf16.mxu0 0
      %1280 = vmatpush1.bf16.msra.mxu0 0
      %1281 = vmatprep.subr.bf16.mxu0 0
      %1282 = vmatpush1.bf16.msra.mxu0 0
      %1283 = vmatprep.subr.bf16.mxu0 0
      %1284 = vmatpush1.bf16.msra.mxu0 0
      %1285 = vmatprep.mubr.bf16.mxu0 0
      %1286 = vmatmul.mubr.bf16.gmra.mrb[0].mxu0 %v418
      %v1287 = vpop.f32.mrb[0].mxu0
      %v1288 = vadd.f32 %v1239, %v1287
      %v1289 = vpop.f32.mrb[0].mxu0
      %v1290 = vpop.f32.mrb[0].mxu0
      %v1291 = vpop.f32.mrb[0].mxu0
      %1292 = vdwg.mxu0
      %v1293 = vpack.c.bf16 %v1158, %v1158
      %v1294 = vpack.c.bf16 %v1223, %v1223
      %v1296 = vsel %vm588, %v1293, 0
      %v1299 = vsel %vm588, %v1294, 0
      %1301 = vmatprep.subr.bf16.mxu0 0
      %1302 = vmatpush1.bf16.xpose.msra.mxu0 %v1299
      %1303 = vmatprep.subr.bf16.mxu0 0
      %1304 = vmatpush1.bf16.xpose.msra.mxu0 0
      %1305 = vmatprep.subr.bf16.mxu0 0
      %1306 = vmatpush1.bf16.xpose.msra.mxu0 0
      %1307 = vmatprep.subr.bf16.mxu0 0
      %1308 = vmatpush1.bf16.xpose.msra.mxu0 0
      %1309 = vmatprep.subr.bf16.mxu0 0
      %1310 = vmatpush1.bf16.xpose.msra.mxu0 0
      %1311 = vmatprep.subr.bf16.mxu0 0
      %1312 = vmatpush1.bf16.xpose.msra.mxu0 0
      %1313 = vmatprep.subr.bf16.mxu0 0
      %1314 = vmatpush1.bf16.xpose.msra.mxu0 0
      %1315 = vmatprep.subr.bf16.mxu0 0
      %1316 = vmatpush1.bf16.xpose.msra.mxu0 0
      %1317 = vmatprep.subr.bf16.mxu0 0
      %1318 = vmatpush1.bf16.xpose.msra.mxu0 0
      %1319 = vmatprep.subr.bf16.mxu0 0
      %1320 = vmatpush1.bf16.xpose.msra.mxu0 0
      %1321 = vmatprep.subr.bf16.mxu0 0
      %1322 = vmatpush1.bf16.xpose.msra.mxu0 0
      %1323 = vmatprep.subr.bf16.mxu0 0
      %1324 = vmatpush1.bf16.xpose.msra.mxu0 0
      %1325 = vmatprep.subr.bf16.mxu0 0
      %1326 = vmatpush1.bf16.xpose.msra.mxu0 0
      %1327 = vmatprep.subr.bf16.mxu0 0
      %1328 = vmatpush1.bf16.xpose.msra.mxu0 0
      %1329 = vmatprep.subr.bf16.mxu0 0
      %1330 = vmatpush1.bf16.xpose.msra.mxu0 0
      %1331 = vmatprep.subr.bf16.mxu0 0
      %1332 = vmatpush1.bf16.xpose.msra.mxu0 0
      %1333 = vmatprep.mubr.bf16.mxu0 0
      %1334 = vmatmul.mubr.bf16.gmra.mrb[0].mxu0 %v1296
      %v1335 = vpop.f32.mrb[0].mxu0
      %v1336 = vadd.f32 0.0, %v1335
      %v1337 = vpop.f32.mrb[0].mxu0
      %v1338 = vpop.f32.mrb[0].mxu0
      %v1339 = vpop.f32.mrb[0].mxu0
      %1340 = vdwg.mxu0
      %v1341 = vmul.f32 %v1336, 0.35355338
      %v1342 = vsel %vm588, %v1341, -inf
      %1343 = vmax.xlane.f32.xlu0 %v1342
      %v1344 = vpop.xlane.xlu0 %1343
      %v1345 = vsub.f32 %v1341, %v1344
      %v1346 = vmul.f32 %v1345, 1.442695
      %v1347 = vpow.pop %v1346
      %v1348 = vsel %vm588, %v1347, 0.0
      %1349 = vadd.xlane.f32.xlu0 %v1348
      %v1350 = vpop.xlane.xlu0 %1349
      %v1351 = vrcp.pop %v1350
      %v1352 = vmul.f32 %v1347, %v1351
      %v1353 = vpack.c.bf16 %v1352, %v1352
      %v1354 = vpack.c.bf16 %v1288, %v1288
      %v1356 = vsel %vm588, %v1353, 0
      %v1359 = vsel %vm652, %v1354, 0
      %1361 = vmatprep.subr.bf16.mxu0 0
      %1362 = vmatpush1.bf16.msra.mxu0 %v1359
      %1363 = vmatprep.subr.bf16.mxu0 0
      %1364 = vmatpush1.bf16.msra.mxu0 0
      %1365 = vmatprep.subr.bf16.mxu0 0
      %1366 = vmatpush1.bf16.msra.mxu0 0
      %1367 = vmatprep.subr.bf16.mxu0 0
      %1368 = vmatpush1.bf16.msra.mxu0 0
      %1369 = vmatprep.subr.bf16.mxu0 0
      %1370 = vmatpush1.bf16.msra.mxu0 0
      %1371 = vmatprep.subr.bf16.mxu0 0
      %1372 = vmatpush1.bf16.msra.mxu0 0
      %1373 = vmatprep.subr.bf16.mxu0 0
      %1374 = vmatpush1.bf16.msra.mxu0 0
      %1375 = vmatprep.subr.bf16.mxu0 0
      %1376 = vmatpush1.bf16.msra.mxu0 0
      %1377 = vmatprep.subr.bf16.mxu0 0
      %1378 = vmatpush1.bf16.msra.mxu0 0
      %1379 = vmatprep.subr.bf16.mxu0 0
      %1380 = vmatpush1.bf16.msra.mxu0 0
      %1381 = vmatprep.subr.bf16.mxu0 0
      %1382 = vmatpush1.bf16.msra.mxu0 0
      %1383 = vmatprep.subr.bf16.mxu0 0
      %1384 = vmatpush1.bf16.msra.mxu0 0
      %1385 = vmatprep.subr.bf16.mxu0 0
      %1386 = vmatpush1.bf16.msra.mxu0 0
      %1387 = vmatprep.subr.bf16.mxu0 0
      %1388 = vmatpush1.bf16.msra.mxu0 0
      %1389 = vmatprep.subr.bf16.mxu0 0
      %1390 = vmatpush1.bf16.msra.mxu0 0
      %1391 = vmatprep.subr.bf16.mxu0 0
      %1392 = vmatpush1.bf16.msra.mxu0 0
      %1393 = vmatprep.mubr.bf16.mxu0 0
      %1394 = vmatmul.mubr.bf16.gmra.mrb[0].mxu0 %v1356
      %v1395 = vpop.f32.mrb[0].mxu0
      %v1396 = vadd.f32 0.0, %v1395
      %v1397 = vpop.f32.mrb[0].mxu0
      %v1398 = vpop.f32.mrb[0].mxu0
      %v1399 = vpop.f32.mrb[0].mxu0
      %1400 = vdwg.mxu0
      %v1401 = vpack.c.bf16 %v1396, %v1396
      %s1402 = scalar_lea.vmem %s7, 8
      %v1403 = vld [vmem:[%s1402] sm:$0xf]
      %v1405 = vsel %vm588, %v1401, 0
      %v1408 = vsel %vm652, %v1403, 0
      %1410 = vmatprep.subr.bf16.mxu0 0
      %1411 = vmatpush1.bf16.msra.mxu0 %v1408
      %1412 = vmatprep.subr.bf16.mxu0 0
      %1413 = vmatpush1.bf16.msra.mxu0 0
      %1414 = vmatprep.subr.bf16.mxu0 0
      %1415 = vmatpush1.bf16.msra.mxu0 0
      %1416 = vmatprep.subr.bf16.mxu0 0
      %1417 = vmatpush1.bf16.msra.mxu0 0
      %1418 = vmatprep.subr.bf16.mxu0 0
      %1419 = vmatpush1.bf16.msra.mxu0 0
      %1420 = vmatprep.subr.bf16.mxu0 0
      %1421 = vmatpush1.bf16.msra.mxu0 0
      %1422 = vmatprep.subr.bf16.mxu0 0
      %1423 = vmatpush1.bf16.msra.mxu0 0
      %1424 = vmatprep.subr.bf16.mxu0 0
      %1425 = vmatpush1.bf16.msra.mxu0 0
      %1426 = vmatprep.subr.bf16.mxu0 0
      %1427 = vmatpush1.bf16.msra.mxu0 0
      %1428 = vmatprep.subr.bf16.mxu0 0
      %1429 = vmatpush1.bf16.msra.mxu0 0
      %1430 = vmatprep.subr.bf16.mxu0 0
      %1431 = vmatpush1.bf16.msra.mxu0 0
      %1432 = vmatprep.subr.bf16.mxu0 0
      %1433 = vmatpush1.bf16.msra.mxu0 0
      %1434 = vmatprep.subr.bf16.mxu0 0
      %1435 = vmatpush1.bf16.msra.mxu0 0
      %1436 = vmatprep.subr.bf16.mxu0 0
      %1437 = vmatpush1.bf16.msra.mxu0 0
      %1438 = vmatprep.subr.bf16.mxu0 0
      %1439 = vmatpush1.bf16.msra.mxu0 0
      %1440 = vmatprep.subr.bf16.mxu0 0
      %1441 = vmatpush1.bf16.msra.mxu0 0
      %1442 = vmatprep.mubr.bf16.mxu0 0
      %1443 = vmatmul.mubr.bf16.gmra.mrb[0].mxu0 %v1405
      %v1444 = vpop.f32.mrb[0].mxu0
      %v1445 = vadd.f32 0.0, %v1444
      %v1446 = vpop.f32.mrb[0].mxu0
      %v1447 = vpop.f32.mrb[0].mxu0
      %v1448 = vpop.f32.mrb[0].mxu0
      %1449 = vdwg.mxu0
      %v1450 = vadd.f32 %v1097, %v1445
      %s1451 = scalar_lea.vmem %s1, 48
      %v1452 = vld [vmem:[%s1451] sm:$0xf]
      %v1453 = vld [vmem:[%s1451 + $0x4] sm:$0xf]
      %v1454 = vld [vmem:[%s1451 + $0x8] sm:$0xf]
      %v1455 = vld [vmem:[%s1451 + $0xc] sm:$0xf]
      %s1456 = scalar_lea.vmem %s4, 3
      %v1457 = vld [vmem:[%s1456] sm:$0x1]
      %v1459 = vlaneseq
      %v1460 = vshrl.u32 %v1459, 7
      %v1461 = vsub.s32 0, %v1460
      %v1462 = vrot.slane %v1457, %v1461
      %v1468 = vunpack.c.l.b16 %v1452
      %v1469 = vunpack.c.l.b16 %v1453
      %v1470 = vunpack.c.l.b16 %v1454
      %v1471 = vunpack.c.l.b16 %v1455
      %v1472 = vpack.c.b16 %v1469, %v1468
      %v1473 = vpack.c.b16 %v1471, %v1470
      %1476 = vmatprep.subr.bf16.mxu0 0
      %1477 = vmatpush1.bf16.msra.mxu0 %v1472
      %1478 = vmatprep.subr.bf16.mxu0 0
      %1479 = vmatpush1.bf16.msra.mxu0 %v1473
      %1480 = vmatprep.subr.bf16.mxu0 0
      %1481 = vmatpush1.bf16.msra.mxu0 0
      %1482 = vmatprep.subr.bf16.mxu0 0
      %1483 = vmatpush1.bf16.msra.mxu0 0
      %1484 = vmatprep.subr.bf16.mxu0 0
      %1485 = vmatpush1.bf16.msra.mxu0 0
      %1486 = vmatprep.subr.bf16.mxu0 0
      %1487 = vmatpush1.bf16.msra.mxu0 0
      %1488 = vmatprep.subr.bf16.mxu0 0
      %1489 = vmatpush1.bf16.msra.mxu0 0
      %1490 = vmatprep.subr.bf16.mxu0 0
      %1491 = vmatpush1.bf16.msra.mxu0 0
      %1492 = vmatprep.subr.bf16.mxu0 0
      %1493 = vmatpush1.bf16.msra.mxu0 0
      %1494 = vmatprep.subr.bf16.mxu0 0
      %1495 = vmatpush1.bf16.msra.mxu0 0
      %1496 = vmatprep.subr.bf16.mxu0 0
      %1497 = vmatpush1.bf16.msra.mxu0 0
      %1498 = vmatprep.subr.bf16.mxu0 0
      %1499 = vmatpush1.bf16.msra.mxu0 0
      %1500 = vmatprep.subr.bf16.mxu0 0
      %1501 = vmatpush1.bf16.msra.mxu0 0
      %1502 = vmatprep.subr.bf16.mxu0 0
      %1503 = vmatpush1.bf16.msra.mxu0 0
      %1504 = vmatprep.subr.bf16.mxu0 0
      %1505 = vmatpush1.bf16.msra.mxu0 0
      %1506 = vmatprep.subr.bf16.mxu0 0
      %1507 = vmatpush1.bf16.msra.mxu0 0
      %1508 = vmatprep.mubr.bf16.mxu0 0
      %1509 = vmatmul.mubr.bf16.gmra.mrb[0].mxu0 %v418
      %v1510 = vpop.f32.mrb[0].mxu0
      %v1511 = vadd.f32 %v1462, %v1510
      %v1512 = vpop.f32.mrb[0].mxu0
      %v1513 = vpop.f32.mrb[0].mxu0
      %v1514 = vpop.f32.mrb[0].mxu0
      %1515 = vdwg.mxu0
      %s1516 = scalar_lea.vmem %s2, 48
      %v1517 = vld [vmem:[%s1516] sm:$0xf]
      %v1518 = vld [vmem:[%s1516 + $0x4] sm:$0xf]
      %v1519 = vld [vmem:[%s1516 + $0x8] sm:$0xf]
      %v1520 = vld [vmem:[%s1516 + $0xc] sm:$0xf]
      %s1521 = scalar_lea.vmem %s5, 3
      %v1522 = vld [vmem:[%s1521] sm:$0x1]
      %v1524 = vlaneseq
      %v1525 = vshrl.u32 %v1524, 7
      %v1526 = vsub.s32 0, %v1525
      %v1527 = vrot.slane %v1522, %v1526
      %v1533 = vunpack.c.l.b16 %v1517
      %v1534 = vunpack.c.l.b16 %v1518
      %v1535 = vunpack.c.l.b16 %v1519
      %v1536 = vunpack.c.l.b16 %v1520
      %v1537 = vpack.c.b16 %v1534, %v1533
      %v1538 = vpack.c.b16 %v1536, %v1535
      %1541 = vmatprep.subr.bf16.mxu0 0
      %1542 = vmatpush1.bf16.msra.mxu0 %v1537
      %1543 = vmatprep.subr.bf16.mxu0 0
      %1544 = vmatpush1.bf16.msra.mxu0 %v1538
      %1545 = vmatprep.subr.bf16.mxu0 0
      %1546 = vmatpush1.bf16.msra.mxu0 0
      %1547 = vmatprep.subr.bf16.mxu0 0
      %1548 = vmatpush1.bf16.msra.mxu0 0
      %1549 = vmatprep.subr.bf16.mxu0 0
      %1550 = vmatpush1.bf16.msra.mxu0 0
      %1551 = vmatprep.subr.bf16.mxu0 0
      %1552 = vmatpush1.bf16.msra.mxu0 0
      %1553 = vmatprep.subr.bf16.mxu0 0
      %1554 = vmatpush1.bf16.msra.mxu0 0
      %1555 = vmatprep.subr.bf16.mxu0 0
      %1556 = vmatpush1.bf16.msra.mxu0 0
      %1557 = vmatprep.subr.bf16.mxu0 0
      %1558 = vmatpush1.bf16.msra.mxu0 0
      %1559 = vmatprep.subr.bf16.mxu0 0
      %1560 = vmatpush1.bf16.msra.mxu0 0
      %1561 = vmatprep.subr.bf16.mxu0 0
      %1562 = vmatpush1.bf16.msra.mxu0 0
      %1563 = vmatprep.subr.bf16.mxu0 0
      %1564 = vmatpush1.bf16.msra.mxu0 0
      %1565 = vmatprep.subr.bf16.mxu0 0
      %1566 = vmatpush1.bf16.msra.mxu0 0
      %1567 = vmatprep.subr.bf16.mxu0 0
      %1568 = vmatpush1.bf16.msra.mxu0 0
      %1569 = vmatprep.subr.bf16.mxu0 0
      %1570 = vmatpush1.bf16.msra.mxu0 0
      %1571 = vmatprep.subr.bf16.mxu0 0
      %1572 = vmatpush1.bf16.msra.mxu0 0
      %1573 = vmatprep.mubr.bf16.mxu0 0
      %1574 = vmatmul.mubr.bf16.gmra.mrb[0].mxu0 %v418
      %v1575 = vpop.f32.mrb[0].mxu0
      %v1576 = vadd.f32 %v1527, %v1575
      %v1577 = vpop.f32.mrb[0].mxu0
      %v1578 = vpop.f32.mrb[0].mxu0
      %v1579 = vpop.f32.mrb[0].mxu0
      %1580 = vdwg.mxu0
      %s1581 = scalar_lea.vmem %s3, 48
      %v1582 = vld [vmem:[%s1581] sm:$0xf]
      %v1583 = vld [vmem:[%s1581 + $0x4] sm:$0xf]
      %v1584 = vld [vmem:[%s1581 + $0x8] sm:$0xf]
      %v1585 = vld [vmem:[%s1581 + $0xc] sm:$0xf]
      %s1586 = scalar_lea.vmem %s6, 3
      %v1587 = vld [vmem:[%s1586] sm:$0x1]
      %v1589 = vlaneseq
      %v1590 = vshrl.u32 %v1589, 7
      %v1591 = vsub.s32 0, %v1590
      %v1592 = vrot.slane %v1587, %v1591
      %v1598 = vunpack.c.l.b16 %v1582
      %v1599 = vunpack.c.l.b16 %v1583
      %v1600 = vunpack.c.l.b16 %v1584
      %v1601 = vunpack.c.l.b16 %v1585
      %v1602 = vpack.c.b16 %v1599, %v1598
      %v1603 = vpack.c.b16 %v1601, %v1600
      %1606 = vmatprep.subr.bf16.mxu0 0
      %1607 = vmatpush1.bf16.msra.mxu0 %v1602
      %1608 = vmatprep.subr.bf16.mxu0 0
      %1609 = vmatpush1.bf16.msra.mxu0 %v1603
      %1610 = vmatprep.subr.bf16.mxu0 0
      %1611 = vmatpush1.bf16.msra.mxu0 0
      %1612 = vmatprep.subr.bf16.mxu0 0
      %1613 = vmatpush1.bf16.msra.mxu0 0
      %1614 = vmatprep.subr.bf16.mxu0 0
      %1615 = vmatpush1.bf16.msra.mxu0 0
      %1616 = vmatprep.subr.bf16.mxu0 0
      %1617 = vmatpush1.bf16.msra.mxu0 0
      %1618 = vmatprep.subr.bf16.mxu0 0
      %1619 = vmatpush1.bf16.msra.mxu0 0
      %1620 = vmatprep.subr.bf16.mxu0 0
      %1621 = vmatpush1.bf16.msra.mxu0 0
      %1622 = vmatprep.subr.bf16.mxu0 0
      %1623 = vmatpush1.bf16.msra.mxu0 0
      %1624 = vmatprep.subr.bf16.mxu0 0
      %1625 = vmatpush1.bf16.msra.mxu0 0
      %1626 = vmatprep.subr.bf16.mxu0 0
      %1627 = vmatpush1.bf16.msra.mxu0 0
      %1628 = vmatprep.subr.bf16.mxu0 0
      %1629 = vmatpush1.bf16.msra.mxu0 0
      %1630 = vmatprep.subr.bf16.mxu0 0
      %1631 = vmatpush1.bf16.msra.mxu0 0
      %1632 = vmatprep.subr.bf16.mxu0 0
      %1633 = vmatpush1.bf16.msra.mxu0 0
      %1634 = vmatprep.subr.bf16.mxu0 0
      %1635 = vmatpush1.bf16.msra.mxu0 0
      %1636 = vmatprep.subr.bf16.mxu0 0
      %1637 = vmatpush1.bf16.msra.mxu0 0
      %1638 = vmatprep.mubr.bf16.mxu0 0
      %1639 = vmatmul.mubr.bf16.gmra.mrb[0].mxu0 %v418
      %v1640 = vpop.f32.mrb[0].mxu0
      %v1641 = vadd.f32 %v1592, %v1640
      %v1642 = vpop.f32.mrb[0].mxu0
      %v1643 = vpop.f32.mrb[0].mxu0
      %v1644 = vpop.f32.mrb[0].mxu0
      %1645 = vdwg.mxu0
      %v1646 = vpack.c.bf16 %v1511, %v1511
      %v1647 = vpack.c.bf16 %v1576, %v1576
      %v1649 = vsel %vm588, %v1646, 0
      %v1652 = vsel %vm588, %v1647, 0
      %1654 = vmatprep.subr.bf16.mxu0 0
      %1655 = vmatpush1.bf16.xpose.msra.mxu0 %v1652
      %1656 = vmatprep.subr.bf16.mxu0 0
      %1657 = vmatpush1.bf16.xpose.msra.mxu0 0
      %1658 = vmatprep.subr.bf16.mxu0 0
      %1659 = vmatpush1.bf16.xpose.msra.mxu0 0
      %1660 = vmatprep.subr.bf16.mxu0 0
      %1661 = vmatpush1.bf16.xpose.msra.mxu0 0
      %1662 = vmatprep.subr.bf16.mxu0 0
      %1663 = vmatpush1.bf16.xpose.msra.mxu0 0
      %1664 = vmatprep.subr.bf16.mxu0 0
      %1665 = vmatpush1.bf16.xpose.msra.mxu0 0
      %1666 = vmatprep.subr.bf16.mxu0 0
      %1667 = vmatpush1.bf16.xpose.msra.mxu0 0
      %1668 = vmatprep.subr.bf16.mxu0 0
      %1669 = vmatpush1.bf16.xpose.msra.mxu0 0
      %1670 = vmatprep.subr.bf16.mxu0 0
      %1671 = vmatpush1.bf16.xpose.msra.mxu0 0
      %1672 = vmatprep.subr.bf16.mxu0 0
      %1673 = vmatpush1.bf16.xpose.msra.mxu0 0
      %1674 = vmatprep.subr.bf16.mxu0 0
      %1675 = vmatpush1.bf16.xpose.msra.mxu0 0
      %1676 = vmatprep.subr.bf16.mxu0 0
      %1677 = vmatpush1.bf16.xpose.msra.mxu0 0
      %1678 = vmatprep.subr.bf16.mxu0 0
      %1679 = vmatpush1.bf16.xpose.msra.mxu0 0
      %1680 = vmatprep.subr.bf16.mxu0 0
      %1681 = vmatpush1.bf16.xpose.msra.mxu0 0
      %1682 = vmatprep.subr.bf16.mxu0 0
      %1683 = vmatpush1.bf16.xpose.msra.mxu0 0
      %1684 = vmatprep.subr.bf16.mxu0 0
      %1685 = vmatpush1.bf16.xpose.msra.mxu0 0
      %1686 = vmatprep.mubr.bf16.mxu0 0
      %1687 = vmatmul.mubr.bf16.gmra.mrb[0].mxu0 %v1649
      %v1688 = vpop.f32.mrb[0].mxu0
      %v1689 = vadd.f32 0.0, %v1688
      %v1690 = vpop.f32.mrb[0].mxu0
      %v1691 = vpop.f32.mrb[0].mxu0
      %v1692 = vpop.f32.mrb[0].mxu0
      %1693 = vdwg.mxu0
      %v1694 = vmul.f32 %v1689, 0.35355338
      %v1695 = vsel %vm588, %v1694, -inf
      %1696 = vmax.xlane.f32.xlu0 %v1695
      %v1697 = vpop.xlane.xlu0 %1696
      %v1698 = vsub.f32 %v1694, %v1697
      %v1699 = vmul.f32 %v1698, 1.442695
      %v1700 = vpow.pop %v1699
      %v1701 = vsel %vm588, %v1700, 0.0
      %1702 = vadd.xlane.f32.xlu0 %v1701
      %v1703 = vpop.xlane.xlu0 %1702
      %v1704 = vrcp.pop %v1703
      %v1705 = vmul.f32 %v1700, %v1704
      %v1706 = vpack.c.bf16 %v1705, %v1705
      %v1707 = vpack.c.bf16 %v1641, %v1641
      %v1709 = vsel %vm588, %v1706, 0
      %v1712 = vsel %vm652, %v1707, 0
      %1714 = vmatprep.subr.bf16.mxu0 0
      %1715 = vmatpush1.bf16.msra.mxu0 %v1712
      %1716 = vmatprep.subr.bf16.mxu0 0
      %1717 = vmatpush1.bf16.msra.mxu0 0
      %1718 = vmatprep.subr.bf16.mxu0 0
      %1719 = vmatpush1.bf16.msra.mxu0 0
      %1720 = vmatprep.subr.bf16.mxu0 0
      %1721 = vmatpush1.bf16.msra.mxu0 0
      %1722 = vmatprep.subr.bf16.mxu0 0
      %1723 = vmatpush1.bf16.msra.mxu0 0
      %1724 = vmatprep.subr.bf16.mxu0 0
      %1725 = vmatpush1.bf16.msra.mxu0 0
      %1726 = vmatprep.subr.bf16.mxu0 0
      %1727 = vmatpush1.bf16.msra.mxu0 0
      %1728 = vmatprep.subr.bf16.mxu0 0
      %1729 = vmatpush1.bf16.msra.mxu0 0
      %1730 = vmatprep.subr.bf16.mxu0 0
      %1731 = vmatpush1.bf16.msra.mxu0 0
      %1732 = vmatprep.subr.bf16.mxu0 0
      %1733 = vmatpush1.bf16.msra.mxu0 0
      %1734 = vmatprep.subr.bf16.mxu0 0
      %1735 = vmatpush1.bf16.msra.mxu0 0
      %1736 = vmatprep.subr.bf16.mxu0 0
      %1737 = vmatpush1.bf16.msra.mxu0 0
      %1738 = vmatprep.subr.bf16.mxu0 0
      %1739 = vmatpush1.bf16.msra.mxu0 0
      %1740 = vmatprep.subr.bf16.mxu0 0
      %1741 = vmatpush1.bf16.msra.mxu0 0
      %1742 = vmatprep.subr.bf16.mxu0 0
      %1743 = vmatpush1.bf16.msra.mxu0 0
      %1744 = vmatprep.subr.bf16.mxu0 0
      %1745 = vmatpush1.bf16.msra.mxu0 0
      %1746 = vmatprep.mubr.bf16.mxu0 0
      %1747 = vmatmul.mubr.bf16.gmra.mrb[0].mxu0 %v1709
      %v1748 = vpop.f32.mrb[0].mxu0
      %v1749 = vadd.f32 0.0, %v1748
      %v1750 = vpop.f32.mrb[0].mxu0
      %v1751 = vpop.f32.mrb[0].mxu0
      %v1752 = vpop.f32.mrb[0].mxu0
      %1753 = vdwg.mxu0
      %v1754 = vpack.c.bf16 %v1749, %v1749
      %s1755 = scalar_lea.vmem %s7, 12
      %v1756 = vld [vmem:[%s1755] sm:$0xf]
      %v1758 = vsel %vm588, %v1754, 0
      %v1761 = vsel %vm652, %v1756, 0
      %1763 = vmatprep.subr.bf16.mxu0 0
      %1764 = vmatpush1.bf16.msra.mxu0 %v1761
      %1765 = vmatprep.subr.bf16.mxu0 0
      %1766 = vmatpush1.bf16.msra.mxu0 0
      %1767 = vmatprep.subr.bf16.mxu0 0
      %1768 = vmatpush1.bf16.msra.mxu0 0
      %1769 = vmatprep.subr.bf16.mxu0 0
      %1770 = vmatpush1.bf16.msra.mxu0 0
      %1771 = vmatprep.subr.bf16.mxu0 0
      %1772 = vmatpush1.bf16.msra.mxu0 0
      %1773 = vmatprep.subr.bf16.mxu0 0
      %1774 = vmatpush1.bf16.msra.mxu0 0
      %1775 = vmatprep.subr.bf16.mxu0 0
      %1776 = vmatpush1.bf16.msra.mxu0 0
      %1777 = vmatprep.subr.bf16.mxu0 0
      %1778 = vmatpush1.bf16.msra.mxu0 0
      %1779 = vmatprep.subr.bf16.mxu0 0
      %1780 = vmatpush1.bf16.msra.mxu0 0
      %1781 = vmatprep.subr.bf16.mxu0 0
      %1782 = vmatpush1.bf16.msra.mxu0 0
      %1783 = vmatprep.subr.bf16.mxu0 0
      %1784 = vmatpush1.bf16.msra.mxu0 0
      %1785 = vmatprep.subr.bf16.mxu0 0
      %1786 = vmatpush1.bf16.msra.mxu0 0
      %1787 = vmatprep.subr.bf16.mxu0 0
      %1788 = vmatpush1.bf16.msra.mxu0 0
      %1789 = vmatprep.subr.bf16.mxu0 0
      %1790 = vmatpush1.bf16.msra.mxu0 0
      %1791 = vmatprep.subr.bf16.mxu0 0
      %1792 = vmatpush1.bf16.msra.mxu0 0
      %1793 = vmatprep.subr.bf16.mxu0 0
      %1794 = vmatpush1.bf16.msra.mxu0 0
      %1795 = vmatprep.mubr.bf16.mxu0 0
      %1796 = vmatmul.mubr.bf16.gmra.mrb[0].mxu0 %v1758
      %v1797 = vpop.f32.mrb[0].mxu0
      %v1798 = vadd.f32 0.0, %v1797
      %v1799 = vpop.f32.mrb[0].mxu0
      %v1800 = vpop.f32.mrb[0].mxu0
      %v1801 = vpop.f32.mrb[0].mxu0
      %1802 = vdwg.mxu0
      %v1803 = vadd.f32 %v1450, %v1798
      %v1804 = vsel %vm416, %v1803, 0.0
      %1805 = vadd.xlane.f32.xlu0 %v1804
      %v1806 = vpop.xlane.xlu0 %1805
      %v1807 = vrcp.pop 32.0
      %v1808 = vmul.f32 %v1806, %v1807
      %v1809 = vsub.f32 %v1803, %v1808
      %v1810 = vmul.f32 %v1809, %v1809
      %v1811 = vsel %vm416, %v1810, 0.0
      %1812 = vadd.xlane.f32.xlu0 %v1811
      %v1813 = vpop.xlane.xlu0 %1812
      %v1814 = vmul.f32 %v1813, %v1807
      %v1815 = vadd.f32 %v1814, 1e-05
      %v1816 = vrsqrt.pop %v1815
      %v1817 = vmul.f32 %v1809, %v1816
      %v1818 = vld [vmem:[%s9] sm:$0x1]
      %v1820 = vlaneseq
      %v1821 = vshrl.u32 %v1820, 7
      %v1822 = vsub.s32 0, %v1821
      %v1823 = vrot.slane %v1818, %v1822
      %v1825 = vmul.f32 %v1817, %v1823
      %v1826 = vld [vmem:[%s10] sm:$0x1]
      %v1828 = vlaneseq
      %v1829 = vshrl.u32 %v1828, 7
      %v1830 = vsub.s32 0, %v1829
      %v1831 = vrot.slane %v1826, %v1830
      %v1833 = vadd.f32 %v1825, %v1831
      %v1834 = vpack.c.bf16 %v1833, %v1833
      %vm1835 = vcmask 257024
      %1836 = vst.msk [vmem:[%s381] sm:$0xf] %vm1835, %v1834
      %p1837 = scmp.lt.s32.totalorder %s22, 1
      %s1838 = scalar_select %p1837, %s22, 1
      %s1839 = smul.addr %s1838, 4
      %s1840 = scalar_lea.vmem %s11, %s1839
      // Predicated region
      $region65: #{trfm_seq2seq_forward.13} parent=63 // pred_check
        %p1841 = pneg %p276
      $region66: #{trfm_seq2seq_forward.13} parent=63 // pred_check_branch
        %1843 = sbr.rel (%p1841) target = $region68
      $region67: #{trfm_seq2seq_forward.13} parent=63 // pred_region
        _
      $region68: #{trfm_seq2seq_forward.13} parent=63 // pred_fallthru
        _
    $region64: #{trfm_seq2seq_forward.13} parent=5 // pred_fallthru
      _
    %p1844 = scmp.le.s32.totalorder 2, %s17
    // Predicated region
    $region69: #{trfm_seq2seq_forward.13} parent=5 // pred_check
      %p1845 = pneg %p1844
    $region70: #{trfm_seq2seq_forward.13} parent=5 // pred_check_branch
      %1847 = sbr.rel (%p1845) target = $region72
    $region71: #{trfm_seq2seq_forward.13} parent=5 // pred_region
      %s1848 = ssub.s32 %s17, 2
      // Predicated region
      $region73: #{trfm_seq2seq_forward.13} parent=71 // pred_check
        %p1849 = pneg %p282
      $region74: #{trfm_seq2seq_forward.13} parent=71 // pred_check_branch
        %1851 = sbr.rel (%p1849) target = $region76
      $region75: #{trfm_seq2seq_forward.13} parent=71 // pred_region
        %p1852 = scmp.lt.s32.totalorder %s23, 1
        %s1853 = scalar_select %p1852, %s23, 1
        %s1854 = smul.addr %s1853, 4
        %s1855 = scalar_lea.vmem %s11, %s1854
      $region76: #{trfm_seq2seq_forward.13} parent=71 // pred_fallthru
        _
    $region72: #{trfm_seq2seq_forward.13} parent=5 // pred_fallthru
      _
  $region6: #{trfm_seq2seq_forward.13} parent=0 // loop_footer
    %s21 = sadd.s32 1, %s17
  $region7: #{trfm_seq2seq_forward.13} parent=0 // loop_footer_branch
    %16 = sbr.rel target = $region3
  $region8: #{trfm_seq2seq_forward.13} parent=0 // loop_exit
    _

// kernel: trfm_seq2seq_forward.19
$region0: #{trfm_seq2seq_forward.19}
  #allocation0 [shape = 'u32[]', space=smem, size = 0x4, offset = 0x4, fixed_abs, tag = 'smem constant byte address 0x4 - core index']
  #allocation1 [shape = 'u32[144,128]{1,0:T(1,128)}', space=vmem, size = 0x12000, scoped, tag = 'internal scratch']
  %s0 = inlined_call_operand.vmem [shape: bf16[2,8,32], index: 0, kind: input, shape index: {}]
  %s1 = inlined_call_operand.vmem [shape: bf16[2,8,32], index: 1, kind: input, shape index: {}]
  %s2 = inlined_call_operand.vmem [shape: bf16[4,32,8], index: 2, kind: input, shape index: {}]
  %s3 = inlined_call_operand.vmem [shape: bf16[4,32,8], index: 3, kind: input, shape index: {}]
  %s4 = inlined_call_operand.vmem [shape: bf16[4,32,8], index: 4, kind: input, shape index: {}]
  %s5 = inlined_call_operand.vmem [shape: f32[4,1,8], index: 5, kind: input, shape index: {}]
  %s6 = inlined_call_operand.vmem [shape: f32[4,1,8], index: 6, kind: input, shape index: {}]
  %s7 = inlined_call_operand.vmem [shape: f32[4,1,8], index: 7, kind: input, shape index: {}]
  %s8 = inlined_call_operand.vmem [shape: bf16[4,8,32], index: 8, kind: input, shape index: {}]
  %s9 = inlined_call_operand.vmem [shape: f32[1,32], index: 9, kind: input, shape index: {}]
  %s10 = inlined_call_operand.vmem [shape: f32[1,32], index: 10, kind: input, shape index: {}]
  %s11 = inlined_call_operand.vmem [shape: f32[1,32], index: 11, kind: input, shape index: {}]
  %s12 = inlined_call_operand.vmem [shape: bf16[2,8,32], index: 12, kind: output, shape index: {}]
  %s13 = sld [smem:[#allocation0]]
  $region81: #{trfm_seq2seq_forward.19} parent=0
    _
  %s15 = ssub.s32 1, %s13
  %s16 = scalar_select 0, %s15, %s13
  loop: start=0, step=1, limit=4
  $region2: #{trfm_seq2seq_forward.19} parent=0 // loop_pre_header
    _
  $region3: #{trfm_seq2seq_forward.19} parent=0 // loop_header
    %s18 = sphi 0, %s22
    %p19 = scmp.ge.s32.totalorder %s18, 4
    %s28 = sphi 0, %s30
    %s31 = sphi 0, %s28
    %s32 = sphi 0, %s31
    %s48 = sphi 0, %s32
    %s54 = sphi 0, %s56
    %s57 = sphi 0, %s54
    %s58 = sphi 0, %s57
    %s74 = sphi 0, %s58
    %s78 = sphi 0, %s78
    %s80 = sphi 0, %s78
    %s81 = sphi 0, %s80
    %s95 = sphi 0, %s81
    %s99 = sphi 0, %s99
    %s101 = sphi 0, %s99
    %s102 = sphi 0, %s101
    %s116 = sphi 0, %s102
    %s120 = sphi 0, %s120
    %s122 = sphi 0, %s120
    %s123 = sphi 0, %s122
    %s137 = sphi 0, %s123
    %s141 = sphi 0, %s141
    %s143 = sphi 0, %s141
    %s144 = sphi 0, %s143
    %s158 = sphi 0, %s144
    %s162 = sphi 0, %s162
    %s164 = sphi 0, %s162
    %s165 = sphi 0, %s164
    %s179 = sphi 0, %s165
    %s183 = sphi 0, %s183
    %s185 = sphi 0, %s183
    %s186 = sphi 0, %s185
    %s200 = sphi 0, %s186
    %s204 = sphi 0, %s204
    %s206 = sphi 0, %s204
    %s207 = sphi 0, %s206
    %s221 = sphi 0, %s207
    %s225 = sphi 0, %s225
    %s227 = sphi 0, %s225
    %s228 = sphi 0, %s227
    %s242 = sphi 0, %s228
    %s246 = sphi 0, %s246
    %s248 = sphi 0, %s246
    %s249 = sphi 0, %s248
    %s263 = sphi 0, %s249
    %s267 = sphi 0, %s267
    %s269 = sphi 0, %s267
    %s270 = sphi 0, %s269
    %s284 = sphi 0, %s270
    %s290 = sphi 0, %s292
    %s293 = sphi 0, %s290
    %s294 = sphi 0, %s293
    %s310 = sphi 0, %s294
  $region4: #{trfm_seq2seq_forward.19} parent=0 // loop_header_branch
    %21 = sbr.rel (%p19) target = $region8
  $region5: #{trfm_seq2seq_forward.19} parent=0 // loop_body
    %s23 = ssub.s32 %s18, 1
    %s24 = ssub.s32 %s18, 2
    %s25 = sadd.s32 %s18, 1
    %s26 = ssub.s32 %s18, %s25
    %p27 = scmp.eq.s32.totalorder %s26, 0
    %s29 = sadd.s32 %s28, 1
    %s30 = scalar_select %p27, %s28, %s29
    %p33 = pneg %p27
    %p34 = scmp.eq.s32.totalorder %s18, 1
    %p35 = por %p33, %p34
    %p36 = scmp.ne.s32.totalorder %s28, %s31
    %p37 = scmp.eq.s32.totalorder %s18, 0
    %p38 = por %p36, %p37
    %p39 = scmp.ne.s32.totalorder %s28, %s31
    %p40 = scmp.eq.s32.totalorder %s23, 1
    %p41 = por %p39, %p40
    %p42 = scmp.ne.s32.totalorder %s31, %s32
    %p43 = scmp.eq.s32.totalorder %s23, 0
    %p44 = por %p42, %p43
    %p45 = scmp.ne.s32.totalorder %s31, %s32
    %p46 = scmp.eq.s32.totalorder %s24, 1
    %p47 = por %p45, %p46
    %p49 = scmp.ne.s32.totalorder %s32, %s48
    %p50 = scmp.eq.s32.totalorder %s24, 0
    %p51 = por %p49, %p50
    %s52 = ssub.s32 %s18, %s25
    %p53 = scmp.eq.s32.totalorder %s52, 0
    %s55 = sadd.s32 %s54, 1
    %s56 = scalar_select %p53, %s54, %s55
    %p59 = pneg %p53
    %p60 = scmp.eq.s32.totalorder %s18, 1
    %p61 = por %p59, %p60
    %p62 = scmp.ne.s32.totalorder %s54, %s57
    %p63 = scmp.eq.s32.totalorder %s18, 0
    %p64 = por %p62, %p63
    %p65 = scmp.ne.s32.totalorder %s54, %s57
    %p66 = scmp.eq.s32.totalorder %s23, 1
    %p67 = por %p65, %p66
    %p68 = scmp.ne.s32.totalorder %s57, %s58
    %p69 = scmp.eq.s32.totalorder %s23, 0
    %p70 = por %p68, %p69
    %p71 = scmp.ne.s32.totalorder %s57, %s58
    %p72 = scmp.eq.s32.totalorder %s24, 1
    %p73 = por %p71, %p72
    %p75 = scmp.ne.s32.totalorder %s58, %s74
    %p76 = scmp.eq.s32.totalorder %s24, 0
    %p77 = por %p75, %p76
    %s79 = sadd.s32 %s78, 1
    %p82 = scmp.eq.s32.totalorder %s18, 1
    %p83 = scmp.ne.s32.totalorder %s78, %s80
    %p84 = scmp.eq.s32.totalorder %s18, 0
    %p85 = por %p83, %p84
    %p86 = scmp.ne.s32.totalorder %s78, %s80
    %p87 = scmp.eq.s32.totalorder %s23, 1
    %p88 = por %p86, %p87
    %p89 = scmp.ne.s32.totalorder %s80, %s81
    %p90 = scmp.eq.s32.totalorder %s23, 0
    %p91 = por %p89, %p90
    %p92 = scmp.ne.s32.totalorder %s80, %s81
    %p93 = scmp.eq.s32.totalorder %s24, 1
    %p94 = por %p92, %p93
    %p96 = scmp.ne.s32.totalorder %s81, %s95
    %p97 = scmp.eq.s32.totalorder %s24, 0
    %p98 = por %p96, %p97
    %s100 = sadd.s32 %s99, 1
    %p103 = scmp.eq.s32.totalorder %s18, 1
    %p104 = scmp.ne.s32.totalorder %s99, %s101
    %p105 = scmp.eq.s32.totalorder %s18, 0
    %p106 = por %p104, %p105
    %p107 = scmp.ne.s32.totalorder %s99, %s101
    %p108 = scmp.eq.s32.totalorder %s23, 1
    %p109 = por %p107, %p108
    %p110 = scmp.ne.s32.totalorder %s101, %s102
    %p111 = scmp.eq.s32.totalorder %s23, 0
    %p112 = por %p110, %p111
    %p113 = scmp.ne.s32.totalorder %s101, %s102
    %p114 = scmp.eq.s32.totalorder %s24, 1
    %p115 = por %p113, %p114
    %p117 = scmp.ne.s32.totalorder %s102, %s116
    %p118 = scmp.eq.s32.totalorder %s24, 0
    %p119 = por %p117, %p118
    %s121 = sadd.s32 %s120, 1
    %p124 = scmp.eq.s32.totalorder %s18, 1
    %p125 = scmp.ne.s32.totalorder %s120, %s122
    %p126 = scmp.eq.s32.totalorder %s18, 0
    %p127 = por %p125, %p126
    %p128 = scmp.ne.s32.totalorder %s120, %s122
    %p129 = scmp.eq.s32.totalorder %s23, 1
    %p130 = por %p128, %p129
    %p131 = scmp.ne.s32.totalorder %s122, %s123
    %p132 = scmp.eq.s32.totalorder %s23, 0
    %p133 = por %p131, %p132
    %p134 = scmp.ne.s32.totalorder %s122, %s123
    %p135 = scmp.eq.s32.totalorder %s24, 1
    %p136 = por %p134, %p135
    %p138 = scmp.ne.s32.totalorder %s123, %s137
    %p139 = scmp.eq.s32.totalorder %s24, 0
    %p140 = por %p138, %p139
    %s142 = sadd.s32 %s141, 1
    %p145 = scmp.eq.s32.totalorder %s18, 1
    %p146 = scmp.ne.s32.totalorder %s141, %s143
    %p147 = scmp.eq.s32.totalorder %s18, 0
    %p148 = por %p146, %p147
    %p149 = scmp.ne.s32.totalorder %s141, %s143
    %p150 = scmp.eq.s32.totalorder %s23, 1
    %p151 = por %p149, %p150
    %p152 = scmp.ne.s32.totalorder %s143, %s144
    %p153 = scmp.eq.s32.totalorder %s23, 0
    %p154 = por %p152, %p153
    %p155 = scmp.ne.s32.totalorder %s143, %s144
    %p156 = scmp.eq.s32.totalorder %s24, 1
    %p157 = por %p155, %p156
    %p159 = scmp.ne.s32.totalorder %s144, %s158
    %p160 = scmp.eq.s32.totalorder %s24, 0
    %p161 = por %p159, %p160
    %s163 = sadd.s32 %s162, 1
    %p166 = scmp.eq.s32.totalorder %s18, 1
    %p167 = scmp.ne.s32.totalorder %s162, %s164
    %p168 = scmp.eq.s32.totalorder %s18, 0
    %p169 = por %p167, %p168
    %p170 = scmp.ne.s32.totalorder %s162, %s164
    %p171 = scmp.eq.s32.totalorder %s23, 1
    %p172 = por %p170, %p171
    %p173 = scmp.ne.s32.totalorder %s164, %s165
    %p174 = scmp.eq.s32.totalorder %s23, 0
    %p175 = por %p173, %p174
    %p176 = scmp.ne.s32.totalorder %s164, %s165
    %p177 = scmp.eq.s32.totalorder %s24, 1
    %p178 = por %p176, %p177
    %p180 = scmp.ne.s32.totalorder %s165, %s179
    %p181 = scmp.eq.s32.totalorder %s24, 0
    %p182 = por %p180, %p181
    %s184 = sadd.s32 %s183, 1
    %p187 = scmp.eq.s32.totalorder %s18, 1
    %p188 = scmp.ne.s32.totalorder %s183, %s185
    %p189 = scmp.eq.s32.totalorder %s18, 0
    %p190 = por %p188, %p189
    %p191 = scmp.ne.s32.totalorder %s183, %s185
    %p192 = scmp.eq.s32.totalorder %s23, 1
    %p193 = por %p191, %p192
    %p194 = scmp.ne.s32.totalorder %s185, %s186
    %p195 = scmp.eq.s32.totalorder %s23, 0
    %p196 = por %p194, %p195
    %p197 = scmp.ne.s32.totalorder %s185, %s186
    %p198 = scmp.eq.s32.totalorder %s24, 1
    %p199 = por %p197, %p198
    %p201 = scmp.ne.s32.totalorder %s186, %s200
    %p202 = scmp.eq.s32.totalorder %s24, 0
    %p203 = por %p201, %p202
    %s205 = sadd.s32 %s204, 1
    %p208 = scmp.eq.s32.totalorder %s18, 1
    %p209 = scmp.ne.s32.totalorder %s204, %s206
    %p210 = scmp.eq.s32.totalorder %s18, 0
    %p211 = por %p209, %p210
    %p212 = scmp.ne.s32.totalorder %s204, %s206
    %p213 = scmp.eq.s32.totalorder %s23, 1
    %p214 = por %p212, %p213
    %p215 = scmp.ne.s32.totalorder %s206, %s207
    %p216 = scmp.eq.s32.totalorder %s23, 0
    %p217 = por %p215, %p216
    %p218 = scmp.ne.s32.totalorder %s206, %s207
    %p219 = scmp.eq.s32.totalorder %s24, 1
    %p220 = por %p218, %p219
    %p222 = scmp.ne.s32.totalorder %s207, %s221
    %p223 = scmp.eq.s32.totalorder %s24, 0
    %p224 = por %p222, %p223
    %s226 = sadd.s32 %s225, 1
    %p229 = scmp.eq.s32.totalorder %s18, 1
    %p230 = scmp.ne.s32.totalorder %s225, %s227
    %p231 = scmp.eq.s32.totalorder %s18, 0
    %p232 = por %p230, %p231
    %p233 = scmp.ne.s32.totalorder %s225, %s227
    %p234 = scmp.eq.s32.totalorder %s23, 1
    %p235 = por %p233, %p234
    %p236 = scmp.ne.s32.totalorder %s227, %s228
    %p237 = scmp.eq.s32.totalorder %s23, 0
    %p238 = por %p236, %p237
    %p239 = scmp.ne.s32.totalorder %s227, %s228
    %p240 = scmp.eq.s32.totalorder %s24, 1
    %p241 = por %p239, %p240
    %p243 = scmp.ne.s32.totalorder %s228, %s242
    %p244 = scmp.eq.s32.totalorder %s24, 0
    %p245 = por %p243, %p244
    %s247 = sadd.s32 %s246, 1
    %p250 = scmp.eq.s32.totalorder %s18, 1
    %p251 = scmp.ne.s32.totalorder %s246, %s248
    %p252 = scmp.eq.s32.totalorder %s18, 0
    %p253 = por %p251, %p252
    %p254 = scmp.ne.s32.totalorder %s246, %s248
    %p255 = scmp.eq.s32.totalorder %s23, 1
    %p256 = por %p254, %p255
    %p257 = scmp.ne.s32.totalorder %s248, %s249
    %p258 = scmp.eq.s32.totalorder %s23, 0
    %p259 = por %p257, %p258
    %p260 = scmp.ne.s32.totalorder %s248, %s249
    %p261 = scmp.eq.s32.totalorder %s24, 1
    %p262 = por %p260, %p261
    %p264 = scmp.ne.s32.totalorder %s249, %s263
    %p265 = scmp.eq.s32.totalorder %s24, 0
    %p266 = por %p264, %p265
    %s268 = sadd.s32 %s267, 1
    %p271 = scmp.eq.s32.totalorder %s18, 1
    %p272 = scmp.ne.s32.totalorder %s267, %s269
    %p273 = scmp.eq.s32.totalorder %s18, 0
    %p274 = por %p272, %p273
    %p275 = scmp.ne.s32.totalorder %s267, %s269
    %p276 = scmp.eq.s32.totalorder %s23, 1
    %p277 = por %p275, %p276
    %p278 = scmp.ne.s32.totalorder %s269, %s270
    %p279 = scmp.eq.s32.totalorder %s23, 0
    %p280 = por %p278, %p279
    %p281 = scmp.ne.s32.totalorder %s269, %s270
    %p282 = scmp.eq.s32.totalorder %s24, 1
    %p283 = por %p281, %p282
    %p285 = scmp.ne.s32.totalorder %s270, %s284
    %p286 = scmp.eq.s32.totalorder %s24, 0
    %p287 = por %p285, %p286
    %s288 = ssub.s32 %s18, %s25
    %p289 = scmp.eq.s32.totalorder %s288, 0
    %s291 = sadd.s32 %s290, 1
    %s292 = scalar_select %p289, %s290, %s291
    %p295 = pneg %p289
    %p296 = scmp.eq.s32.totalorder %s18, 1
    %p297 = por %p295, %p296
    %p298 = scmp.ne.s32.totalorder %s290, %s293
    %p299 = scmp.eq.s32.totalorder %s18, 0
    %p300 = por %p298, %p299
    %p301 = scmp.ne.s32.totalorder %s290, %s293
    %p302 = scmp.eq.s32.totalorder %s23, 1
    %p303 = por %p301, %p302
    %p304 = scmp.ne.s32.totalorder %s293, %s294
    %p305 = scmp.eq.s32.totalorder %s23, 0
    %p306 = por %p304, %p305
    %p307 = scmp.ne.s32.totalorder %s293, %s294
    %p308 = scmp.eq.s32.totalorder %s24, 1
    %p309 = por %p307, %p308
    %p311 = scmp.ne.s32.totalorder %s294, %s310
    %p312 = scmp.eq.s32.totalorder %s24, 0
    %p313 = por %p311, %p312
    %p314 = scmp.le.s32.totalorder 1, %s18
    %p315 = scmp.lt.s32.totalorder %s18, 3
    %p316 = pnand %p314, %p315
    %p317 = pneg %p316
    // Predicated region
    $region9: #{trfm_seq2seq_forward.19} parent=5 // pred_check
      _
    $region10: #{trfm_seq2seq_forward.19} parent=5 // pred_check_branch
      %319 = sbr.rel (%p316) target = $region12
    $region11: #{trfm_seq2seq_forward.19} parent=5 // pred_region
      %s320 = ssub.s32 %s18, 1
      // Predicated region
      $region13: #{trfm_seq2seq_forward.19} parent=11 // pred_check
        %p321 = pneg %p91
      $region14: #{trfm_seq2seq_forward.19} parent=11 // pred_check_branch
        %323 = sbr.rel (%p321) target = $region16
      $region15: #{trfm_seq2seq_forward.19} parent=11 // pred_region
        _
      $region16: #{trfm_seq2seq_forward.19} parent=11 // pred_fallthru
        _
      // Predicated region
      $region17: #{trfm_seq2seq_forward.19} parent=11 // pred_check
        %p324 = pneg %p112
      $region18: #{trfm_seq2seq_forward.19} parent=11 // pred_check_branch
        %326 = sbr.rel (%p324) target = $region20
      $region19: #{trfm_seq2seq_forward.19} parent=11 // pred_region
        _
      $region20: #{trfm_seq2seq_forward.19} parent=11 // pred_fallthru
        _
      // Predicated region
      $region21: #{trfm_seq2seq_forward.19} parent=11 // pred_check
        %p327 = pneg %p133
      $region22: #{trfm_seq2seq_forward.19} parent=11 // pred_check_branch
        %329 = sbr.rel (%p327) target = $region24
      $region23: #{trfm_seq2seq_forward.19} parent=11 // pred_region
        _
      $region24: #{trfm_seq2seq_forward.19} parent=11 // pred_fallthru
        _
      // Predicated region
      $region25: #{trfm_seq2seq_forward.19} parent=11 // pred_check
        %p330 = pneg %p154
      $region26: #{trfm_seq2seq_forward.19} parent=11 // pred_check_branch
        %332 = sbr.rel (%p330) target = $region28
      $region27: #{trfm_seq2seq_forward.19} parent=11 // pred_region
        _
      $region28: #{trfm_seq2seq_forward.19} parent=11 // pred_fallthru
        _
      // Predicated region
      $region29: #{trfm_seq2seq_forward.19} parent=11 // pred_check
        %p333 = pneg %p175
      $region30: #{trfm_seq2seq_forward.19} parent=11 // pred_check_branch
        %335 = sbr.rel (%p333) target = $region32
      $region31: #{trfm_seq2seq_forward.19} parent=11 // pred_region
        _
      $region32: #{trfm_seq2seq_forward.19} parent=11 // pred_fallthru
        _
      // Predicated region
      $region33: #{trfm_seq2seq_forward.19} parent=11 // pred_check
        %p336 = pneg %p196
      $region34: #{trfm_seq2seq_forward.19} parent=11 // pred_check_branch
        %338 = sbr.rel (%p336) target = $region36
      $region35: #{trfm_seq2seq_forward.19} parent=11 // pred_region
        _
      $region36: #{trfm_seq2seq_forward.19} parent=11 // pred_fallthru
        _
      // Predicated region
      $region37: #{trfm_seq2seq_forward.19} parent=11 // pred_check
        %p339 = pneg %p217
      $region38: #{trfm_seq2seq_forward.19} parent=11 // pred_check_branch
        %341 = sbr.rel (%p339) target = $region40
      $region39: #{trfm_seq2seq_forward.19} parent=11 // pred_region
        _
      $region40: #{trfm_seq2seq_forward.19} parent=11 // pred_fallthru
        _
      // Predicated region
      $region41: #{trfm_seq2seq_forward.19} parent=11 // pred_check
        %p342 = pneg %p238
      $region42: #{trfm_seq2seq_forward.19} parent=11 // pred_check_branch
        %344 = sbr.rel (%p342) target = $region44
      $region43: #{trfm_seq2seq_forward.19} parent=11 // pred_region
        _
      $region44: #{trfm_seq2seq_forward.19} parent=11 // pred_fallthru
        _
      // Predicated region
      $region45: #{trfm_seq2seq_forward.19} parent=11 // pred_check
        %p345 = pneg %p259
      $region46: #{trfm_seq2seq_forward.19} parent=11 // pred_check_branch
        %347 = sbr.rel (%p345) target = $region48
      $region47: #{trfm_seq2seq_forward.19} parent=11 // pred_region
        _
      $region48: #{trfm_seq2seq_forward.19} parent=11 // pred_fallthru
        _
      // Predicated region
      $region49: #{trfm_seq2seq_forward.19} parent=11 // pred_check
        %p348 = pneg %p280
      $region50: #{trfm_seq2seq_forward.19} parent=11 // pred_check_branch
        %350 = sbr.rel (%p348) target = $region52
      $region51: #{trfm_seq2seq_forward.19} parent=11 // pred_region
        _
      $region52: #{trfm_seq2seq_forward.19} parent=11 // pred_fallthru
        _
    $region12: #{trfm_seq2seq_forward.19} parent=5 // pred_fallthru
      _
    %p351 = scmp.lt.s32.totalorder %s18, 2
    // Predicated region
    $region53: #{trfm_seq2seq_forward.19} parent=5 // pred_check
      %p352 = pneg %p351
    $region54: #{trfm_seq2seq_forward.19} parent=5 // pred_check_branch
      %354 = sbr.rel (%p352) target = $region56
    $region55: #{trfm_seq2seq_forward.19} parent=5 // pred_region
      // Predicated region
      $region57: #{trfm_seq2seq_forward.19} parent=55 // pred_check
        %p355 = pneg %p38
      $region58: #{trfm_seq2seq_forward.19} parent=55 // pred_check_branch
        %357 = sbr.rel (%p355) target = $region60
      $region59: #{trfm_seq2seq_forward.19} parent=55 // pred_region
        %p358 = scmp.lt.s32.totalorder %s18, 1
        %s359 = scalar_select %p358, %s18, 1
        %s360 = smul.addr %s359, 4
        %s361 = scalar_lea.vmem %s0, %s360
      $region60: #{trfm_seq2seq_forward.19} parent=55 // pred_fallthru
        _
      // Predicated region
      $region61: #{trfm_seq2seq_forward.19} parent=55 // pred_check
        %p362 = pneg %p64
      $region62: #{trfm_seq2seq_forward.19} parent=55 // pred_check_branch
        %364 = sbr.rel (%p362) target = $region64
      $region63: #{trfm_seq2seq_forward.19} parent=55 // pred_region
        %p365 = scmp.lt.s32.totalorder %s18, 1
        %s366 = scalar_select %p365, %s18, 1
        %s367 = smul.addr %s366, 4
        %s368 = scalar_lea.vmem %s1, %s367
      $region64: #{trfm_seq2seq_forward.19} parent=55 // pred_fallthru
        _
    $region56: #{trfm_seq2seq_forward.19} parent=5 // pred_fallthru
      _
    %p369 = scmp.le.s32.totalorder 1, %s18
    %p370 = scmp.lt.s32.totalorder %s18, 3
    %p371 = pnand %p369, %p370
    %p372 = pneg %p371
    // Predicated region
    $region65: #{trfm_seq2seq_forward.19} parent=5 // pred_check
      _
    $region66: #{trfm_seq2seq_forward.19} parent=5 // pred_check_branch
      %374 = sbr.rel (%p371) target = $region68
    $region67: #{trfm_seq2seq_forward.19} parent=5 // pred_region
      %s375 = ssub.s32 %s18, 1
      %p376 = scmp.lt.s32.totalorder %s23, 1
      %s377 = scalar_select %p376, %s23, 1
      %s378 = smul.addr %s377, 4
      %s379 = scalar_lea.vmem %s0, %s378
      %p380 = pneg %p44
      %p381 = pneg %p41
      %p382 = scmp.lt.s32.totalorder %s23, 1
      %s383 = scalar_select %p382, %s23, 1
      %s384 = smul.addr %s383, 4
      %s385 = scalar_lea.vmem %s1, %s384
      %p386 = pneg %p70
      %p387 = pneg %p67
      %p388 = pneg %p91
      %p389 = pneg %p88
      %p390 = pneg %p112
      %p391 = pneg %p109
      %p392 = pneg %p133
      %p393 = pneg %p130
      %p394 = pneg %p154
      %p395 = pneg %p151
      %p396 = pneg %p175
      %p397 = pneg %p172
      %p398 = pneg %p196
      %p399 = pneg %p193
      %p400 = pneg %p217
      %p401 = pneg %p214
      %p402 = pneg %p238
      %p403 = pneg %p235
      %p404 = pneg %p259
      %p405 = pneg %p256
      %p406 = pneg %p280
      %p407 = pneg %p277
      %p408 = pneg %p306
      %p409 = pneg %p303
      %p410 = scmp.lt.s32.totalorder %s23, 1
      %s411 = scalar_select %p410, %s23, 1
      %s412 = smul.addr %s411, 4
      %s413 = scalar_lea.vmem %s12, %s412
      %p414 = scmp.lt.s32.totalorder %s23, 1
      %s415 = scalar_select %p414, %s23, 1
      %s416 = smul.addr %s415, 4
      %s417 = scalar_lea.vmem %s0, %s416
      %p418 = scmp.lt.s32.totalorder %s23, 1
      %s419 = scalar_select %p418, %s23, 1
      %s420 = smul.addr %s419, 4
      %s421 = scalar_lea.vmem %s1, %s420
      %p422 = scmp.lt.s32.totalorder %s23, 1
      %s423 = scalar_select %p422, %s23, 1
      %s424 = smul.addr %s423, 4
      %s425 = scalar_lea.vmem %s12, %s424
      %v427 = vld [vmem:[%s417] sm:$0xf]
      %v428 = vld [vmem:[%s421] sm:$0xf]
      %v429 = vld [vmem:[%s9] sm:$0x1]
      %v430 = vunpack.c.l.bf16 %v427
      %v432 = vlaneseq
      %v433 = vshrl.u32 %v432, 7
      %v434 = vsub.s32 0, %v433
      %v435 = vrot.slane %v429, %v434
      %v437 = vadd.f32 %v435, %v430
      %v438 = vld [vmem:[%s2] sm:$0xf]
      %v439 = vld [vmem:[%s2 + $0x4] sm:$0xf]
      %v440 = vld [vmem:[%s2 + $0x8] sm:$0xf]
      %v441 = vld [vmem:[%s2 + $0xc] sm:$0xf]
      %v442 = vld [vmem:[%s5] sm:$0x1]
      %v444 = vlaneseq
      %v445 = vshrl.u32 %v444, 7
      %v446 = vsub.s32 0, %v445
      %v447 = vrot.slane %v442, %v446
      %v453 = vunpack.c.l.b16 %v438
      %v454 = vunpack.c.l.b16 %v439
      %v455 = vunpack.c.l.b16 %v440
      %v456 = vunpack.c.l.b16 %v441
      %v457 = vpack.c.b16 %v454, %v453
      %v458 = vpack.c.b16 %v456, %v455
      %vm461 = vcmask 261120
      %v463 = vsel %vm461, %v427, 0
      %465 = vmatprep.subr.bf16.mxu0 0
      %466 = vmatpush1.bf16.msra.mxu0 %v457
      %467 = vmatprep.subr.bf16.mxu0 0
      %468 = vmatpush1.bf16.msra.mxu0 %v458
      %469 = vmatprep.subr.bf16.mxu0 0
      %470 = vmatpush1.bf16.msra.mxu0 0
      %471 = vmatprep.subr.bf16.mxu0 0
      %472 = vmatpush1.bf16.msra.mxu0 0
      %473 = vmatprep.subr.bf16.mxu0 0
      %474 = vmatpush1.bf16.msra.mxu0 0
      %475 = vmatprep.subr.bf16.mxu0 0
      %476 = vmatpush1.bf16.msra.mxu0 0
      %477 = vmatprep.subr.bf16.mxu0 0
      %478 = vmatpush1.bf16.msra.mxu0 0
      %479 = vmatprep.subr.bf16.mxu0 0
      %480 = vmatpush1.bf16.msra.mxu0 0
      %481 = vmatprep.subr.bf16.mxu0 0
      %482 = vmatpush1.bf16.msra.mxu0 0
      %483 = vmatprep.subr.bf16.mxu0 0
      %484 = vmatpush1.bf16.msra.mxu0 0
      %485 = vmatprep.subr.bf16.mxu0 0
      %486 = vmatpush1.bf16.msra.mxu0 0
      %487 = vmatprep.subr.bf16.mxu0 0
      %488 = vmatpush1.bf16.msra.mxu0 0
      %489 = vmatprep.subr.bf16.mxu0 0
      %490 = vmatpush1.bf16.msra.mxu0 0
      %491 = vmatprep.subr.bf16.mxu0 0
      %492 = vmatpush1.bf16.msra.mxu0 0
      %493 = vmatprep.subr.bf16.mxu0 0
      %494 = vmatpush1.bf16.msra.mxu0 0
      %495 = vmatprep.subr.bf16.mxu0 0
      %496 = vmatpush1.bf16.msra.mxu0 0
      %497 = vmatprep.mubr.bf16.mxu0 0
      %498 = vmatmul.mubr.bf16.gmra.mrb[0].mxu0 %v463
      %v499 = vpop.f32.mrb[0].mxu0
      %v500 = vadd.f32 %v447, %v499
      %v501 = vpop.f32.mrb[0].mxu0
      %v502 = vpop.f32.mrb[0].mxu0
      %v503 = vpop.f32.mrb[0].mxu0
      %504 = vdwg.mxu0
      %v505 = vld [vmem:[%s3] sm:$0xf]
      %v506 = vld [vmem:[%s3 + $0x4] sm:$0xf]
      %v507 = vld [vmem:[%s3 + $0x8] sm:$0xf]
      %v508 = vld [vmem:[%s3 + $0xc] sm:$0xf]
      %v509 = vld [vmem:[%s6] sm:$0x1]
      %v511 = vlaneseq
      %v512 = vshrl.u32 %v511, 7
      %v513 = vsub.s32 0, %v512
      %v514 = vrot.slane %v509, %v513
      %v520 = vunpack.c.l.b16 %v505
      %v521 = vunpack.c.l.b16 %v506
      %v522 = vunpack.c.l.b16 %v507
      %v523 = vunpack.c.l.b16 %v508
      %v524 = vpack.c.b16 %v521, %v520
      %v525 = vpack.c.b16 %v523, %v522
      %v529 = vsel %vm461, %v428, 0
      %531 = vmatprep.subr.bf16.mxu0 0
      %532 = vmatpush1.bf16.msra.mxu0 %v524
      %533 = vmatprep.subr.bf16.mxu0 0
      %534 = vmatpush1.bf16.msra.mxu0 %v525
      %535 = vmatprep.subr.bf16.mxu0 0
      %536 = vmatpush1.bf16.msra.mxu0 0
      %537 = vmatprep.subr.bf16.mxu0 0
      %538 = vmatpush1.bf16.msra.mxu0 0
      %539 = vmatprep.subr.bf16.mxu0 0
      %540 = vmatpush1.bf16.msra.mxu0 0
      %541 = vmatprep.subr.bf16.mxu0 0
      %542 = vmatpush1.bf16.msra.mxu0 0
      %543 = vmatprep.subr.bf16.mxu0 0
      %544 = vmatpush1.bf16.msra.mxu0 0
      %545 = vmatprep.subr.bf16.mxu0 0
      %546 = vmatpush1.bf16.msra.mxu0 0
      %547 = vmatprep.subr.bf16.mxu0 0
      %548 = vmatpush1.bf16.msra.mxu0 0
      %549 = vmatprep.subr.bf16.mxu0 0
      %550 = vmatpush1.bf16.msra.mxu0 0
      %551 = vmatprep.subr.bf16.mxu0 0
      %552 = vmatpush1.bf16.msra.mxu0 0
      %553 = vmatprep.subr.bf16.mxu0 0
      %554 = vmatpush1.bf16.msra.mxu0 0
      %555 = vmatprep.subr.bf16.mxu0 0
      %556 = vmatpush1.bf16.msra.mxu0 0
      %557 = vmatprep.subr.bf16.mxu0 0
      %558 = vmatpush1.bf16.msra.mxu0 0
      %559 = vmatprep.subr.bf16.mxu0 0
      %560 = vmatpush1.bf16.msra.mxu0 0
      %561 = vmatprep.subr.bf16.mxu0 0
      %562 = vmatpush1.bf16.msra.mxu0 0
      %563 = vmatprep.mubr.bf16.mxu0 0
      %564 = vmatmul.mubr.bf16.gmra.mrb[0].mxu0 %v529
      %v565 = vpop.f32.mrb[0].mxu0
      %v566 = vadd.f32 %v514, %v565
      %v567 = vpop.f32.mrb[0].mxu0
      %v568 = vpop.f32.mrb[0].mxu0
      %v569 = vpop.f32.mrb[0].mxu0
      %570 = vdwg.mxu0
      %v571 = vld [vmem:[%s4] sm:$0xf]
      %v572 = vld [vmem:[%s4 + $0x4] sm:$0xf]
      %v573 = vld [vmem:[%s4 + $0x8] sm:$0xf]
      %v574 = vld [vmem:[%s4 + $0xc] sm:$0xf]
      %v575 = vld [vmem:[%s7] sm:$0x1]
      %v577 = vlaneseq
      %v578 = vshrl.u32 %v577, 7
      %v579 = vsub.s32 0, %v578
      %v580 = vrot.slane %v575, %v579
      %v586 = vunpack.c.l.b16 %v571
      %v587 = vunpack.c.l.b16 %v572
      %v588 = vunpack.c.l.b16 %v573
      %v589 = vunpack.c.l.b16 %v574
      %v590 = vpack.c.b16 %v587, %v586
      %v591 = vpack.c.b16 %v589, %v588
      %594 = vmatprep.subr.bf16.mxu0 0
      %595 = vmatpush1.bf16.msra.mxu0 %v590
      %596 = vmatprep.subr.bf16.mxu0 0
      %597 = vmatpush1.bf16.msra.mxu0 %v591
      %598 = vmatprep.subr.bf16.mxu0 0
      %599 = vmatpush1.bf16.msra.mxu0 0
      %600 = vmatprep.subr.bf16.mxu0 0
      %601 = vmatpush1.bf16.msra.mxu0 0
      %602 = vmatprep.subr.bf16.mxu0 0
      %603 = vmatpush1.bf16.msra.mxu0 0
      %604 = vmatprep.subr.bf16.mxu0 0
      %605 = vmatpush1.bf16.msra.mxu0 0
      %606 = vmatprep.subr.bf16.mxu0 0
      %607 = vmatpush1.bf16.msra.mxu0 0
      %608 = vmatprep.subr.bf16.mxu0 0
      %609 = vmatpush1.bf16.msra.mxu0 0
      %610 = vmatprep.subr.bf16.mxu0 0
      %611 = vmatpush1.bf16.msra.mxu0 0
      %612 = vmatprep.subr.bf16.mxu0 0
      %613 = vmatpush1.bf16.msra.mxu0 0
      %614 = vmatprep.subr.bf16.mxu0 0
      %615 = vmatpush1.bf16.msra.mxu0 0
      %616 = vmatprep.subr.bf16.mxu0 0
      %617 = vmatpush1.bf16.msra.mxu0 0
      %618 = vmatprep.subr.bf16.mxu0 0
      %619 = vmatpush1.bf16.msra.mxu0 0
      %620 = vmatprep.subr.bf16.mxu0 0
      %621 = vmatpush1.bf16.msra.mxu0 0
      %622 = vmatprep.subr.bf16.mxu0 0
      %623 = vmatpush1.bf16.msra.mxu0 0
      %624 = vmatprep.subr.bf16.mxu0 0
      %625 = vmatpush1.bf16.msra.mxu0 0
      %626 = vmatprep.mubr.bf16.mxu0 0
      %627 = vmatmul.mubr.bf16.gmra.mrb[0].mxu0 %v529
      %v628 = vpop.f32.mrb[0].mxu0
      %v629 = vadd.f32 %v580, %v628
      %v630 = vpop.f32.mrb[0].mxu0
      %v631 = vpop.f32.mrb[0].mxu0
      %v632 = vpop.f32.mrb[0].mxu0
      %633 = vdwg.mxu0
      %v634 = vpack.c.bf16 %v500, %v500
      %v635 = vpack.c.bf16 %v566, %v566
      %vm636 = vcmask 64512
      %v638 = vsel %vm636, %v634, 0
      %v641 = vsel %vm636, %v635, 0
      %643 = vmatprep.subr.bf16.mxu0 0
      %644 = vmatpush1.bf16.xpose.msra.mxu0 %v641
      %645 = vmatprep.subr.bf16.mxu0 0
      %646 = vmatpush1.bf16.xpose.msra.mxu0 0
      %647 = vmatprep.subr.bf16.mxu0 0
      %648 = vmatpush1.bf16.xpose.msra.mxu0 0
      %649 = vmatprep.subr.bf16.mxu0 0
      %650 = vmatpush1.bf16.xpose.msra.mxu0 0
      %651 = vmatprep.subr.bf16.mxu0 0
      %652 = vmatpush1.bf16.xpose.msra.mxu0 0
      %653 = vmatprep.subr.bf16.mxu0 0
      %654 = vmatpush1.bf16.xpose.msra.mxu0 0
      %655 = vmatprep.subr.bf16.mxu0 0
      %656 = vmatpush1.bf16.xpose.msra.mxu0 0
      %657 = vmatprep.subr.bf16.mxu0 0
      %658 = vmatpush1.bf16.xpose.msra.mxu0 0
      %659 = vmatprep.subr.bf16.mxu0 0
      %660 = vmatpush1.bf16.xpose.msra.mxu0 0
      %661 = vmatprep.subr.bf16.mxu0 0
      %662 = vmatpush1.bf16.xpose.msra.mxu0 0
      %663 = vmatprep.subr.bf16.mxu0 0
      %664 = vmatpush1.bf16.xpose.msra.mxu0 0
      %665 = vmatprep.subr.bf16.mxu0 0
      %666 = vmatpush1.bf16.xpose.msra.mxu0 0
      %667 = vmatprep.subr.bf16.mxu0 0
      %668 = vmatpush1.bf16.xpose.msra.mxu0 0
      %669 = vmatprep.subr.bf16.mxu0 0
      %670 = vmatpush1.bf16.xpose.msra.mxu0 0
      %671 = vmatprep.subr.bf16.mxu0 0
      %672 = vmatpush1.bf16.xpose.msra.mxu0 0
      %673 = vmatprep.subr.bf16.mxu0 0
      %674 = vmatpush1.bf16.xpose.msra.mxu0 0
      %675 = vmatprep.mubr.bf16.mxu0 0
      %676 = vmatmul.mubr.bf16.gmra.mrb[0].mxu0 %v638
      %v677 = vpop.f32.mrb[0].mxu0
      %v678 = vadd.f32 0.0, %v677
      %v679 = vpop.f32.mrb[0].mxu0
      %v680 = vpop.f32.mrb[0].mxu0
      %v681 = vpop.f32.mrb[0].mxu0
      %682 = vdwg.mxu0
      %v683 = vmul.f32 %v678, 0.35355338
      %v684 = vsel %vm636, %v683, -inf
      %685 = vmax.xlane.f32.xlu0 %v684
      %v686 = vpop.xlane.xlu0 %685
      %v687 = vsub.f32 %v683, %v686
      %v688 = vmul.f32 %v687, 1.442695
      %v689 = vpow.pop %v688
      %v690 = vsel %vm636, %v689, 0.0
      %691 = vadd.xlane.f32.xlu0 %v690
      %v692 = vpop.xlane.xlu0 %691
      %v693 = vrcp.pop %v692
      %v694 = vmul.f32 %v689, %v693
      %v695 = vpack.c.bf16 %v694, %v694
      %v696 = vpack.c.bf16 %v629, %v629
      %v698 = vsel %vm636, %v695, 0
      %vm700 = vcmask 1043456
      %v702 = vsel %vm700, %v696, 0
      %704 = vmatprep.subr.bf16.mxu0 0
      %705 = vmatpush1.bf16.msra.mxu0 %v702
      %706 = vmatprep.subr.bf16.mxu0 0
      %707 = vmatpush1.bf16.msra.mxu0 0
      %708 = vmatprep.subr.bf16.mxu0 0
      %709 = vmatpush1.bf16.msra.mxu0 0
      %710 = vmatprep.subr.bf16.mxu0 0
      %711 = vmatpush1.bf16.msra.mxu0 0
      %712 = vmatprep.subr.bf16.mxu0 0
      %713 = vmatpush1.bf16.msra.mxu0 0
      %714 = vmatprep.subr.bf16.mxu0 0
      %715 = vmatpush1.bf16.msra.mxu0 0
      %716 = vmatprep.subr.bf16.mxu0 0
      %717 = vmatpush1.bf16.msra.mxu0 0
      %718 = vmatprep.subr.bf16.mxu0 0
      %719 = vmatpush1.bf16.msra.mxu0 0
      %720 = vmatprep.subr.bf16.mxu0 0
      %721 = vmatpush1.bf16.msra.mxu0 0
      %722 = vmatprep.subr.bf16.mxu0 0
      %723 = vmatpush1.bf16.msra.mxu0 0
      %724 = vmatprep.subr.bf16.mxu0 0
      %725 = vmatpush1.bf16.msra.mxu0 0
      %726 = vmatprep.subr.bf16.mxu0 0
      %727 = vmatpush1.bf16.msra.mxu0 0
      %728 = vmatprep.subr.bf16.mxu0 0
      %729 = vmatpush1.bf16.msra.mxu0 0
      %730 = vmatprep.subr.bf16.mxu0 0
      %731 = vmatpush1.bf16.msra.mxu0 0
      %732 = vmatprep.subr.bf16.mxu0 0
      %733 = vmatpush1.bf16.msra.mxu0 0
      %734 = vmatprep.subr.bf16.mxu0 0
      %735 = vmatpush1.bf16.msra.mxu0 0
      %736 = vmatprep.mubr.bf16.mxu0 0
      %737 = vmatmul.mubr.bf16.gmra.mrb[0].mxu0 %v698
      %v738 = vpop.f32.mrb[0].mxu0
      %v739 = vadd.f32 0.0, %v738
      %v740 = vpop.f32.mrb[0].mxu0
      %v741 = vpop.f32.mrb[0].mxu0
      %v742 = vpop.f32.mrb[0].mxu0
      %743 = vdwg.mxu0
      %v744 = vpack.c.bf16 %v739, %v739
      %v745 = vld [vmem:[%s8] sm:$0xf]
      %v747 = vsel %vm636, %v744, 0
      %v750 = vsel %vm700, %v745, 0
      %752 = vmatprep.subr.bf16.mxu0 0
      %753 = vmatpush1.bf16.msra.mxu0 %v750
      %754 = vmatprep.subr.bf16.mxu0 0
      %755 = vmatpush1.bf16.msra.mxu0 0
      %756 = vmatprep.subr.bf16.mxu0 0
      %757 = vmatpush1.bf16.msra.mxu0 0
      %758 = vmatprep.subr.bf16.mxu0 0
      %759 = vmatpush1.bf16.msra.mxu0 0
      %760 = vmatprep.subr.bf16.mxu0 0
      %761 = vmatpush1.bf16.msra.mxu0 0
      %762 = vmatprep.subr.bf16.mxu0 0
      %763 = vmatpush1.bf16.msra.mxu0 0
      %764 = vmatprep.subr.bf16.mxu0 0
      %765 = vmatpush1.bf16.msra.mxu0 0
      %766 = vmatprep.subr.bf16.mxu0 0
      %767 = vmatpush1.bf16.msra.mxu0 0
      %768 = vmatprep.subr.bf16.mxu0 0
      %769 = vmatpush1.bf16.msra.mxu0 0
      %770 = vmatprep.subr.bf16.mxu0 0
      %771 = vmatpush1.bf16.msra.mxu0 0
      %772 = vmatprep.subr.bf16.mxu0 0
      %773 = vmatpush1.bf16.msra.mxu0 0
      %774 = vmatprep.subr.bf16.mxu0 0
      %775 = vmatpush1.bf16.msra.mxu0 0
      %776 = vmatprep.subr.bf16.mxu0 0
      %777 = vmatpush1.bf16.msra.mxu0 0
      %778 = vmatprep.subr.bf16.mxu0 0
      %779 = vmatpush1.bf16.msra.mxu0 0
      %780 = vmatprep.subr.bf16.mxu0 0
      %781 = vmatpush1.bf16.msra.mxu0 0
      %782 = vmatprep.subr.bf16.mxu0 0
      %783 = vmatpush1.bf16.msra.mxu0 0
      %784 = vmatprep.mubr.bf16.mxu0 0
      %785 = vmatmul.mubr.bf16.gmra.mrb[0].mxu0 %v747
      %v786 = vpop.f32.mrb[0].mxu0
      %v787 = vadd.f32 0.0, %v786
      %v788 = vpop.f32.mrb[0].mxu0
      %v789 = vpop.f32.mrb[0].mxu0
      %v790 = vpop.f32.mrb[0].mxu0
      %791 = vdwg.mxu0
      %v792 = vadd.f32 %v437, %v787
      %s793 = scalar_lea.vmem %s2, 16
      %v794 = vld [vmem:[%s793] sm:$0xf]
      %v795 = vld [vmem:[%s793 + $0x4] sm:$0xf]
      %v796 = vld [vmem:[%s793 + $0x8] sm:$0xf]
      %v797 = vld [vmem:[%s793 + $0xc] sm:$0xf]
      %s798 = scalar_lea.vmem %s5, 1
      %v799 = vld [vmem:[%s798] sm:$0x1]
      %v801 = vlaneseq
      %v802 = vshrl.u32 %v801, 7
      %v803 = vsub.s32 0, %v802
      %v804 = vrot.slane %v799, %v803
      %v810 = vunpack.c.l.b16 %v794
      %v811 = vunpack.c.l.b16 %v795
      %v812 = vunpack.c.l.b16 %v796
      %v813 = vunpack.c.l.b16 %v797
      %v814 = vpack.c.b16 %v811, %v810
      %v815 = vpack.c.b16 %v813, %v812
      %818 = vmatprep.subr.bf16.mxu0 0
      %819 = vmatpush1.bf16.msra.mxu0 %v814
      %820 = vmatprep.subr.bf16.mxu0 0
      %821 = vmatpush1.bf16.msra.mxu0 %v815
      %822 = vmatprep.subr.bf16.mxu0 0
      %823 = vmatpush1.bf16.msra.mxu0 0
      %824 = vmatprep.subr.bf16.mxu0 0
      %825 = vmatpush1.bf16.msra.mxu0 0
      %826 = vmatprep.subr.bf16.mxu0 0
      %827 = vmatpush1.bf16.msra.mxu0 0
      %828 = vmatprep.subr.bf16.mxu0 0
      %829 = vmatpush1.bf16.msra.mxu0 0
      %830 = vmatprep.subr.bf16.mxu0 0
      %831 = vmatpush1.bf16.msra.mxu0 0
      %832 = vmatprep.subr.bf16.mxu0 0
      %833 = vmatpush1.bf16.msra.mxu0 0
      %834 = vmatprep.subr.bf16.mxu0 0
      %835 = vmatpush1.bf16.msra.mxu0 0
      %836 = vmatprep.subr.bf16.mxu0 0
      %837 = vmatpush1.bf16.msra.mxu0 0
      %838 = vmatprep.subr.bf16.mxu0 0
      %839 = vmatpush1.bf16.msra.mxu0 0
      %840 = vmatprep.subr.bf16.mxu0 0
      %841 = vmatpush1.bf16.msra.mxu0 0
      %842 = vmatprep.subr.bf16.mxu0 0
      %843 = vmatpush1.bf16.msra.mxu0 0
      %844 = vmatprep.subr.bf16.mxu0 0
      %845 = vmatpush1.bf16.msra.mxu0 0
      %846 = vmatprep.subr.bf16.mxu0 0
      %847 = vmatpush1.bf16.msra.mxu0 0
      %848 = vmatprep.subr.bf16.mxu0 0
      %849 = vmatpush1.bf16.msra.mxu0 0
      %850 = vmatprep.mubr.bf16.mxu0 0
      %851 = vmatmul.mubr.bf16.gmra.mrb[0].mxu0 %v463
      %v852 = vpop.f32.mrb[0].mxu0
      %v853 = vadd.f32 %v804, %v852
      %v854 = vpop.f32.mrb[0].mxu0
      %v855 = vpop.f32.mrb[0].mxu0
      %v856 = vpop.f32.mrb[0].mxu0
      %857 = vdwg.mxu0
      %s858 = scalar_lea.vmem %s3, 16
      %v859 = vld [vmem:[%s858] sm:$0xf]
      %v860 = vld [vmem:[%s858 + $0x4] sm:$0xf]
      %v861 = vld [vmem:[%s858 + $0x8] sm:$0xf]
      %v862 = vld [vmem:[%s858 + $0xc] sm:$0xf]
      %s863 = scalar_lea.vmem %s6, 1
      %v864 = vld [vmem:[%s863] sm:$0x1]
      %v866 = vlaneseq
      %v867 = vshrl.u32 %v866, 7
      %v868 = vsub.s32 0, %v867
      %v869 = vrot.slane %v864, %v868
      %v875 = vunpack.c.l.b16 %v859
      %v876 = vunpack.c.l.b16 %v860
      %v877 = vunpack.c.l.b16 %v861
      %v878 = vunpack.c.l.b16 %v862
      %v879 = vpack.c.b16 %v876, %v875
      %v880 = vpack.c.b16 %v878, %v877
      %883 = vmatprep.subr.bf16.mxu0 0
      %884 = vmatpush1.bf16.msra.mxu0 %v879
      %885 = vmatprep.subr.bf16.mxu0 0
      %886 = vmatpush1.bf16.msra.mxu0 %v880
      %887 = vmatprep.subr.bf16.mxu0 0
      %888 = vmatpush1.bf16.msra.mxu0 0
      %889 = vmatprep.subr.bf16.mxu0 0
      %890 = vmatpush1.bf16.msra.mxu0 0
      %891 = vmatprep.subr.bf16.mxu0 0
      %892 = vmatpush1.bf16.msra.mxu0 0
      %893 = vmatprep.subr.bf16.mxu0 0
      %894 = vmatpush1.bf16.msra.mxu0 0
      %895 = vmatprep.subr.bf16.mxu0 0
      %896 = vmatpush1.bf16.msra.mxu0 0
      %897 = vmatprep.subr.bf16.mxu0 0
      %898 = vmatpush1.bf16.msra.mxu0 0
      %899 = vmatprep.subr.bf16.mxu0 0
      %900 = vmatpush1.bf16.msra.mxu0 0
      %901 = vmatprep.subr.bf16.mxu0 0
      %902 = vmatpush1.bf16.msra.mxu0 0
      %903 = vmatprep.subr.bf16.mxu0 0
      %904 = vmatpush1.bf16.msra.mxu0 0
      %905 = vmatprep.subr.bf16.mxu0 0
      %906 = vmatpush1.bf16.msra.mxu0 0
      %907 = vmatprep.subr.bf16.mxu0 0
      %908 = vmatpush1.bf16.msra.mxu0 0
      %909 = vmatprep.subr.bf16.mxu0 0
      %910 = vmatpush1.bf16.msra.mxu0 0
      %911 = vmatprep.subr.bf16.mxu0 0
      %912 = vmatpush1.bf16.msra.mxu0 0
      %913 = vmatprep.subr.bf16.mxu0 0
      %914 = vmatpush1.bf16.msra.mxu0 0
      %915 = vmatprep.mubr.bf16.mxu0 0
      %916 = vmatmul.mubr.bf16.gmra.mrb[0].mxu0 %v529
      %v917 = vpop.f32.mrb[0].mxu0
      %v918 = vadd.f32 %v869, %v917
      %v919 = vpop.f32.mrb[0].mxu0
      %v920 = vpop.f32.mrb[0].mxu0
      %v921 = vpop.f32.mrb[0].mxu0
      %922 = vdwg.mxu0
      %s923 = scalar_lea.vmem %s4, 16
      %v924 = vld [vmem:[%s923] sm:$0xf]
      %v925 = vld [vmem:[%s923 + $0x4] sm:$0xf]
      %v926 = vld [vmem:[%s923 + $0x8] sm:$0xf]
      %v927 = vld [vmem:[%s923 + $0xc] sm:$0xf]
      %s928 = scalar_lea.vmem %s7, 1
      %v929 = vld [vmem:[%s928] sm:$0x1]
      %v931 = vlaneseq
      %v932 = vshrl.u32 %v931, 7
      %v933 = vsub.s32 0, %v932
      %v934 = vrot.slane %v929, %v933
      %v940 = vunpack.c.l.b16 %v924
      %v941 = vunpack.c.l.b16 %v925
      %v942 = vunpack.c.l.b16 %v926
      %v943 = vunpack.c.l.b16 %v927
      %v944 = vpack.c.b16 %v941, %v940
      %v945 = vpack.c.b16 %v943, %v942
      %948 = vmatprep.subr.bf16.mxu0 0
      %949 = vmatpush1.bf16.msra.mxu0 %v944
      %950 = vmatprep.subr.bf16.mxu0 0
      %951 = vmatpush1.bf16.msra.mxu0 %v945
      %952 = vmatprep.subr.bf16.mxu0 0
      %953 = vmatpush1.bf16.msra.mxu0 0
      %954 = vmatprep.subr.bf16.mxu0 0
      %955 = vmatpush1.bf16.msra.mxu0 0
      %956 = vmatprep.subr.bf16.mxu0 0
      %957 = vmatpush1.bf16.msra.mxu0 0
      %958 = vmatprep.subr.bf16.mxu0 0
      %959 = vmatpush1.bf16.msra.mxu0 0
      %960 = vmatprep.subr.bf16.mxu0 0
      %961 = vmatpush1.bf16.msra.mxu0 0
      %962 = vmatprep.subr.bf16.mxu0 0
      %963 = vmatpush1.bf16.msra.mxu0 0
      %964 = vmatprep.subr.bf16.mxu0 0
      %965 = vmatpush1.bf16.msra.mxu0 0
      %966 = vmatprep.subr.bf16.mxu0 0
      %967 = vmatpush1.bf16.msra.mxu0 0
      %968 = vmatprep.subr.bf16.mxu0 0
      %969 = vmatpush1.bf16.msra.mxu0 0
      %970 = vmatprep.subr.bf16.mxu0 0
      %971 = vmatpush1.bf16.msra.mxu0 0
      %972 = vmatprep.subr.bf16.mxu0 0
      %973 = vmatpush1.bf16.msra.mxu0 0
      %974 = vmatprep.subr.bf16.mxu0 0
      %975 = vmatpush1.bf16.msra.mxu0 0
      %976 = vmatprep.subr.bf16.mxu0 0
      %977 = vmatpush1.bf16.msra.mxu0 0
      %978 = vmatprep.subr.bf16.mxu0 0
      %979 = vmatpush1.bf16.msra.mxu0 0
      %980 = vmatprep.mubr.bf16.mxu0 0
      %981 = vmatmul.mubr.bf16.gmra.mrb[0].mxu0 %v529
      %v982 = vpop.f32.mrb[0].mxu0
      %v983 = vadd.f32 %v934, %v982
      %v984 = vpop.f32.mrb[0].mxu0
      %v985 = vpop.f32.mrb[0].mxu0
      %v986 = vpop.f32.mrb[0].mxu0
      %987 = vdwg.mxu0
      %v988 = vpack.c.bf16 %v853, %v853
      %v989 = vpack.c.bf16 %v918, %v918
      %v991 = vsel %vm636, %v988, 0
      %v994 = vsel %vm636, %v989, 0
      %996 = vmatprep.subr.bf16.mxu0 0
      %997 = vmatpush1.bf16.xpose.msra.mxu0 %v994
      %998 = vmatprep.subr.bf16.mxu0 0
      %999 = vmatpush1.bf16.xpose.msra.mxu0 0
      %1000 = vmatprep.subr.bf16.mxu0 0
      %1001 = vmatpush1.bf16.xpose.msra.mxu0 0
      %1002 = vmatprep.subr.bf16.mxu0 0
      %1003 = vmatpush1.bf16.xpose.msra.mxu0 0
      %1004 = vmatprep.subr.bf16.mxu0 0
      %1005 = vmatpush1.bf16.xpose.msra.mxu0 0
      %1006 = vmatprep.subr.bf16.mxu0 0
      %1007 = vmatpush1.bf16.xpose.msra.mxu0 0
      %1008 = vmatprep.subr.bf16.mxu0 0
      %1009 = vmatpush1.bf16.xpose.msra.mxu0 0
      %1010 = vmatprep.subr.bf16.mxu0 0
      %1011 = vmatpush1.bf16.xpose.msra.mxu0 0
      %1012 = vmatprep.subr.bf16.mxu0 0
      %1013 = vmatpush1.bf16.xpose.msra.mxu0 0
      %1014 = vmatprep.subr.bf16.mxu0 0
      %1015 = vmatpush1.bf16.xpose.msra.mxu0 0
      %1016 = vmatprep.subr.bf16.mxu0 0
      %1017 = vmatpush1.bf16.xpose.msra.mxu0 0
      %1018 = vmatprep.subr.bf16.mxu0 0
      %1019 = vmatpush1.bf16.xpose.msra.mxu0 0
      %1020 = vmatprep.subr.bf16.mxu0 0
      %1021 = vmatpush1.bf16.xpose.msra.mxu0 0
      %1022 = vmatprep.subr.bf16.mxu0 0
      %1023 = vmatpush1.bf16.xpose.msra.mxu0 0
      %1024 = vmatprep.subr.bf16.mxu0 0
      %1025 = vmatpush1.bf16.xpose.msra.mxu0 0
      %1026 = vmatprep.subr.bf16.mxu0 0
      %1027 = vmatpush1.bf16.xpose.msra.mxu0 0
      %1028 = vmatprep.mubr.bf16.mxu0 0
      %1029 = vmatmul.mubr.bf16.gmra.mrb[0].mxu0 %v991
      %v1030 = vpop.f32.mrb[0].mxu0
      %v1031 = vadd.f32 0.0, %v1030
      %v1032 = vpop.f32.mrb[0].mxu0
      %v1033 = vpop.f32.mrb[0].mxu0
      %v1034 = vpop.f32.mrb[0].mxu0
      %1035 = vdwg.mxu0
      %v1036 = vmul.f32 %v1031, 0.35355338
      %v1037 = vsel %vm636, %v1036, -inf
      %1038 = vmax.xlane.f32.xlu0 %v1037
      %v1039 = vpop.xlane.xlu0 %1038
      %v1040 = vsub.f32 %v1036, %v1039
      %v1041 = vmul.f32 %v1040, 1.442695
      %v1042 = vpow.pop %v1041
      %v1043 = vsel %vm636, %v1042, 0.0
      %1044 = vadd.xlane.f32.xlu0 %v1043
      %v1045 = vpop.xlane.xlu0 %1044
      %v1046 = vrcp.pop %v1045
      %v1047 = vmul.f32 %v1042, %v1046
      %v1048 = vpack.c.bf16 %v1047, %v1047
      %v1049 = vpack.c.bf16 %v983, %v983
      %v1051 = vsel %vm636, %v1048, 0
      %v1054 = vsel %vm700, %v1049, 0
      %1056 = vmatprep.subr.bf16.mxu0 0
      %1057 = vmatpush1.bf16.msra.mxu0 %v1054
      %1058 = vmatprep.subr.bf16.mxu0 0
      %1059 = vmatpush1.bf16.msra.mxu0 0
      %1060 = vmatprep.subr.bf16.mxu0 0
      %1061 = vmatpush1.bf16.msra.mxu0 0
      %1062 = vmatprep.subr.bf16.mxu0 0
      %1063 = vmatpush1.bf16.msra.mxu0 0
      %1064 = vmatprep.subr.bf16.mxu0 0
      %1065 = vmatpush1.bf16.msra.mxu0 0
      %1066 = vmatprep.subr.bf16.mxu0 0
      %1067 = vmatpush1.bf16.msra.mxu0 0
      %1068 = vmatprep.subr.bf16.mxu0 0
      %1069 = vmatpush1.bf16.msra.mxu0 0
      %1070 = vmatprep.subr.bf16.mxu0 0
      %1071 = vmatpush1.bf16.msra.mxu0 0
      %1072 = vmatprep.subr.bf16.mxu0 0
      %1073 = vmatpush1.bf16.msra.mxu0 0
      %1074 = vmatprep.subr.bf16.mxu0 0
      %1075 = vmatpush1.bf16.msra.mxu0 0
      %1076 = vmatprep.subr.bf16.mxu0 0
      %1077 = vmatpush1.bf16.msra.mxu0 0
      %1078 = vmatprep.subr.bf16.mxu0 0
      %1079 = vmatpush1.bf16.msra.mxu0 0
      %1080 = vmatprep.subr.bf16.mxu0 0
      %1081 = vmatpush1.bf16.msra.mxu0 0
      %1082 = vmatprep.subr.bf16.mxu0 0
      %1083 = vmatpush1.bf16.msra.mxu0 0
      %1084 = vmatprep.subr.bf16.mxu0 0
      %1085 = vmatpush1.bf16.msra.mxu0 0
      %1086 = vmatprep.subr.bf16.mxu0 0
      %1087 = vmatpush1.bf16.msra.mxu0 0
      %1088 = vmatprep.mubr.bf16.mxu0 0
      %1089 = vmatmul.mubr.bf16.gmra.mrb[0].mxu0 %v1051
      %v1090 = vpop.f32.mrb[0].mxu0
      %v1091 = vadd.f32 0.0, %v1090
      %v1092 = vpop.f32.mrb[0].mxu0
      %v1093 = vpop.f32.mrb[0].mxu0
      %v1094 = vpop.f32.mrb[0].mxu0
      %1095 = vdwg.mxu0
      %v1096 = vpack.c.bf16 %v1091, %v1091
      %s1097 = scalar_lea.vmem %s8, 4
      %v1098 = vld [vmem:[%s1097] sm:$0xf]
      %v1100 = vsel %vm636, %v1096, 0
      %v1103 = vsel %vm700, %v1098, 0
      %1105 = vmatprep.subr.bf16.mxu0 0
      %1106 = vmatpush1.bf16.msra.mxu0 %v1103
      %1107 = vmatprep.subr.bf16.mxu0 0
      %1108 = vmatpush1.bf16.msra.mxu0 0
      %1109 = vmatprep.subr.bf16.mxu0 0
      %1110 = vmatpush1.bf16.msra.mxu0 0
      %1111 = vmatprep.subr.bf16.mxu0 0
      %1112 = vmatpush1.bf16.msra.mxu0 0
      %1113 = vmatprep.subr.bf16.mxu0 0
      %1114 = vmatpush1.bf16.msra.mxu0 0
      %1115 = vmatprep.subr.bf16.mxu0 0
      %1116 = vmatpush1.bf16.msra.mxu0 0
      %1117 = vmatprep.subr.bf16.mxu0 0
      %1118 = vmatpush1.bf16.msra.mxu0 0
      %1119 = vmatprep.subr.bf16.mxu0 0
      %1120 = vmatpush1.bf16.msra.mxu0 0
      %1121 = vmatprep.subr.bf16.mxu0 0
      %1122 = vmatpush1.bf16.msra.mxu0 0
      %1123 = vmatprep.subr.bf16.mxu0 0
      %1124 = vmatpush1.bf16.msra.mxu0 0
      %1125 = vmatprep.subr.bf16.mxu0 0
      %1126 = vmatpush1.bf16.msra.mxu0 0
      %1127 = vmatprep.subr.bf16.mxu0 0
      %1128 = vmatpush1.bf16.msra.mxu0 0
      %1129 = vmatprep.subr.bf16.mxu0 0
      %1130 = vmatpush1.bf16.msra.mxu0 0
      %1131 = vmatprep.subr.bf16.mxu0 0
      %1132 = vmatpush1.bf16.msra.mxu0 0
      %1133 = vmatprep.subr.bf16.mxu0 0
      %1134 = vmatpush1.bf16.msra.mxu0 0
      %1135 = vmatprep.subr.bf16.mxu0 0
      %1136 = vmatpush1.bf16.msra.mxu0 0
      %1137 = vmatprep.mubr.bf16.mxu0 0
      %1138 = vmatmul.mubr.bf16.gmra.mrb[0].mxu0 %v1100
      %v1139 = vpop.f32.mrb[0].mxu0
      %v1140 = vadd.f32 0.0, %v1139
      %v1141 = vpop.f32.mrb[0].mxu0
      %v1142 = vpop.f32.mrb[0].mxu0
      %v1143 = vpop.f32.mrb[0].mxu0
      %1144 = vdwg.mxu0
      %v1145 = vadd.f32 %v792, %v1140
      %s1146 = scalar_lea.vmem %s2, 32
      %v1147 = vld [vmem:[%s1146] sm:$0xf]
      %v1148 = vld [vmem:[%s1146 + $0x4] sm:$0xf]
      %v1149 = vld [vmem:[%s1146 + $0x8] sm:$0xf]
      %v1150 = vld [vmem:[%s1146 + $0xc] sm:$0xf]
      %s1151 = scalar_lea.vmem %s5, 2
      %v1152 = vld [vmem:[%s1151] sm:$0x1]
      %v1154 = vlaneseq
      %v1155 = vshrl.u32 %v1154, 7
      %v1156 = vsub.s32 0, %v1155
      %v1157 = vrot.slane %v1152, %v1156
      %v1163 = vunpack.c.l.b16 %v1147
      %v1164 = vunpack.c.l.b16 %v1148
      %v1165 = vunpack.c.l.b16 %v1149
      %v1166 = vunpack.c.l.b16 %v1150
      %v1167 = vpack.c.b16 %v1164, %v1163
      %v1168 = vpack.c.b16 %v1166, %v1165
      %1171 = vmatprep.subr.bf16.mxu0 0
      %1172 = vmatpush1.bf16.msra.mxu0 %v1167
      %1173 = vmatprep.subr.bf16.mxu0 0
      %1174 = vmatpush1.bf16.msra.mxu0 %v1168
      %1175 = vmatprep.subr.bf16.mxu0 0
      %1176 = vmatpush1.bf16.msra.mxu0 0
      %1177 = vmatprep.subr.bf16.mxu0 0
      %1178 = vmatpush1.bf16.msra.mxu0 0
      %1179 = vmatprep.subr.bf16.mxu0 0
      %1180 = vmatpush1.bf16.msra.mxu0 0
      %1181 = vmatprep.subr.bf16.mxu0 0
      %1182 = vmatpush1.bf16.msra.mxu0 0
      %1183 = vmatprep.subr.bf16.mxu0 0
      %1184 = vmatpush1.bf16.msra.mxu0 0
      %1185 = vmatprep.subr.bf16.mxu0 0
      %1186 = vmatpush1.bf16.msra.mxu0 0
      %1187 = vmatprep.subr.bf16.mxu0 0
      %1188 = vmatpush1.bf16.msra.mxu0 0
      %1189 = vmatprep.subr.bf16.mxu0 0
      %1190 = vmatpush1.bf16.msra.mxu0 0
      %1191 = vmatprep.subr.bf16.mxu0 0
      %1192 = vmatpush1.bf16.msra.mxu0 0
      %1193 = vmatprep.subr.bf16.mxu0 0
      %1194 = vmatpush1.bf16.msra.mxu0 0
      %1195 = vmatprep.subr.bf16.mxu0 0
      %1196 = vmatpush1.bf16.msra.mxu0 0
      %1197 = vmatprep.subr.bf16.mxu0 0
      %1198 = vmatpush1.bf16.msra.mxu0 0
      %1199 = vmatprep.subr.bf16.mxu0 0
      %1200 = vmatpush1.bf16.msra.mxu0 0
      %1201 = vmatprep.subr.bf16.mxu0 0
      %1202 = vmatpush1.bf16.msra.mxu0 0
      %1203 = vmatprep.mubr.bf16.mxu0 0
      %1204 = vmatmul.mubr.bf16.gmra.mrb[0].mxu0 %v463
      %v1205 = vpop.f32.mrb[0].mxu0
      %v1206 = vadd.f32 %v1157, %v1205
      %v1207 = vpop.f32.mrb[0].mxu0
      %v1208 = vpop.f32.mrb[0].mxu0
      %v1209 = vpop.f32.mrb[0].mxu0
      %1210 = vdwg.mxu0
      %s1211 = scalar_lea.vmem %s3, 32
      %v1212 = vld [vmem:[%s1211] sm:$0xf]
      %v1213 = vld [vmem:[%s1211 + $0x4] sm:$0xf]
      %v1214 = vld [vmem:[%s1211 + $0x8] sm:$0xf]
      %v1215 = vld [vmem:[%s1211 + $0xc] sm:$0xf]
      %s1216 = scalar_lea.vmem %s6, 2
      %v1217 = vld [vmem:[%s1216] sm:$0x1]
      %v1219 = vlaneseq
      %v1220 = vshrl.u32 %v1219, 7
      %v1221 = vsub.s32 0, %v1220
      %v1222 = vrot.slane %v1217, %v1221
      %v1228 = vunpack.c.l.b16 %v1212
      %v1229 = vunpack.c.l.b16 %v1213
      %v1230 = vunpack.c.l.b16 %v1214
      %v1231 = vunpack.c.l.b16 %v1215
      %v1232 = vpack.c.b16 %v1229, %v1228
      %v1233 = vpack.c.b16 %v1231, %v1230
      %1236 = vmatprep.subr.bf16.mxu0 0
      %1237 = vmatpush1.bf16.msra.mxu0 %v1232
      %1238 = vmatprep.subr.bf16.mxu0 0
      %1239 = vmatpush1.bf16.msra.mxu0 %v1233
      %1240 = vmatprep.subr.bf16.mxu0 0
      %1241 = vmatpush1.bf16.msra.mxu0 0
      %1242 = vmatprep.subr.bf16.mxu0 0
      %1243 = vmatpush1.bf16.msra.mxu0 0
      %1244 = vmatprep.subr.bf16.mxu0 0
      %1245 = vmatpush1.bf16.msra.mxu0 0
      %1246 = vmatprep.subr.bf16.mxu0 0
      %1247 = vmatpush1.bf16.msra.mxu0 0
      %1248 = vmatprep.subr.bf16.mxu0 0
      %1249 = vmatpush1.bf16.msra.mxu0 0
      %1250 = vmatprep.subr.bf16.mxu0 0
      %1251 = vmatpush1.bf16.msra.mxu0 0
      %1252 = vmatprep.subr.bf16.mxu0 0
      %1253 = vmatpush1.bf16.msra.mxu0 0
      %1254 = vmatprep.subr.bf16.mxu0 0
      %1255 = vmatpush1.bf16.msra.mxu0 0
      %1256 = vmatprep.subr.bf16.mxu0 0
      %1257 = vmatpush1.bf16.msra.mxu0 0
      %1258 = vmatprep.subr.bf16.mxu0 0
      %1259 = vmatpush1.bf16.msra.mxu0 0
      %1260 = vmatprep.subr.bf16.mxu0 0
      %1261 = vmatpush1.bf16.msra.mxu0 0
      %1262 = vmatprep.subr.bf16.mxu0 0
      %1263 = vmatpush1.bf16.msra.mxu0 0
      %1264 = vmatprep.subr.bf16.mxu0 0
      %1265 = vmatpush1.bf16.msra.mxu0 0
      %1266 = vmatprep.subr.bf16.mxu0 0
      %1267 = vmatpush1.bf16.msra.mxu0 0
      %1268 = vmatprep.mubr.bf16.mxu0 0
      %1269 = vmatmul.mubr.bf16.gmra.mrb[0].mxu0 %v529
      %v1270 = vpop.f32.mrb[0].mxu0
      %v1271 = vadd.f32 %v1222, %v1270
      %v1272 = vpop.f32.mrb[0].mxu0
      %v1273 = vpop.f32.mrb[0].mxu0
      %v1274 = vpop.f32.mrb[0].mxu0
      %1275 = vdwg.mxu0
      %s1276 = scalar_lea.vmem %s4, 32
      %v1277 = vld [vmem:[%s1276] sm:$0xf]
      %v1278 = vld [vmem:[%s1276 + $0x4] sm:$0xf]
      %v1279 = vld [vmem:[%s1276 + $0x8] sm:$0xf]
      %v1280 = vld [vmem:[%s1276 + $0xc] sm:$0xf]
      %s1281 = scalar_lea.vmem %s7, 2
      %v1282 = vld [vmem:[%s1281] sm:$0x1]
      %v1284 = vlaneseq
      %v1285 = vshrl.u32 %v1284, 7
      %v1286 = vsub.s32 0, %v1285
      %v1287 = vrot.slane %v1282, %v1286
      %v1293 = vunpack.c.l.b16 %v1277
      %v1294 = vunpack.c.l.b16 %v1278
      %v1295 = vunpack.c.l.b16 %v1279
      %v1296 = vunpack.c.l.b16 %v1280
      %v1297 = vpack.c.b16 %v1294, %v1293
      %v1298 = vpack.c.b16 %v1296, %v1295
      %1301 = vmatprep.subr.bf16.mxu0 0
      %1302 = vmatpush1.bf16.msra.mxu0 %v1297
      %1303 = vmatprep.subr.bf16.mxu0 0
      %1304 = vmatpush1.bf16.msra.mxu0 %v1298
      %1305 = vmatprep.subr.bf16.mxu0 0
      %1306 = vmatpush1.bf16.msra.mxu0 0
      %1307 = vmatprep.subr.bf16.mxu0 0
      %1308 = vmatpush1.bf16.msra.mxu0 0
      %1309 = vmatprep.subr.bf16.mxu0 0
      %1310 = vmatpush1.bf16.msra.mxu0 0
      %1311 = vmatprep.subr.bf16.mxu0 0
      %1312 = vmatpush1.bf16.msra.mxu0 0
      %1313 = vmatprep.subr.bf16.mxu0 0
      %1314 = vmatpush1.bf16.msra.mxu0 0
      %1315 = vmatprep.subr.bf16.mxu0 0
      %1316 = vmatpush1.bf16.msra.mxu0 0
      %1317 = vmatprep.subr.bf16.mxu0 0
      %1318 = vmatpush1.bf16.msra.mxu0 0
      %1319 = vmatprep.subr.bf16.mxu0 0
      %1320 = vmatpush1.bf16.msra.mxu0 0
      %1321 = vmatprep.subr.bf16.mxu0 0
      %1322 = vmatpush1.bf16.msra.mxu0 0
      %1323 = vmatprep.subr.bf16.mxu0 0
      %1324 = vmatpush1.bf16.msra.mxu0 0
      %1325 = vmatprep.subr.bf16.mxu0 0
      %1326 = vmatpush1.bf16.msra.mxu0 0
      %1327 = vmatprep.subr.bf16.mxu0 0
      %1328 = vmatpush1.bf16.msra.mxu0 0
      %1329 = vmatprep.subr.bf16.mxu0 0
      %1330 = vmatpush1.bf16.msra.mxu0 0
      %1331 = vmatprep.subr.bf16.mxu0 0
      %1332 = vmatpush1.bf16.msra.mxu0 0
      %1333 = vmatprep.mubr.bf16.mxu0 0
      %1334 = vmatmul.mubr.bf16.gmra.mrb[0].mxu0 %v529
      %v1335 = vpop.f32.mrb[0].mxu0
      %v1336 = vadd.f32 %v1287, %v1335
      %v1337 = vpop.f32.mrb[0].mxu0
      %v1338 = vpop.f32.mrb[0].mxu0
      %v1339 = vpop.f32.mrb[0].mxu0
      %1340 = vdwg.mxu0
      %v1341 = vpack.c.bf16 %v1206, %v1206
      %v1342 = vpack.c.bf16 %v1271, %v1271
      %v1344 = vsel %vm636, %v1341, 0
      %v1347 = vsel %vm636, %v1342, 0
      %1349 = vmatprep.subr.bf16.mxu0 0
      %1350 = vmatpush1.bf16.xpose.msra.mxu0 %v1347
      %1351 = vmatprep.subr.bf16.mxu0 0
      %1352 = vmatpush1.bf16.xpose.msra.mxu0 0
      %1353 = vmatprep.subr.bf16.mxu0 0
      %1354 = vmatpush1.bf16.xpose.msra.mxu0 0
      %1355 = vmatprep.subr.bf16.mxu0 0
      %1356 = vmatpush1.bf16.xpose.msra.mxu0 0
      %1357 = vmatprep.subr.bf16.mxu0 0
      %1358 = vmatpush1.bf16.xpose.msra.mxu0 0
      %1359 = vmatprep.subr.bf16.mxu0 0
      %1360 = vmatpush1.bf16.xpose.msra.mxu0 0
      %1361 = vmatprep.subr.bf16.mxu0 0
      %1362 = vmatpush1.bf16.xpose.msra.mxu0 0
      %1363 = vmatprep.subr.bf16.mxu0 0
      %1364 = vmatpush1.bf16.xpose.msra.mxu0 0
      %1365 = vmatprep.subr.bf16.mxu0 0
      %1366 = vmatpush1.bf16.xpose.msra.mxu0 0
      %1367 = vmatprep.subr.bf16.mxu0 0
      %1368 = vmatpush1.bf16.xpose.msra.mxu0 0
      %1369 = vmatprep.subr.bf16.mxu0 0
      %1370 = vmatpush1.bf16.xpose.msra.mxu0 0
      %1371 = vmatprep.subr.bf16.mxu0 0
      %1372 = vmatpush1.bf16.xpose.msra.mxu0 0
      %1373 = vmatprep.subr.bf16.mxu0 0
      %1374 = vmatpush1.bf16.xpose.msra.mxu0 0
      %1375 = vmatprep.subr.bf16.mxu0 0
      %1376 = vmatpush1.bf16.xpose.msra.mxu0 0
      %1377 = vmatprep.subr.bf16.mxu0 0
      %1378 = vmatpush1.bf16.xpose.msra.mxu0 0
      %1379 = vmatprep.subr.bf16.mxu0 0
      %1380 = vmatpush1.bf16.xpose.msra.mxu0 0
      %1381 = vmatprep.mubr.bf16.mxu0 0
      %1382 = vmatmul.mubr.bf16.gmra.mrb[0].mxu0 %v1344
      %v1383 = vpop.f32.mrb[0].mxu0
      %v1384 = vadd.f32 0.0, %v1383
      %v1385 = vpop.f32.mrb[0].mxu0
      %v1386 = vpop.f32.mrb[0].mxu0
      %v1387 = vpop.f32.mrb[0].mxu0
      %1388 = vdwg.mxu0
      %v1389 = vmul.f32 %v1384, 0.35355338
      %v1390 = vsel %vm636, %v1389, -inf
      %1391 = vmax.xlane.f32.xlu0 %v1390
      %v1392 = vpop.xlane.xlu0 %1391
      %v1393 = vsub.f32 %v1389, %v1392
      %v1394 = vmul.f32 %v1393, 1.442695
      %v1395 = vpow.pop %v1394
      %v1396 = vsel %vm636, %v1395, 0.0
      %1397 = vadd.xlane.f32.xlu0 %v1396
      %v1398 = vpop.xlane.xlu0 %1397
      %v1399 = vrcp.pop %v1398
      %v1400 = vmul.f32 %v1395, %v1399
      %v1401 = vpack.c.bf16 %v1400, %v1400
      %v1402 = vpack.c.bf16 %v1336, %v1336
      %v1404 = vsel %vm636, %v1401, 0
      %v1407 = vsel %vm700, %v1402, 0
      %1409 = vmatprep.subr.bf16.mxu0 0
      %1410 = vmatpush1.bf16.msra.mxu0 %v1407
      %1411 = vmatprep.subr.bf16.mxu0 0
      %1412 = vmatpush1.bf16.msra.mxu0 0
      %1413 = vmatprep.subr.bf16.mxu0 0
      %1414 = vmatpush1.bf16.msra.mxu0 0
      %1415 = vmatprep.subr.bf16.mxu0 0
      %1416 = vmatpush1.bf16.msra.mxu0 0
      %1417 = vmatprep.subr.bf16.mxu0 0
      %1418 = vmatpush1.bf16.msra.mxu0 0
      %1419 = vmatprep.subr.bf16.mxu0 0
      %1420 = vmatpush1.bf16.msra.mxu0 0
      %1421 = vmatprep.subr.bf16.mxu0 0
      %1422 = vmatpush1.bf16.msra.mxu0 0
      %1423 = vmatprep.subr.bf16.mxu0 0
      %1424 = vmatpush1.bf16.msra.mxu0 0
      %1425 = vmatprep.subr.bf16.mxu0 0
      %1426 = vmatpush1.bf16.msra.mxu0 0
      %1427 = vmatprep.subr.bf16.mxu0 0
      %1428 = vmatpush1.bf16.msra.mxu0 0
      %1429 = vmatprep.subr.bf16.mxu0 0
      %1430 = vmatpush1.bf16.msra.mxu0 0
      %1431 = vmatprep.subr.bf16.mxu0 0
      %1432 = vmatpush1.bf16.msra.mxu0 0
      %1433 = vmatprep.subr.bf16.mxu0 0
      %1434 = vmatpush1.bf16.msra.mxu0 0
      %1435 = vmatprep.subr.bf16.mxu0 0
      %1436 = vmatpush1.bf16.msra.mxu0 0
      %1437 = vmatprep.subr.bf16.mxu0 0
      %1438 = vmatpush1.bf16.msra.mxu0 0
      %1439 = vmatprep.subr.bf16.mxu0 0
      %1440 = vmatpush1.bf16.msra.mxu0 0
      %1441 = vmatprep.mubr.bf16.mxu0 0
      %1442 = vmatmul.mubr.bf16.gmra.mrb[0].mxu0 %v1404
      %v1443 = vpop.f32.mrb[0].mxu0
      %v1444 = vadd.f32 0.0, %v1443
      %v1445 = vpop.f32.mrb[0].mxu0
      %v1446 = vpop.f32.mrb[0].mxu0
      %v1447 = vpop.f32.mrb[0].mxu0
      %1448 = vdwg.mxu0
      %v1449 = vpack.c.bf16 %v1444, %v1444
      %s1450 = scalar_lea.vmem %s8, 8
      %v1451 = vld [vmem:[%s1450] sm:$0xf]
      %v1453 = vsel %vm636, %v1449, 0
      %v1456 = vsel %vm700, %v1451, 0
      %1458 = vmatprep.subr.bf16.mxu0 0
      %1459 = vmatpush1.bf16.msra.mxu0 %v1456
      %1460 = vmatprep.subr.bf16.mxu0 0
      %1461 = vmatpush1.bf16.msra.mxu0 0
      %1462 = vmatprep.subr.bf16.mxu0 0
      %1463 = vmatpush1.bf16.msra.mxu0 0
      %1464 = vmatprep.subr.bf16.mxu0 0
      %1465 = vmatpush1.bf16.msra.mxu0 0
      %1466 = vmatprep.subr.bf16.mxu0 0
      %1467 = vmatpush1.bf16.msra.mxu0 0
      %1468 = vmatprep.subr.bf16.mxu0 0
      %1469 = vmatpush1.bf16.msra.mxu0 0
      %1470 = vmatprep.subr.bf16.mxu0 0
      %1471 = vmatpush1.bf16.msra.mxu0 0
      %1472 = vmatprep.subr.bf16.mxu0 0
      %1473 = vmatpush1.bf16.msra.mxu0 0
      %1474 = vmatprep.subr.bf16.mxu0 0
      %1475 = vmatpush1.bf16.msra.mxu0 0
      %1476 = vmatprep.subr.bf16.mxu0 0
      %1477 = vmatpush1.bf16.msra.mxu0 0
      %1478 = vmatprep.subr.bf16.mxu0 0
      %1479 = vmatpush1.bf16.msra.mxu0 0
      %1480 = vmatprep.subr.bf16.mxu0 0
      %1481 = vmatpush1.bf16.msra.mxu0 0
      %1482 = vmatprep.subr.bf16.mxu0 0
      %1483 = vmatpush1.bf16.msra.mxu0 0
      %1484 = vmatprep.subr.bf16.mxu0 0
      %1485 = vmatpush1.bf16.msra.mxu0 0
      %1486 = vmatprep.subr.bf16.mxu0 0
      %1487 = vmatpush1.bf16.msra.mxu0 0
      %1488 = vmatprep.subr.bf16.mxu0 0
      %1489 = vmatpush1.bf16.msra.mxu0 0
      %1490 = vmatprep.mubr.bf16.mxu0 0
      %1491 = vmatmul.mubr.bf16.gmra.mrb[0].mxu0 %v1453
      %v1492 = vpop.f32.mrb[0].mxu0
      %v1493 = vadd.f32 0.0, %v1492
      %v1494 = vpop.f32.mrb[0].mxu0
      %v1495 = vpop.f32.mrb[0].mxu0
      %v1496 = vpop.f32.mrb[0].mxu0
      %1497 = vdwg.mxu0
      %v1498 = vadd.f32 %v1145, %v1493
      %s1499 = scalar_lea.vmem %s2, 48
      %v1500 = vld [vmem:[%s1499] sm:$0xf]
      %v1501 = vld [vmem:[%s1499 + $0x4] sm:$0xf]
      %v1502 = vld [vmem:[%s1499 + $0x8] sm:$0xf]
      %v1503 = vld [vmem:[%s1499 + $0xc] sm:$0xf]
      %s1504 = scalar_lea.vmem %s5, 3
      %v1505 = vld [vmem:[%s1504] sm:$0x1]
      %v1507 = vlaneseq
      %v1508 = vshrl.u32 %v1507, 7
      %v1509 = vsub.s32 0, %v1508
      %v1510 = vrot.slane %v1505, %v1509
      %v1516 = vunpack.c.l.b16 %v1500
      %v1517 = vunpack.c.l.b16 %v1501
      %v1518 = vunpack.c.l.b16 %v1502
      %v1519 = vunpack.c.l.b16 %v1503
      %v1520 = vpack.c.b16 %v1517, %v1516
      %v1521 = vpack.c.b16 %v1519, %v1518
      %1524 = vmatprep.subr.bf16.mxu0 0
      %1525 = vmatpush1.bf16.msra.mxu0 %v1520
      %1526 = vmatprep.subr.bf16.mxu0 0
      %1527 = vmatpush1.bf16.msra.mxu0 %v1521
      %1528 = vmatprep.subr.bf16.mxu0 0
      %1529 = vmatpush1.bf16.msra.mxu0 0
      %1530 = vmatprep.subr.bf16.mxu0 0
      %1531 = vmatpush1.bf16.msra.mxu0 0
      %1532 = vmatprep.subr.bf16.mxu0 0
      %1533 = vmatpush1.bf16.msra.mxu0 0
      %1534 = vmatprep.subr.bf16.mxu0 0
      %1535 = vmatpush1.bf16.msra.mxu0 0
      %1536 = vmatprep.subr.bf16.mxu0 0
      %1537 = vmatpush1.bf16.msra.mxu0 0
      %1538 = vmatprep.subr.bf16.mxu0 0
      %1539 = vmatpush1.bf16.msra.mxu0 0
      %1540 = vmatprep.subr.bf16.mxu0 0
      %1541 = vmatpush1.bf16.msra.mxu0 0
      %1542 = vmatprep.subr.bf16.mxu0 0
      %1543 = vmatpush1.bf16.msra.mxu0 0
      %1544 = vmatprep.subr.bf16.mxu0 0
      %1545 = vmatpush1.bf16.msra.mxu0 0
      %1546 = vmatprep.subr.bf16.mxu0 0
      %1547 = vmatpush1.bf16.msra.mxu0 0
      %1548 = vmatprep.subr.bf16.mxu0 0
      %1549 = vmatpush1.bf16.msra.mxu0 0
      %1550 = vmatprep.subr.bf16.mxu0 0
      %1551 = vmatpush1.bf16.msra.mxu0 0
      %1552 = vmatprep.subr.bf16.mxu0 0
      %1553 = vmatpush1.bf16.msra.mxu0 0
      %1554 = vmatprep.subr.bf16.mxu0 0
      %1555 = vmatpush1.bf16.msra.mxu0 0
      %1556 = vmatprep.mubr.bf16.mxu0 0
      %1557 = vmatmul.mubr.bf16.gmra.mrb[0].mxu0 %v463
      %v1558 = vpop.f32.mrb[0].mxu0
      %v1559 = vadd.f32 %v1510, %v1558
      %v1560 = vpop.f32.mrb[0].mxu0
      %v1561 = vpop.f32.mrb[0].mxu0
      %v1562 = vpop.f32.mrb[0].mxu0
      %1563 = vdwg.mxu0
      %s1564 = scalar_lea.vmem %s3, 48
      %v1565 = vld [vmem:[%s1564] sm:$0xf]
      %v1566 = vld [vmem:[%s1564 + $0x4] sm:$0xf]
      %v1567 = vld [vmem:[%s1564 + $0x8] sm:$0xf]
      %v1568 = vld [vmem:[%s1564 + $0xc] sm:$0xf]
      %s1569 = scalar_lea.vmem %s6, 3
      %v1570 = vld [vmem:[%s1569] sm:$0x1]
      %v1572 = vlaneseq
      %v1573 = vshrl.u32 %v1572, 7
      %v1574 = vsub.s32 0, %v1573
      %v1575 = vrot.slane %v1570, %v1574
      %v1581 = vunpack.c.l.b16 %v1565
      %v1582 = vunpack.c.l.b16 %v1566
      %v1583 = vunpack.c.l.b16 %v1567
      %v1584 = vunpack.c.l.b16 %v1568
      %v1585 = vpack.c.b16 %v1582, %v1581
      %v1586 = vpack.c.b16 %v1584, %v1583
      %1589 = vmatprep.subr.bf16.mxu0 0
      %1590 = vmatpush1.bf16.msra.mxu0 %v1585
      %1591 = vmatprep.subr.bf16.mxu0 0
      %1592 = vmatpush1.bf16.msra.mxu0 %v1586
      %1593 = vmatprep.subr.bf16.mxu0 0
      %1594 = vmatpush1.bf16.msra.mxu0 0
      %1595 = vmatprep.subr.bf16.mxu0 0
      %1596 = vmatpush1.bf16.msra.mxu0 0
      %1597 = vmatprep.subr.bf16.mxu0 0
      %1598 = vmatpush1.bf16.msra.mxu0 0
      %1599 = vmatprep.subr.bf16.mxu0 0
      %1600 = vmatpush1.bf16.msra.mxu0 0
      %1601 = vmatprep.subr.bf16.mxu0 0
      %1602 = vmatpush1.bf16.msra.mxu0 0
      %1603 = vmatprep.subr.bf16.mxu0 0
      %1604 = vmatpush1.bf16.msra.mxu0 0
      %1605 = vmatprep.subr.bf16.mxu0 0
      %1606 = vmatpush1.bf16.msra.mxu0 0
      %1607 = vmatprep.subr.bf16.mxu0 0
      %1608 = vmatpush1.bf16.msra.mxu0 0
      %1609 = vmatprep.subr.bf16.mxu0 0
      %1610 = vmatpush1.bf16.msra.mxu0 0
      %1611 = vmatprep.subr.bf16.mxu0 0
      %1612 = vmatpush1.bf16.msra.mxu0 0
      %1613 = vmatprep.subr.bf16.mxu0 0
      %1614 = vmatpush1.bf16.msra.mxu0 0
      %1615 = vmatprep.subr.bf16.mxu0 0
      %1616 = vmatpush1.bf16.msra.mxu0 0
      %1617 = vmatprep.subr.bf16.mxu0 0
      %1618 = vmatpush1.bf16.msra.mxu0 0
      %1619 = vmatprep.subr.bf16.mxu0 0
      %1620 = vmatpush1.bf16.msra.mxu0 0
      %1621 = vmatprep.mubr.bf16.mxu0 0
      %1622 = vmatmul.mubr.bf16.gmra.mrb[0].mxu0 %v529
      %v1623 = vpop.f32.mrb[0].mxu0
      %v1624 = vadd.f32 %v1575, %v1623
      %v1625 = vpop.f32.mrb[0].mxu0
      %v1626 = vpop.f32.mrb[0].mxu0
      %v1627 = vpop.f32.mrb[0].mxu0
      %1628 = vdwg.mxu0
      %s1629 = scalar_lea.vmem %s4, 48
      %v1630 = vld [vmem:[%s1629] sm:$0xf]
      %v1631 = vld [vmem:[%s1629 + $0x4] sm:$0xf]
      %v1632 = vld [vmem:[%s1629 + $0x8] sm:$0xf]
      %v1633 = vld [vmem:[%s1629 + $0xc] sm:$0xf]
      %s1634 = scalar_lea.vmem %s7, 3
      %v1635 = vld [vmem:[%s1634] sm:$0x1]
      %v1637 = vlaneseq
      %v1638 = vshrl.u32 %v1637, 7
      %v1639 = vsub.s32 0, %v1638
      %v1640 = vrot.slane %v1635, %v1639
      %v1646 = vunpack.c.l.b16 %v1630
      %v1647 = vunpack.c.l.b16 %v1631
      %v1648 = vunpack.c.l.b16 %v1632
      %v1649 = vunpack.c.l.b16 %v1633
      %v1650 = vpack.c.b16 %v1647, %v1646
      %v1651 = vpack.c.b16 %v1649, %v1648
      %1654 = vmatprep.subr.bf16.mxu0 0
      %1655 = vmatpush1.bf16.msra.mxu0 %v1650
      %1656 = vmatprep.subr.bf16.mxu0 0
      %1657 = vmatpush1.bf16.msra.mxu0 %v1651
      %1658 = vmatprep.subr.bf16.mxu0 0
      %1659 = vmatpush1.bf16.msra.mxu0 0
      %1660 = vmatprep.subr.bf16.mxu0 0
      %1661 = vmatpush1.bf16.msra.mxu0 0
      %1662 = vmatprep.subr.bf16.mxu0 0
      %1663 = vmatpush1.bf16.msra.mxu0 0
      %1664 = vmatprep.subr.bf16.mxu0 0
      %1665 = vmatpush1.bf16.msra.mxu0 0
      %1666 = vmatprep.subr.bf16.mxu0 0
      %1667 = vmatpush1.bf16.msra.mxu0 0
      %1668 = vmatprep.subr.bf16.mxu0 0
      %1669 = vmatpush1.bf16.msra.mxu0 0
      %1670 = vmatprep.subr.bf16.mxu0 0
      %1671 = vmatpush1.bf16.msra.mxu0 0
      %1672 = vmatprep.subr.bf16.mxu0 0
      %1673 = vmatpush1.bf16.msra.mxu0 0
      %1674 = vmatprep.subr.bf16.mxu0 0
      %1675 = vmatpush1.bf16.msra.mxu0 0
      %1676 = vmatprep.subr.bf16.mxu0 0
      %1677 = vmatpush1.bf16.msra.mxu0 0
      %1678 = vmatprep.subr.bf16.mxu0 0
      %1679 = vmatpush1.bf16.msra.mxu0 0
      %1680 = vmatprep.subr.bf16.mxu0 0
      %1681 = vmatpush1.bf16.msra.mxu0 0
      %1682 = vmatprep.subr.bf16.mxu0 0
      %1683 = vmatpush1.bf16.msra.mxu0 0
      %1684 = vmatprep.subr.bf16.mxu0 0
      %1685 = vmatpush1.bf16.msra.mxu0 0
      %1686 = vmatprep.mubr.bf16.mxu0 0
      %1687 = vmatmul.mubr.bf16.gmra.mrb[0].mxu0 %v529
      %v1688 = vpop.f32.mrb[0].mxu0
      %v1689 = vadd.f32 %v1640, %v1688
      %v1690 = vpop.f32.mrb[0].mxu0
      %v1691 = vpop.f32.mrb[0].mxu0
      %v1692 = vpop.f32.mrb[0].mxu0
      %1693 = vdwg.mxu0
      %v1694 = vpack.c.bf16 %v1559, %v1559
      %v1695 = vpack.c.bf16 %v1624, %v1624
      %v1697 = vsel %vm636, %v1694, 0
      %v1700 = vsel %vm636, %v1695, 0
      %1702 = vmatprep.subr.bf16.mxu0 0
      %1703 = vmatpush1.bf16.xpose.msra.mxu0 %v1700
      %1704 = vmatprep.subr.bf16.mxu0 0
      %1705 = vmatpush1.bf16.xpose.msra.mxu0 0
      %1706 = vmatprep.subr.bf16.mxu0 0
      %1707 = vmatpush1.bf16.xpose.msra.mxu0 0
      %1708 = vmatprep.subr.bf16.mxu0 0
      %1709 = vmatpush1.bf16.xpose.msra.mxu0 0
      %1710 = vmatprep.subr.bf16.mxu0 0
      %1711 = vmatpush1.bf16.xpose.msra.mxu0 0
      %1712 = vmatprep.subr.bf16.mxu0 0
      %1713 = vmatpush1.bf16.xpose.msra.mxu0 0
      %1714 = vmatprep.subr.bf16.mxu0 0
      %1715 = vmatpush1.bf16.xpose.msra.mxu0 0
      %1716 = vmatprep.subr.bf16.mxu0 0
      %1717 = vmatpush1.bf16.xpose.msra.mxu0 0
      %1718 = vmatprep.subr.bf16.mxu0 0
      %1719 = vmatpush1.bf16.xpose.msra.mxu0 0
      %1720 = vmatprep.subr.bf16.mxu0 0
      %1721 = vmatpush1.bf16.xpose.msra.mxu0 0
      %1722 = vmatprep.subr.bf16.mxu0 0
      %1723 = vmatpush1.bf16.xpose.msra.mxu0 0
      %1724 = vmatprep.subr.bf16.mxu0 0
      %1725 = vmatpush1.bf16.xpose.msra.mxu0 0
      %1726 = vmatprep.subr.bf16.mxu0 0
      %1727 = vmatpush1.bf16.xpose.msra.mxu0 0
      %1728 = vmatprep.subr.bf16.mxu0 0
      %1729 = vmatpush1.bf16.xpose.msra.mxu0 0
      %1730 = vmatprep.subr.bf16.mxu0 0
      %1731 = vmatpush1.bf16.xpose.msra.mxu0 0
      %1732 = vmatprep.subr.bf16.mxu0 0
      %1733 = vmatpush1.bf16.xpose.msra.mxu0 0
      %1734 = vmatprep.mubr.bf16.mxu0 0
      %1735 = vmatmul.mubr.bf16.gmra.mrb[0].mxu0 %v1697
      %v1736 = vpop.f32.mrb[0].mxu0
      %v1737 = vadd.f32 0.0, %v1736
      %v1738 = vpop.f32.mrb[0].mxu0
      %v1739 = vpop.f32.mrb[0].mxu0
      %v1740 = vpop.f32.mrb[0].mxu0
      %1741 = vdwg.mxu0
      %v1742 = vmul.f32 %v1737, 0.35355338
      %v1743 = vsel %vm636, %v1742, -inf
      %1744 = vmax.xlane.f32.xlu0 %v1743
      %v1745 = vpop.xlane.xlu0 %1744
      %v1746 = vsub.f32 %v1742, %v1745
      %v1747 = vmul.f32 %v1746, 1.442695
      %v1748 = vpow.pop %v1747
      %v1749 = vsel %vm636, %v1748, 0.0
      %1750 = vadd.xlane.f32.xlu0 %v1749
      %v1751 = vpop.xlane.xlu0 %1750
      %v1752 = vrcp.pop %v1751
      %v1753 = vmul.f32 %v1748, %v1752
      %v1754 = vpack.c.bf16 %v1753, %v1753
      %v1755 = vpack.c.bf16 %v1689, %v1689
      %v1757 = vsel %vm636, %v1754, 0
      %v1760 = vsel %vm700, %v1755, 0
      %1762 = vmatprep.subr.bf16.mxu0 0
      %1763 = vmatpush1.bf16.msra.mxu0 %v1760
      %1764 = vmatprep.subr.bf16.mxu0 0
      %1765 = vmatpush1.bf16.msra.mxu0 0
      %1766 = vmatprep.subr.bf16.mxu0 0
      %1767 = vmatpush1.bf16.msra.mxu0 0
      %1768 = vmatprep.subr.bf16.mxu0 0
      %1769 = vmatpush1.bf16.msra.mxu0 0
      %1770 = vmatprep.subr.bf16.mxu0 0
      %1771 = vmatpush1.bf16.msra.mxu0 0
      %1772 = vmatprep.subr.bf16.mxu0 0
      %1773 = vmatpush1.bf16.msra.mxu0 0
      %1774 = vmatprep.subr.bf16.mxu0 0
      %1775 = vmatpush1.bf16.msra.mxu0 0
      %1776 = vmatprep.subr.bf16.mxu0 0
      %1777 = vmatpush1.bf16.msra.mxu0 0
      %1778 = vmatprep.subr.bf16.mxu0 0
      %1779 = vmatpush1.bf16.msra.mxu0 0
      %1780 = vmatprep.subr.bf16.mxu0 0
      %1781 = vmatpush1.bf16.msra.mxu0 0
      %1782 = vmatprep.subr.bf16.mxu0 0
      %1783 = vmatpush1.bf16.msra.mxu0 0
      %1784 = vmatprep.subr.bf16.mxu0 0
      %1785 = vmatpush1.bf16.msra.mxu0 0
      %1786 = vmatprep.subr.bf16.mxu0 0
      %1787 = vmatpush1.bf16.msra.mxu0 0
      %1788 = vmatprep.subr.bf16.mxu0 0
      %1789 = vmatpush1.bf16.msra.mxu0 0
      %1790 = vmatprep.subr.bf16.mxu0 0
      %1791 = vmatpush1.bf16.msra.mxu0 0
      %1792 = vmatprep.subr.bf16.mxu0 0
      %1793 = vmatpush1.bf16.msra.mxu0 0
      %1794 = vmatprep.mubr.bf16.mxu0 0
      %1795 = vmatmul.mubr.bf16.gmra.mrb[0].mxu0 %v1757
      %v1796 = vpop.f32.mrb[0].mxu0
      %v1797 = vadd.f32 0.0, %v1796
      %v1798 = vpop.f32.mrb[0].mxu0
      %v1799 = vpop.f32.mrb[0].mxu0
      %v1800 = vpop.f32.mrb[0].mxu0
      %1801 = vdwg.mxu0
      %v1802 = vpack.c.bf16 %v1797, %v1797
      %s1803 = scalar_lea.vmem %s8, 12
      %v1804 = vld [vmem:[%s1803] sm:$0xf]
      %v1806 = vsel %vm636, %v1802, 0
      %v1809 = vsel %vm700, %v1804, 0
      %1811 = vmatprep.subr.bf16.mxu0 0
      %1812 = vmatpush1.bf16.msra.mxu0 %v1809
      %1813 = vmatprep.subr.bf16.mxu0 0
      %1814 = vmatpush1.bf16.msra.mxu0 0
      %1815 = vmatprep.subr.bf16.mxu0 0
      %1816 = vmatpush1.bf16.msra.mxu0 0
      %1817 = vmatprep.subr.bf16.mxu0 0
      %1818 = vmatpush1.bf16.msra.mxu0 0
      %1819 = vmatprep.subr.bf16.mxu0 0
      %1820 = vmatpush1.bf16.msra.mxu0 0
      %1821 = vmatprep.subr.bf16.mxu0 0
      %1822 = vmatpush1.bf16.msra.mxu0 0
      %1823 = vmatprep.subr.bf16.mxu0 0
      %1824 = vmatpush1.bf16.msra.mxu0 0
      %1825 = vmatprep.subr.bf16.mxu0 0
      %1826 = vmatpush1.bf16.msra.mxu0 0
      %1827 = vmatprep.subr.bf16.mxu0 0
      %1828 = vmatpush1.bf16.msra.mxu0 0
      %1829 = vmatprep.subr.bf16.mxu0 0
      %1830 = vmatpush1.bf16.msra.mxu0 0
      %1831 = vmatprep.subr.bf16.mxu0 0
      %1832 = vmatpush1.bf16.msra.mxu0 0
      %1833 = vmatprep.subr.bf16.mxu0 0
      %1834 = vmatpush1.bf16.msra.mxu0 0
      %1835 = vmatprep.subr.bf16.mxu0 0
      %1836 = vmatpush1.bf16.msra.mxu0 0
      %1837 = vmatprep.subr.bf16.mxu0 0
      %1838 = vmatpush1.bf16.msra.mxu0 0
      %1839 = vmatprep.subr.bf16.mxu0 0
      %1840 = vmatpush1.bf16.msra.mxu0 0
      %1841 = vmatprep.subr.bf16.mxu0 0
      %1842 = vmatpush1.bf16.msra.mxu0 0
      %1843 = vmatprep.mubr.bf16.mxu0 0
      %1844 = vmatmul.mubr.bf16.gmra.mrb[0].mxu0 %v1806
      %v1845 = vpop.f32.mrb[0].mxu0
      %v1846 = vadd.f32 0.0, %v1845
      %v1847 = vpop.f32.mrb[0].mxu0
      %v1848 = vpop.f32.mrb[0].mxu0
      %v1849 = vpop.f32.mrb[0].mxu0
      %1850 = vdwg.mxu0
      %v1851 = vadd.f32 %v1498, %v1846
      %v1852 = vsel %vm461, %v1851, 0.0
      %1853 = vadd.xlane.f32.xlu0 %v1852
      %v1854 = vpop.xlane.xlu0 %1853
      %v1855 = vrcp.pop 32.0
      %v1856 = vmul.f32 %v1854, %v1855
      %v1857 = vsub.f32 %v1851, %v1856
      %v1858 = vmul.f32 %v1857, %v1857
      %v1859 = vsel %vm461, %v1858, 0.0
      %1860 = vadd.xlane.f32.xlu0 %v1859
      %v1861 = vpop.xlane.xlu0 %1860
      %v1862 = vmul.f32 %v1861, %v1855
      %v1863 = vadd.f32 %v1862, 1e-05
      %v1864 = vrsqrt.pop %v1863
      %v1865 = vmul.f32 %v1857, %v1864
      %v1866 = vld [vmem:[%s10] sm:$0x1]
      %v1868 = vlaneseq
      %v1869 = vshrl.u32 %v1868, 7
      %v1870 = vsub.s32 0, %v1869
      %v1871 = vrot.slane %v1866, %v1870
      %v1873 = vmul.f32 %v1865, %v1871
      %v1874 = vld [vmem:[%s11] sm:$0x1]
      %v1876 = vlaneseq
      %v1877 = vshrl.u32 %v1876, 7
      %v1878 = vsub.s32 0, %v1877
      %v1879 = vrot.slane %v1874, %v1878
      %v1881 = vadd.f32 %v1873, %v1879
      %v1882 = vpack.c.bf16 %v1881, %v1881
      %vm1883 = vcmask 257024
      %1884 = vst.msk [vmem:[%s425] sm:$0xf] %vm1883, %v1882
      %p1885 = scmp.lt.s32.totalorder %s23, 1
      %s1886 = scalar_select %p1885, %s23, 1
      %s1887 = smul.addr %s1886, 4
      %s1888 = scalar_lea.vmem %s12, %s1887
      // Predicated region
      $region69: #{trfm_seq2seq_forward.19} parent=67 // pred_check
        %p1889 = pneg %p303
      $region70: #{trfm_seq2seq_forward.19} parent=67 // pred_check_branch
        %1891 = sbr.rel (%p1889) target = $region72
      $region71: #{trfm_seq2seq_forward.19} parent=67 // pred_region
        _
      $region72: #{trfm_seq2seq_forward.19} parent=67 // pred_fallthru
        _
    $region68: #{trfm_seq2seq_forward.19} parent=5 // pred_fallthru
      _
    %p1892 = scmp.le.s32.totalorder 2, %s18
    // Predicated region
    $region73: #{trfm_seq2seq_forward.19} parent=5 // pred_check
      %p1893 = pneg %p1892
    $region74: #{trfm_seq2seq_forward.19} parent=5 // pred_check_branch
      %1895 = sbr.rel (%p1893) target = $region76
    $region75: #{trfm_seq2seq_forward.19} parent=5 // pred_region
      %s1896 = ssub.s32 %s18, 2
      // Predicated region
      $region77: #{trfm_seq2seq_forward.19} parent=75 // pred_check
        %p1897 = pneg %p309
      $region78: #{trfm_seq2seq_forward.19} parent=75 // pred_check_branch
        %1899 = sbr.rel (%p1897) target = $region80
      $region79: #{trfm_seq2seq_forward.19} parent=75 // pred_region
        %p1900 = scmp.lt.s32.totalorder %s24, 1
        %s1901 = scalar_select %p1900, %s24, 1
        %s1902 = smul.addr %s1901, 4
        %s1903 = scalar_lea.vmem %s12, %s1902
      $region80: #{trfm_seq2seq_forward.19} parent=75 // pred_fallthru
        _
    $region76: #{trfm_seq2seq_forward.19} parent=5 // pred_fallthru
      _
  $region6: #{trfm_seq2seq_forward.19} parent=0 // loop_footer
    %s22 = sadd.s32 1, %s18
  $region7: #{trfm_seq2seq_forward.19} parent=0 // loop_footer_branch
    %17 = sbr.rel target = $region3
  $region8: #{trfm_seq2seq_forward.19} parent=0 // loop_exit
    _

// kernel: trfm_seq2seq_forward.25
$region0: #{trfm_seq2seq_forward.25}
  #allocation0 [shape = 'u32[]', space=smem, size = 0x4, offset = 0x4, fixed_abs, tag = 'smem constant byte address 0x4 - core index']
  #allocation1 [shape = 'u32[144,128]{1,0:T(1,128)}', space=vmem, size = 0x12000, scoped, tag = 'internal scratch']
  #allocation2 [shape = 'f32[16,20]{1,0:T(8,128)}', space=vmem, size = 0x2000, scoped, tag = 'scratch operand']
  %s0 = inlined_call_operand.vmem [shape: bf16[16,32], index: 0, kind: input, shape index: {}]
  %s1 = inlined_call_operand.vmem [shape: bf16[32,20], index: 1, kind: input, shape index: {}]
  %s2 = inlined_call_operand.vmem [shape: f32[1,20], index: 2, kind: input, shape index: {}]
  %s3 = inlined_call_operand.vmem [shape: f32[16,20], index: 3, kind: output, shape index: {}]
  %s4 = sld [smem:[#allocation0]]
  $region30: #{trfm_seq2seq_forward.25} parent=0
    _
  %s6 = ssub.s32 1, %s4
  %s7 = scalar_select 0, %s6, %s4
  // Predicated region
  $region2: #{trfm_seq2seq_forward.25} parent=0 // pred_check
    _
  $region3: #{trfm_seq2seq_forward.25} parent=0 // pred_check_branch
    %9 = sbr.rel (0) target = $region5
  $region4: #{trfm_seq2seq_forward.25} parent=0 // pred_region
    _
  $region5: #{trfm_seq2seq_forward.25} parent=0 // pred_fallthru
    _
  // Predicated region
  $region6: #{trfm_seq2seq_forward.25} parent=0 // pred_check
    _
  $region7: #{trfm_seq2seq_forward.25} parent=0 // pred_check_branch
    %11 = sbr.rel (0) target = $region9
  $region8: #{trfm_seq2seq_forward.25} parent=0 // pred_region
    _
  $region9: #{trfm_seq2seq_forward.25} parent=0 // pred_fallthru
    _
  // Predicated region
  $region10: #{trfm_seq2seq_forward.25} parent=0 // pred_check
    _
  $region11: #{trfm_seq2seq_forward.25} parent=0 // pred_check_branch
    %13 = sbr.rel (0) target = $region13
  $region12: #{trfm_seq2seq_forward.25} parent=0 // pred_region
    _
  $region13: #{trfm_seq2seq_forward.25} parent=0 // pred_fallthru
    _
  %p15 = scmp.eq.s32.totalorder 0, 0
  // Predicated region
  $region14: #{trfm_seq2seq_forward.25} parent=0 // pred_check
    %p16 = pneg %p15
  $region15: #{trfm_seq2seq_forward.25} parent=0 // pred_check_branch
    %18 = sbr.rel (%p16) target = $region17
  $region16: #{trfm_seq2seq_forward.25} parent=0 // pred_region
    %v19 = vld [vmem:[%s2] sm:$0x1]
    %v21 = vlaneseq
    %v22 = vshrl.u32 %v21, 7
    %v23 = vsub.s32 0, %v22
    %v24 = vrot.slane %v19, %v23
    %vm26 = vcmask 162816
    %27 = vst.msk [vmem:[#allocation2] sm:$0xff] %vm26, %v24
    %28 = vst.msk [vmem:[#allocation2 + $0x8] sm:$0xff] %vm26, %v24
  $region17: #{trfm_seq2seq_forward.25} parent=0 // pred_fallthru
    _
  %v29 = vld [vmem:[#allocation2] sm:$0xff]
  %v30 = vld [vmem:[#allocation2 + $0x8] sm:$0xff]
  %v31 = vld [vmem:[%s0] sm:$0xf]
  %v32 = vld [vmem:[%s0 + $0x4] sm:$0xf]
  %v33 = vld [vmem:[%s1] sm:$0xf]
  %v34 = vld [vmem:[%s1 + $0x4] sm:$0xf]
  %v35 = vld [vmem:[%s1 + $0x8] sm:$0xf]
  %v36 = vld [vmem:[%s1 + $0xc] sm:$0xf]
  %v39 = vunpack.c.l.b16 %v31
  %v40 = vunpack.c.l.b16 %v32
  %v41 = vpack.c.b16 %v40, %v39
  %v46 = vunpack.c.l.b16 %v33
  %v47 = vunpack.c.l.b16 %v34
  %v48 = vunpack.c.l.b16 %v35
  %v49 = vunpack.c.l.b16 %v36
  %v50 = vpack.c.b16 %v47, %v46
  %v51 = vpack.c.b16 %v49, %v48
  %vm54 = vcmask 261120
  %v56 = vsel %vm54, %v41, 0
  %58 = vmatprep.subr.bf16.mxu0 0
  %59 = vmatpush1.bf16.msra.mxu0 %v50
  %60 = vmatprep.subr.bf16.mxu0 0
  %61 = vmatpush1.bf16.msra.mxu0 %v51
  %62 = vmatprep.subr.bf16.mxu0 0
  %63 = vmatpush1.bf16.msra.mxu0 0
  %64 = vmatprep.subr.bf16.mxu0 0
  %65 = vmatpush1.bf16.msra.mxu0 0
  %66 = vmatprep.subr.bf16.mxu0 0
  %67 = vmatpush1.bf16.msra.mxu0 0
  %68 = vmatprep.subr.bf16.mxu0 0
  %69 = vmatpush1.bf16.msra.mxu0 0
  %70 = vmatprep.subr.bf16.mxu0 0
  %71 = vmatpush1.bf16.msra.mxu0 0
  %72 = vmatprep.subr.bf16.mxu0 0
  %73 = vmatpush1.bf16.msra.mxu0 0
  %74 = vmatprep.subr.bf16.mxu0 0
  %75 = vmatpush1.bf16.msra.mxu0 0
  %76 = vmatprep.subr.bf16.mxu0 0
  %77 = vmatpush1.bf16.msra.mxu0 0
  %78 = vmatprep.subr.bf16.mxu0 0
  %79 = vmatpush1.bf16.msra.mxu0 0
  %80 = vmatprep.subr.bf16.mxu0 0
  %81 = vmatpush1.bf16.msra.mxu0 0
  %82 = vmatprep.subr.bf16.mxu0 0
  %83 = vmatpush1.bf16.msra.mxu0 0
  %84 = vmatprep.subr.bf16.mxu0 0
  %85 = vmatpush1.bf16.msra.mxu0 0
  %86 = vmatprep.subr.bf16.mxu0 0
  %87 = vmatpush1.bf16.msra.mxu0 0
  %88 = vmatprep.subr.bf16.mxu0 0
  %89 = vmatpush1.bf16.msra.mxu0 0
  %90 = vmatprep.mubr.bf16.mxu0 0
  %91 = vmatmul.mubr.bf16.gmra.mrb[0].mxu0 %v56
  %v92 = vpop.f32.mrb[0].mxu0
  %v93 = vadd.f32 0.0, %v92
  %v94 = vpop.f32.mrb[0].mxu0
  %v95 = vpop.f32.mrb[0].mxu0
  %v96 = vadd.f32 0.0, %v95
  %v97 = vpop.f32.mrb[0].mxu0
  %98 = vdwg.mxu0
  %v99 = vadd.f32 %v29, %v93
  %v100 = vadd.f32 %v30, %v96
  %vm101 = vcmask 162816
  %102 = vst.msk [vmem:[#allocation2] sm:$0xff] %vm101, %v99
  %103 = vst.msk [vmem:[#allocation2 + $0x8] sm:$0xff] %vm101, %v100
  // Predicated region
  $region18: #{trfm_seq2seq_forward.25} parent=0 // pred_check
    %p104 = pneg %p15
  $region19: #{trfm_seq2seq_forward.25} parent=0 // pred_check_branch
    %106 = sbr.rel (%p104) target = $region21
  $region20: #{trfm_seq2seq_forward.25} parent=0 // pred_region
    %v107 = vld [vmem:[#allocation2] sm:$0xff]
    %v108 = vld [vmem:[#allocation2 + $0x8] sm:$0xff]
    %v109 = vsel %vm101, %v107, -inf
    %110 = vmax.xlane.f32.xlu0 %v109
    %v111 = vpop.xlane.xlu0 %110
    %v112 = vsel %vm101, %v108, -inf
    %113 = vmax.xlane.f32.xlu0 %v112
    %v114 = vpop.xlane.xlu0 %113
    %v115 = vsub.f32 %v107, %v111
    %v116 = vsub.f32 %v108, %v114
    %v117 = vmul.f32 %v115, 1.442695
    %v118 = vpow.pop %v117
    %v119 = vmul.f32 %v116, 1.442695
    %v120 = vpow.pop %v119
    %v121 = vsel %vm101, %v118, 0.0
    %122 = vadd.xlane.f32.xlu0 %v121
    %v123 = vpop.xlane.xlu0 %122
    %v124 = vsel %vm101, %v120, 0.0
    %125 = vadd.xlane.f32.xlu0 %v124
    %v126 = vpop.xlane.xlu0 %125
    %v127 = vlog2.pop %v123
    %v128 = vmul.f32 %v127, 0.6931472
    %v129 = vlog2.pop %v126
    %v130 = vmul.f32 %v129, 0.6931472
    %v131 = vadd.f32 %v128, %v111
    %v132 = vadd.f32 %v130, %v114
    %v133 = vsub.f32 %v107, %v131
    %v134 = vsub.f32 %v108, %v132
    %135 = vst.msk [vmem:[%s3] sm:$0xff] %vm101, %v133
    %136 = vst.msk [vmem:[%s3 + $0x8] sm:$0xff] %vm101, %v134
  $region21: #{trfm_seq2seq_forward.25} parent=0 // pred_fallthru
    _
  // Predicated region
  $region22: #{trfm_seq2seq_forward.25} parent=0 // pred_check
    _
  $region23: #{trfm_seq2seq_forward.25} parent=0 // pred_check_branch
    %138 = sbr.rel (0) target = $region25
  $region24: #{trfm_seq2seq_forward.25} parent=0 // pred_region
    _
  $region25: #{trfm_seq2seq_forward.25} parent=0 // pred_fallthru
    _
  // Predicated region
  $region26: #{trfm_seq2seq_forward.25} parent=0 // pred_check
    _
  $region27: #{trfm_seq2seq_forward.25} parent=0 // pred_check_branch
    %140 = sbr.rel (0) target = $region29
  $region28: #{trfm_seq2seq_forward.25} parent=0 // pred_region
    _
  $region29: #{trfm_seq2seq_forward.25} parent=0 // pred_fallthru
    _

</llo_original>
